<compile_context>
chip_gen: v6e
topology: v6e:2x2x1
jax: 0.10.0
libtpu: 0.0.40
codegen_flags: <defaults>
</compile_context>

<pallas_src>
import math

import jax
import jax.numpy as jnp
from jax.experimental import pallas as pl
from jax.experimental.pallas import tpu as pltpu

# ----------------------------- model config (small, synthetic) ---------------
VOCAB = 100
HIDDEN = 32
NUM_LAYERS = 2          # num_pretrained_bert_layers
NUM_HEADS = 4
HEAD_DIM = HIDDEN // NUM_HEADS
INTERMEDIATE = 64
MAX_SEQ = 8             # max_tokenization_length
LSTM_HIDDEN = 16        # hidden_size
NUM_CLASSES = 2
BATCH = 2
LN_EPS = 1e-12

# ----------------------------- packed small-vector table ---------------------
# All (1, K) bias / LayerNorm vectors live in one (N_VEC_ROWS, VEC_W) operand.
VEC_W = 64
ROW_EMB_LN_G = 0
ROW_EMB_LN_B = 1
ROW_LSTM_B = 2          # combined b_ih + b_hh
ROW_CLF_B = 3
ROW_LAYER_BASE = 4
ROWS_PER_LAYER = 8
(OFF_QV_B, OFF_AO_B, OFF_LN1_G, OFF_LN1_B,
 OFF_I_B, OFF_O_B, OFF_LN2_G, OFF_LN2_B) = range(ROWS_PER_LAYER)
N_VEC_ROWS = ROW_LAYER_BASE + ROWS_PER_LAYER * NUM_LAYERS


# ----------------------------- fused whole-model kernel ----------------------
def _fused_kernel(last_t_ref, emb_ref, mask_ref, vecs_ref,
                  qv_w_ref, kT_w_ref, ao_wh_ref, i_w_ref, o_w_ref,
                  lstm_w_ref, clf_w_ref, out_ref):
    """One grid step == one batch example; all intermediates stay in vregs."""

    def vec(row, width):
        return vecs_ref[row:row + 1, 0:width]                  # (1, width)

    def ln(x, g, b):
        mu = jnp.mean(x, axis=-1, keepdims=True)
        var = jnp.mean(jnp.square(x - mu), axis=-1, keepdims=True)
        return (x - mu) * jax.lax.rsqrt(var + LN_EPS) * g + b

    scale = 1.0 / math.sqrt(HEAD_DIM)
    mask_sq = mask_ref[0]                                      # (S, S) additive, pre-broadcast

    # ---- embeddings LayerNorm (dropout = identity in eval mode) ----
    x = ln(emb_ref[0], vec(ROW_EMB_LN_G, HIDDEN), vec(ROW_EMB_LN_B, HIDDEN))   # (S, D)

    # ---- BERT encoder layers (statically unrolled) ----
    for l in range(NUM_LAYERS):
        base = ROW_LAYER_BASE + l * ROWS_PER_LAYER

        # fused Q|V projection; K^T formed from a single per-layer x transpose
        qv = (jnp.dot(x, qv_w_ref[l], preferred_element_type=jnp.float32)
              + vec(base + OFF_QV_B, 2 * HIDDEN))              # (S, 2D) = [Q | V]
        xT = x.T                                               # (D, S), one transpose per layer
        kTl = kT_w_ref[l]                                      # (D, D+1) = [Wk^T | bk]
        kT = (jnp.dot(kTl[:, 0:HIDDEN], xT, preferred_element_type=jnp.float32)
              + kTl[:, HIDDEN:HIDDEN + 1])                     # (D, S)

        # self-attention: per-head contexts folded into the output projection
        attn = None
        for h in range(NUM_HEADS):
            c0 = h * HEAD_DIM
            qh = qv[:, c0:c0 + HEAD_DIM]                       # (S, HD)
            vh = qv[:, HIDDEN + c0:HIDDEN + c0 + HEAD_DIM]     # (S, HD)
            kTh = kT[c0:c0 + HEAD_DIM, :]                      # (HD, S)
            s = jnp.dot(qh, kTh, preferred_element_type=jnp.float32) * scale + mask_sq
            s = s - jnp.max(s, axis=-1, keepdims=True)
            p = jnp.exp(s)
            p = p / jnp.sum(p, axis=-1, keepdims=True)         # exact softmax (parity)
            ctx_h = jnp.dot(p, vh, preferred_element_type=jnp.float32)        # (S, HD)
            contrib = jnp.dot(ctx_h, ao_wh_ref[l, h],
                              preferred_element_type=jnp.float32)             # (S, D)
            attn = contrib if attn is None else attn + contrib

        attn = attn + vec(base + OFF_AO_B, HIDDEN)
        x = ln(attn + x, vec(base + OFF_LN1_G, HIDDEN), vec(base + OFF_LN1_B, HIDDEN))

        # FFN (exact erf-based GELU) + residual + LN2
        inter = (jnp.dot(x, i_w_ref[l], preferred_element_type=jnp.float32)
                 + vec(base + OFF_I_B, INTERMEDIATE))
        inter = 0.5 * inter * (1.0 + jax.lax.erf(inter * 0.7071067811865476))
        ffn = (jnp.dot(inter, o_w_ref[l], preferred_element_type=jnp.float32)
               + vec(base + OFF_O_B, HIDDEN))
        x = ln(ffn + x, vec(base + OFF_LN2_G, HIDDEN), vec(base + OFF_LN2_B, HIDDEN))

    # ---- LSTM over the sequence output (zero h0/c0, batch_first semantics) ----
    wih = lstm_w_ref[0:HIDDEN, :]                              # (D, 4H)
    whh = lstm_w_ref[HIDDEN:HIDDEN + LSTM_HIDDEN, :]           # (H, 4H)
    # input contribution hoisted off the recurrence critical path
    gates_x = (jnp.dot(x, wih, preferred_element_type=jnp.float32)
               + vec(ROW_LSTM_B, 4 * LSTM_HIDDEN))             # (S, 4H)

    Hh = LSTM_HIDDEN
    h_state = jnp.zeros((1, Hh), jnp.float32)
    c_state = jnp.zeros((1, Hh), jnp.float32)
    pooled = jnp.zeros((1, Hh), jnp.float32)
    last_t = last_t_ref[pl.program_id(0)]                      # SMEM scalar

    for t in range(MAX_SEQ):
        g = gates_x[t:t + 1, :] + jnp.dot(h_state, whh, preferred_element_type=jnp.float32)
        i_g = jax.nn.sigmoid(g[:, 0 * Hh:1 * Hh])              # PyTorch gate order: i, f, g, o
        f_g = jax.nn.sigmoid(g[:, 1 * Hh:2 * Hh])
        g_g = jnp.tanh(g[:, 2 * Hh:3 * Hh])
        o_g = jax.nn.sigmoid(g[:, 3 * Hh:4 * Hh])
        c_state = f_g * c_state + i_g * g_g
        h_state = o_g * jnp.tanh(c_state)
        # pool the hidden state at the first-zero position of attention_mask
        # (matches the PyTorch module's `.index(0)` semantics)
        is_t = (last_t == t).astype(jnp.float32)
        pooled = pooled + is_t * (h_state - pooled)

    # dropout = identity (eval); final classifier fused
    logits = (jnp.dot(pooled, clf_w_ref[...], preferred_element_type=jnp.float32)
              + vec(ROW_CLF_B, NUM_CLASSES))                   # (1, NC)
    out_ref[...] = logits[None, :, :]


# ----------------------------- forward (XLA glue kept minimal) ---------------
def finetuned_bert_forward(params, input_ids, token_type_ids, attention_mask):
    B, S = input_ids.shape

    # HF-BERT extended additive attention mask, pre-broadcast over query positions
    add_mask = (1.0 - attention_mask.astype(jnp.float32)) * -10000.0          # (B, S)
    mask_bcast = jnp.broadcast_to(add_mask[:, None, :], (B, S, S))

    # embedding lookups (tiny gathers) stay in XLA
    emb = (jnp.take(params["word_emb"], input_ids, axis=0)
           + params["pos_emb"][None, :S, :]
           + jnp.take(params["type_emb"], token_type_ids, axis=0))            # (B, S, D)

    # last_timesteps = index of first 0 in attention_mask, else max_len - 1
    has_zero = jnp.any(attention_mask == 0, axis=1)
    first_zero = jnp.argmax(attention_mask == 0, axis=1)
    last_t = jnp.where(has_zero, first_zero, S - 1).astype(jnp.int32)         # (B,)

    grid_spec = pltpu.PrefetchScalarGridSpec(
        num_scalar_prefetch=1,
        grid=(B,),
        in_specs=[
            pl.BlockSpec((1, S, HIDDEN), lambda b, lt: (b, 0, 0)),            # embeddings
            pl.BlockSpec((1, S, S), lambda b, lt: (b, 0, 0)),                 # additive mask
            pl.BlockSpec((N_VEC_ROWS, VEC_W), lambda b, lt: (0, 0)),          # packed vectors
            pl.BlockSpec((NUM_LAYERS, HIDDEN, 2 * HIDDEN), lambda b, lt: (0, 0, 0)),    # [Wq|Wv]
            pl.BlockSpec((NUM_LAYERS, HIDDEN, HIDDEN + 1), lambda b, lt: (0, 0, 0)),    # [Wk^T|bk]
            pl.BlockSpec((NUM_LAYERS, NUM_HEADS, HEAD_DIM, HIDDEN),
                         lambda b, lt: (0, 0, 0, 0)),                         # ao_w head-split
            pl.BlockSpec((NUM_LAYERS, HIDDEN, INTERMEDIATE), lambda b, lt: (0, 0, 0)),
            pl.BlockSpec((NUM_LAYERS, INTERMEDIATE, HIDDEN), lambda b, lt: (0, 0, 0)),
            pl.BlockSpec((HIDDEN + LSTM_HIDDEN, 4 * LSTM_HIDDEN), lambda b, lt: (0, 0)),
            pl.BlockSpec((LSTM_HIDDEN, NUM_CLASSES), lambda b, lt: (0, 0)),
        ],
        out_specs=pl.BlockSpec((1, 1, NUM_CLASSES), lambda b, lt: (b, 0, 0)),
    )

    # NOTE: the BERT pooler output is unused by the LSTM classification branch
    # of the reference module, so it is not computed here (dead code removed).
    logits = pl.pallas_call(
        _fused_kernel,
        out_shape=jax.ShapeDtypeStruct((B, 1, NUM_CLASSES), jnp.float32),
        grid_spec=grid_spec,
        compiler_params=pltpu.CompilerParams(
            dimension_semantics=("parallel",)),    # both TensorCores on v7x
    )(last_t, emb, mask_bcast, params["vecs"],
      params["qv_w"], params["kT_w"], params["ao_wh"],
      params["i_w"], params["o_w"], params["lstm_w"], params["clf_w"])
    return logits.reshape(B, NUM_CLASSES)


# ----------------------------- deterministic parameter init ------------------
def init_params(key):
    keys = iter(jax.random.split(key, 64))

    def nrm(shape, scale=0.02):
        return scale * jax.random.normal(next(keys), shape, dtype=jnp.float32)

    def unif(shape, bound):
        return jax.random.uniform(next(keys), shape, jnp.float32, -bound, bound)

    def pad_row(v):
        v = jnp.asarray(v, jnp.float32).reshape(-1)
        return jnp.pad(v, (0, VEC_W - v.shape[0]))

    params = {
        "word_emb": nrm((VOCAB, HIDDEN)),
        "pos_emb": nrm((MAX_SEQ, HIDDEN)),
        "type_emb": nrm((2, HIDDEN)),
    }

    bound = 1.0 / math.sqrt(LSTM_HIDDEN)
    # combined b_ih + b_hh (for real checkpoints, sum both PyTorch biases here)
    lstm_b = unif((4 * LSTM_HIDDEN,), bound)

    vec_rows = [None] * N_VEC_ROWS
    vec_rows[ROW_EMB_LN_G] = pad_row(jnp.ones((HIDDEN,), jnp.float32))
    vec_rows[ROW_EMB_LN_B] = pad_row(jnp.zeros((HIDDEN,), jnp.float32))
    vec_rows[ROW_LSTM_B] = pad_row(lstm_b)
    vec_rows[ROW_CLF_B] = pad_row(jnp.zeros((NUM_CLASSES,), jnp.float32))

    qv_w, kT_w, ao_wh, i_w, o_w = [], [], [], [], []
    for l in range(NUM_LAYERS):
        q_w, k_w, v_w = (nrm((HIDDEN, HIDDEN)), nrm((HIDDEN, HIDDEN)),
                         nrm((HIDDEN, HIDDEN)))
        k_b = jnp.zeros((HIDDEN,), jnp.float32)
        qv_w.append(jnp.concatenate([q_w, v_w], axis=1))                        # (D, 2D)
        kT_w.append(jnp.concatenate([k_w.T, k_b.reshape(HIDDEN, 1)], axis=1))   # (D, D+1)
        a_w = nrm((HIDDEN, HIDDEN))
        ao_wh.append(a_w.reshape(NUM_HEADS, HEAD_DIM, HIDDEN))                  # head-split rows
        i_w.append(nrm((HIDDEN, INTERMEDIATE)))
        o_w.append(nrm((INTERMEDIATE, HIDDEN)))

        base = ROW_LAYER_BASE + l * ROWS_PER_LAYER
        vec_rows[base + OFF_QV_B] = pad_row(jnp.zeros((2 * HIDDEN,), jnp.float32))
        vec_rows[base + OFF_AO_B] = pad_row(jnp.zeros((HIDDEN,), jnp.float32))
        vec_rows[base + OFF_LN1_G] = pad_row(jnp.ones((HIDDEN,), jnp.float32))
        vec_rows[base + OFF_LN1_B] = pad_row(jnp.zeros((HIDDEN,), jnp.float32))
        vec_rows[base + OFF_I_B] = pad_row(jnp.zeros((INTERMEDIATE,), jnp.float32))
        vec_rows[base + OFF_O_B] = pad_row(jnp.zeros((HIDDEN,), jnp.float32))
        vec_rows[base + OFF_LN2_G] = pad_row(jnp.ones((HIDDEN,), jnp.float32))
        vec_rows[base + OFF_LN2_B] = pad_row(jnp.zeros((HIDDEN,), jnp.float32))

    params["vecs"] = jnp.stack(vec_rows, axis=0)                # (N_VEC_ROWS, VEC_W)
    params["qv_w"] = jnp.stack(qv_w, axis=0)
    params["kT_w"] = jnp.stack(kT_w, axis=0)
    params["ao_wh"] = jnp.stack(ao_wh, axis=0)
    params["i_w"] = jnp.stack(i_w, axis=0)
    params["o_w"] = jnp.stack(o_w, axis=0)
    params["lstm_w"] = jnp.concatenate(
        [unif((HIDDEN, 4 * LSTM_HIDDEN), bound),                # W_ih (math layout)
         unif((LSTM_HIDDEN, 4 * LSTM_HIDDEN), bound)], axis=0)  # W_hh
    params["clf_w"] = nrm((LSTM_HIDDEN, NUM_CLASSES))
    return params


# TODO(synk): tokenizer / pretrained-checkpoint state-dict surgery in __init__
#             is host-side preprocessing with no kernel equivalent; parameters
#             are initialized synthetically instead.

if __name__ == "__main__":
    root = jax.random.PRNGKey(0)
    k_param, k_ids = jax.random.split(root)

    params = init_params(k_param)

    input_ids = jax.random.randint(k_ids, (BATCH, MAX_SEQ), 0, VOCAB, dtype=jnp.int32)
    token_type_ids = jnp.zeros((BATCH, MAX_SEQ), dtype=jnp.int32)
    # one padded example (first 0 at position 5) and one full-length example
    attention_mask = jnp.array([[1, 1, 1, 1, 1, 0, 0, 0],
                                [1, 1, 1, 1, 1, 1, 1, 1]], dtype=jnp.int32)

    fwd = jax.jit(finetuned_bert_forward)
    logits = fwd(params, input_ids, token_type_ids, attention_mask)
    jax.block_until_ready(logits)
    assert logits.shape == (BATCH, NUM_CLASSES)
    print("KERNEL_OK")
</pallas_src>

<mosaic_0001>
module attributes {stable_mosaic.version = 11 : i64} {
  func.func @_fused_kernel(%arg0: i32, %arg1: memref<2xi32, #tpu.memory_space<smem>>, %arg2: memref<1x8x32xf32, #tpu.memory_space<vmem>>, %arg3: memref<1x8x8xf32, #tpu.memory_space<vmem>>, %arg4: memref<20x64xf32, #tpu.memory_space<vmem>>, %arg5: memref<2x32x64xf32, #tpu.memory_space<vmem>>, %arg6: memref<2x32x33xf32, #tpu.memory_space<vmem>>, %arg7: memref<2x4x8x32xf32, #tpu.memory_space<vmem>>, %arg8: memref<2x32x64xf32, #tpu.memory_space<vmem>>, %arg9: memref<2x64x32xf32, #tpu.memory_space<vmem>>, %arg10: memref<48x64xf32, #tpu.memory_space<vmem>>, %arg11: memref<16x2xf32, #tpu.memory_space<vmem>>, %arg12: memref<1x1x2xf32, #tpu.memory_space<vmem>>) attributes {dimension_semantics = [#tpu.dimension_semantics<parallel>], iteration_bounds = array<i64: 2>, scalar_prefetch = 1 : i64, scratch_operands = 0 : i64, tpu.core_type = #tpu.core_type<tc>, window_params = [{transform_indices = @transform_0, window_bounds = array<i64: 1, 8, 32>}, {transform_indices = @transform_1, window_bounds = array<i64: 1, 8, 8>}, {pipeline_mode = #tpu.pipeline_mode<synchronous>, transform_indices = @transform_2, window_bounds = array<i64: 20, 64>}, {pipeline_mode = #tpu.pipeline_mode<synchronous>, transform_indices = @transform_3, window_bounds = array<i64: 2, 32, 64>}, {pipeline_mode = #tpu.pipeline_mode<synchronous>, transform_indices = @transform_4, window_bounds = array<i64: 2, 32, 33>}, {pipeline_mode = #tpu.pipeline_mode<synchronous>, transform_indices = @transform_5, window_bounds = array<i64: 2, 4, 8, 32>}, {pipeline_mode = #tpu.pipeline_mode<synchronous>, transform_indices = @transform_6, window_bounds = array<i64: 2, 32, 64>}, {pipeline_mode = #tpu.pipeline_mode<synchronous>, transform_indices = @transform_7, window_bounds = array<i64: 2, 64, 32>}, {pipeline_mode = #tpu.pipeline_mode<synchronous>, transform_indices = @transform_8, window_bounds = array<i64: 48, 64>}, {pipeline_mode = #tpu.pipeline_mode<synchronous>, transform_indices = @transform_9, window_bounds = array<i64: 16, 2>}, {transform_indices = @transform_10, window_bounds = array<i64: 1, 1, 2>}]} {
    %c0 = arith.constant 0 : index
    %c0_0 = arith.constant 0 : index
    %c0_1 = arith.constant 0 : index
    %0 = vector.load %arg3[%c0, %c0_0, %c0_1] : memref<1x8x8xf32, #tpu.memory_space<vmem>>, vector<1x8x8xf32>
    %1 = vector.shape_cast %0 : vector<1x8x8xf32> to vector<8x8xf32>
    %c0_2 = arith.constant 0 : index
    %c0_3 = arith.constant 0 : index
    %c0_4 = arith.constant 0 : index
    %2 = vector.load %arg2[%c0_2, %c0_3, %c0_4] : memref<1x8x32xf32, #tpu.memory_space<vmem>>, vector<1x8x32xf32>
    %3 = vector.shape_cast %2 : vector<1x8x32xf32> to vector<8x32xf32>
    %c0_5 = arith.constant 0 : index
    %c0_6 = arith.constant 0 : index
    %4 = vector.load %arg4[%c0_5, %c0_6] : memref<20x64xf32, #tpu.memory_space<vmem>>, vector<1x32xf32>
    %c1 = arith.constant 1 : index
    %c0_7 = arith.constant 0 : index
    %5 = vector.load %arg4[%c1, %c0_7] : memref<20x64xf32, #tpu.memory_space<vmem>>, vector<1x32xf32>
    %cst = arith.constant dense<0.000000e+00> : vector<8xf32>
    %6 = vector.multi_reduction <add>, %3, %cst [1] : vector<8x32xf32> to vector<8xf32>
    %7 = vector.shape_cast %6 : vector<8xf32> to vector<8x1xf32>
    %cst_8 = arith.constant 3.200000e+01 : f32
    %8 = vector.broadcast %cst_8 : f32 to vector<8x1xf32>
    %9 = arith.divf %7, %8 : vector<8x1xf32>
    %10 = vector.broadcast %9 : vector<8x1xf32> to vector<8x32xf32>
    %11 = arith.subf %3, %10 : vector<8x32xf32>
    %12 = arith.mulf %11, %11 : vector<8x32xf32>
    %cst_9 = arith.constant dense<0.000000e+00> : vector<8xf32>
    %13 = vector.multi_reduction <add>, %12, %cst_9 [1] : vector<8x32xf32> to vector<8xf32>
    %14 = vector.shape_cast %13 : vector<8xf32> to vector<8x1xf32>
    %cst_10 = arith.constant 3.200000e+01 : f32
    %15 = vector.broadcast %cst_10 : f32 to vector<8x1xf32>
    %16 = arith.divf %14, %15 : vector<8x1xf32>
    %17 = vector.broadcast %9 : vector<8x1xf32> to vector<8x32xf32>
    %18 = arith.subf %3, %17 : vector<8x32xf32>
    %cst_11 = arith.constant 9.99999996E-13 : f32
    %19 = vector.broadcast %cst_11 : f32 to vector<8x1xf32>
    %20 = arith.addf %16, %19 : vector<8x1xf32>
    %21 = math.rsqrt %20 : vector<8x1xf32>
    %22 = vector.broadcast %21 : vector<8x1xf32> to vector<8x32xf32>
    %23 = arith.mulf %18, %22 : vector<8x32xf32>
    %24 = vector.broadcast %4 : vector<1x32xf32> to vector<8x32xf32>
    %25 = arith.mulf %23, %24 : vector<8x32xf32>
    %26 = vector.broadcast %5 : vector<1x32xf32> to vector<8x32xf32>
    %27 = arith.addf %25, %26 : vector<8x32xf32>
    %c0_12 = arith.constant 0 : index
    %c0_13 = arith.constant 0 : index
    %c0_14 = arith.constant 0 : index
    %28 = vector.load %arg5[%c0_12, %c0_13, %c0_14] : memref<2x32x64xf32, #tpu.memory_space<vmem>>, vector<1x32x64xf32>
    %29 = vector.shape_cast %28 : vector<1x32x64xf32> to vector<32x64xf32>
    %cst_15 = arith.constant dense<0.000000e+00> : vector<8x64xf32>
    %30 = tpu.matmul %27, %29, %cst_15 {dimension_numbers = #tpu.dot_dimension_numbers<[1], [0], [0], [1], [0, 0, 1, 1], [], []>} : vector<8x32xf32>, vector<32x64xf32>, vector<8x64xf32> -> vector<8x64xf32>
    %c4 = arith.constant 4 : index
    %c0_16 = arith.constant 0 : index
    %31 = vector.load %arg4[%c4, %c0_16] : memref<20x64xf32, #tpu.memory_space<vmem>>, vector<1x64xf32>
    %32 = vector.broadcast %31 : vector<1x64xf32> to vector<8x64xf32>
    %33 = arith.addf %30, %32 : vector<8x64xf32>
    %34 = tpu.transpose %27, [1, 0] : vector<8x32xf32> -> vector<32x8xf32>
    %c0_17 = arith.constant 0 : index
    %c0_18 = arith.constant 0 : index
    %c0_19 = arith.constant 0 : index
    %35 = vector.load %arg6[%c0_17, %c0_18, %c0_19] : memref<2x32x33xf32, #tpu.memory_space<vmem>>, vector<1x32x33xf32>
    %36 = vector.shape_cast %35 : vector<1x32x33xf32> to vector<32x33xf32>
    %37 = vector.extract_strided_slice %36 {offsets = [0, 0], sizes = [32, 32], strides = [1, 1]} : vector<32x33xf32> to vector<32x32xf32>
    %cst_20 = arith.constant dense<0.000000e+00> : vector<32x8xf32>
    %38 = tpu.matmul %37, %34, %cst_20 {dimension_numbers = #tpu.dot_dimension_numbers<[1], [0], [0], [1], [0, 0, 1, 1], [], []>} : vector<32x32xf32>, vector<32x8xf32>, vector<32x8xf32> -> vector<32x8xf32>
    %39 = vector.extract_strided_slice %36 {offsets = [0, 32], sizes = [32, 1], strides = [1, 1]} : vector<32x33xf32> to vector<32x1xf32>
    %40 = vector.broadcast %39 : vector<32x1xf32> to vector<32x8xf32>
    %41 = arith.addf %38, %40 : vector<32x8xf32>
    %42 = vector.extract_strided_slice %33 {offsets = [0, 0], sizes = [8, 8], strides = [1, 1]} : vector<8x64xf32> to vector<8x8xf32>
    %43 = vector.extract_strided_slice %33 {offsets = [0, 32], sizes = [8, 8], strides = [1, 1]} : vector<8x64xf32> to vector<8x8xf32>
    %44 = vector.extract_strided_slice %41 {offsets = [0, 0], sizes = [8, 8], strides = [1, 1]} : vector<32x8xf32> to vector<8x8xf32>
    %cst_21 = arith.constant dense<0.000000e+00> : vector<8x8xf32>
    %45 = tpu.matmul %42, %44, %cst_21 {dimension_numbers = #tpu.dot_dimension_numbers<[1], [0], [0], [1], [0, 0, 1, 1], [], []>} : vector<8x8xf32>, vector<8x8xf32>, vector<8x8xf32> -> vector<8x8xf32>
    %cst_22 = arith.constant 0.353553385 : f32
    %46 = vector.broadcast %cst_22 : f32 to vector<8x8xf32>
    %47 = arith.mulf %45, %46 : vector<8x8xf32>
    %48 = arith.addf %47, %1 : vector<8x8xf32>
    %cst_23 = arith.constant dense<0xFF800000> : vector<8xf32>
    %49 = vector.multi_reduction <maximumf>, %48, %cst_23 [1] : vector<8x8xf32> to vector<8xf32>
    %50 = vector.shape_cast %49 : vector<8xf32> to vector<8x1xf32>
    %51 = vector.broadcast %50 : vector<8x1xf32> to vector<8x8xf32>
    %52 = arith.subf %48, %51 : vector<8x8xf32>
    %53 = math.exp %52 : vector<8x8xf32>
    %cst_24 = arith.constant dense<0.000000e+00> : vector<8xf32>
    %54 = vector.multi_reduction <add>, %53, %cst_24 [1] : vector<8x8xf32> to vector<8xf32>
    %55 = vector.shape_cast %54 : vector<8xf32> to vector<8x1xf32>
    %56 = vector.broadcast %55 : vector<8x1xf32> to vector<8x8xf32>
    %57 = arith.divf %53, %56 : vector<8x8xf32>
    %cst_25 = arith.constant dense<0.000000e+00> : vector<8x8xf32>
    %58 = tpu.matmul %57, %43, %cst_25 {dimension_numbers = #tpu.dot_dimension_numbers<[1], [0], [0], [1], [0, 0, 1, 1], [], []>} : vector<8x8xf32>, vector<8x8xf32>, vector<8x8xf32> -> vector<8x8xf32>
    %c0_26 = arith.constant 0 : index
    %c0_27 = arith.constant 0 : index
    %c0_28 = arith.constant 0 : index
    %c0_29 = arith.constant 0 : index
    %59 = vector.load %arg7[%c0_26, %c0_27, %c0_28, %c0_29] : memref<2x4x8x32xf32, #tpu.memory_space<vmem>>, vector<1x1x8x32xf32>
    %60 = vector.shape_cast %59 : vector<1x1x8x32xf32> to vector<8x32xf32>
    %cst_30 = arith.constant dense<0.000000e+00> : vector<8x32xf32>
    %61 = tpu.matmul %58, %60, %cst_30 {dimension_numbers = #tpu.dot_dimension_numbers<[1], [0], [0], [1], [0, 0, 1, 1], [], []>} : vector<8x8xf32>, vector<8x32xf32>, vector<8x32xf32> -> vector<8x32xf32>
    %62 = vector.extract_strided_slice %33 {offsets = [0, 8], sizes = [8, 8], strides = [1, 1]} : vector<8x64xf32> to vector<8x8xf32>
    %63 = vector.extract_strided_slice %33 {offsets = [0, 40], sizes = [8, 8], strides = [1, 1]} : vector<8x64xf32> to vector<8x8xf32>
    %64 = vector.extract_strided_slice %41 {offsets = [8, 0], sizes = [8, 8], strides = [1, 1]} : vector<32x8xf32> to vector<8x8xf32>
    %cst_31 = arith.constant dense<0.000000e+00> : vector<8x8xf32>
    %65 = tpu.matmul %62, %64, %cst_31 {dimension_numbers = #tpu.dot_dimension_numbers<[1], [0], [0], [1], [0, 0, 1, 1], [], []>} : vector<8x8xf32>, vector<8x8xf32>, vector<8x8xf32> -> vector<8x8xf32>
    %cst_32 = arith.constant 0.353553385 : f32
    %66 = vector.broadcast %cst_32 : f32 to vector<8x8xf32>
    %67 = arith.mulf %65, %66 : vector<8x8xf32>
    %68 = arith.addf %67, %1 : vector<8x8xf32>
    %cst_33 = arith.constant dense<0xFF800000> : vector<8xf32>
    %69 = vector.multi_reduction <maximumf>, %68, %cst_33 [1] : vector<8x8xf32> to vector<8xf32>
    %70 = vector.shape_cast %69 : vector<8xf32> to vector<8x1xf32>
    %71 = vector.broadcast %70 : vector<8x1xf32> to vector<8x8xf32>
    %72 = arith.subf %68, %71 : vector<8x8xf32>
    %73 = math.exp %72 : vector<8x8xf32>
    %cst_34 = arith.constant dense<0.000000e+00> : vector<8xf32>
    %74 = vector.multi_reduction <add>, %73, %cst_34 [1] : vector<8x8xf32> to vector<8xf32>
    %75 = vector.shape_cast %74 : vector<8xf32> to vector<8x1xf32>
    %76 = vector.broadcast %75 : vector<8x1xf32> to vector<8x8xf32>
    %77 = arith.divf %73, %76 : vector<8x8xf32>
    %cst_35 = arith.constant dense<0.000000e+00> : vector<8x8xf32>
    %78 = tpu.matmul %77, %63, %cst_35 {dimension_numbers = #tpu.dot_dimension_numbers<[1], [0], [0], [1], [0, 0, 1, 1], [], []>} : vector<8x8xf32>, vector<8x8xf32>, vector<8x8xf32> -> vector<8x8xf32>
    %c0_36 = arith.constant 0 : index
    %c1_37 = arith.constant 1 : index
    %c0_38 = arith.constant 0 : index
    %c0_39 = arith.constant 0 : index
    %79 = vector.load %arg7[%c0_36, %c1_37, %c0_38, %c0_39] : memref<2x4x8x32xf32, #tpu.memory_space<vmem>>, vector<1x1x8x32xf32>
    %80 = vector.shape_cast %79 : vector<1x1x8x32xf32> to vector<8x32xf32>
    %cst_40 = arith.constant dense<0.000000e+00> : vector<8x32xf32>
    %81 = tpu.matmul %78, %80, %cst_40 {dimension_numbers = #tpu.dot_dimension_numbers<[1], [0], [0], [1], [0, 0, 1, 1], [], []>} : vector<8x8xf32>, vector<8x32xf32>, vector<8x32xf32> -> vector<8x32xf32>
    %82 = arith.addf %61, %81 : vector<8x32xf32>
    %83 = vector.extract_strided_slice %33 {offsets = [0, 16], sizes = [8, 8], strides = [1, 1]} : vector<8x64xf32> to vector<8x8xf32>
    %84 = vector.extract_strided_slice %33 {offsets = [0, 48], sizes = [8, 8], strides = [1, 1]} : vector<8x64xf32> to vector<8x8xf32>
    %85 = vector.extract_strided_slice %41 {offsets = [16, 0], sizes = [8, 8], strides = [1, 1]} : vector<32x8xf32> to vector<8x8xf32>
    %cst_41 = arith.constant dense<0.000000e+00> : vector<8x8xf32>
    %86 = tpu.matmul %83, %85, %cst_41 {dimension_numbers = #tpu.dot_dimension_numbers<[1], [0], [0], [1], [0, 0, 1, 1], [], []>} : vector<8x8xf32>, vector<8x8xf32>, vector<8x8xf32> -> vector<8x8xf32>
    %cst_42 = arith.constant 0.353553385 : f32
    %87 = vector.broadcast %cst_42 : f32 to vector<8x8xf32>
    %88 = arith.mulf %86, %87 : vector<8x8xf32>
    %89 = arith.addf %88, %1 : vector<8x8xf32>
    %cst_43 = arith.constant dense<0xFF800000> : vector<8xf32>
    %90 = vector.multi_reduction <maximumf>, %89, %cst_43 [1] : vector<8x8xf32> to vector<8xf32>
    %91 = vector.shape_cast %90 : vector<8xf32> to vector<8x1xf32>
    %92 = vector.broadcast %91 : vector<8x1xf32> to vector<8x8xf32>
    %93 = arith.subf %89, %92 : vector<8x8xf32>
    %94 = math.exp %93 : vector<8x8xf32>
    %cst_44 = arith.constant dense<0.000000e+00> : vector<8xf32>
    %95 = vector.multi_reduction <add>, %94, %cst_44 [1] : vector<8x8xf32> to vector<8xf32>
    %96 = vector.shape_cast %95 : vector<8xf32> to vector<8x1xf32>
    %97 = vector.broadcast %96 : vector<8x1xf32> to vector<8x8xf32>
    %98 = arith.divf %94, %97 : vector<8x8xf32>
    %cst_45 = arith.constant dense<0.000000e+00> : vector<8x8xf32>
    %99 = tpu.matmul %98, %84, %cst_45 {dimension_numbers = #tpu.dot_dimension_numbers<[1], [0], [0], [1], [0, 0, 1, 1], [], []>} : vector<8x8xf32>, vector<8x8xf32>, vector<8x8xf32> -> vector<8x8xf32>
    %c0_46 = arith.constant 0 : index
    %c2 = arith.constant 2 : index
    %c0_47 = arith.constant 0 : index
    %c0_48 = arith.constant 0 : index
    %100 = vector.load %arg7[%c0_46, %c2, %c0_47, %c0_48] : memref<2x4x8x32xf32, #tpu.memory_space<vmem>>, vector<1x1x8x32xf32>
    %101 = vector.shape_cast %100 : vector<1x1x8x32xf32> to vector<8x32xf32>
    %cst_49 = arith.constant dense<0.000000e+00> : vector<8x32xf32>
    %102 = tpu.matmul %99, %101, %cst_49 {dimension_numbers = #tpu.dot_dimension_numbers<[1], [0], [0], [1], [0, 0, 1, 1], [], []>} : vector<8x8xf32>, vector<8x32xf32>, vector<8x32xf32> -> vector<8x32xf32>
    %103 = arith.addf %82, %102 : vector<8x32xf32>
    %104 = vector.extract_strided_slice %33 {offsets = [0, 24], sizes = [8, 8], strides = [1, 1]} : vector<8x64xf32> to vector<8x8xf32>
    %105 = vector.extract_strided_slice %33 {offsets = [0, 56], sizes = [8, 8], strides = [1, 1]} : vector<8x64xf32> to vector<8x8xf32>
    %106 = vector.extract_strided_slice %41 {offsets = [24, 0], sizes = [8, 8], strides = [1, 1]} : vector<32x8xf32> to vector<8x8xf32>
    %cst_50 = arith.constant dense<0.000000e+00> : vector<8x8xf32>
    %107 = tpu.matmul %104, %106, %cst_50 {dimension_numbers = #tpu.dot_dimension_numbers<[1], [0], [0], [1], [0, 0, 1, 1], [], []>} : vector<8x8xf32>, vector<8x8xf32>, vector<8x8xf32> -> vector<8x8xf32>
    %cst_51 = arith.constant 0.353553385 : f32
    %108 = vector.broadcast %cst_51 : f32 to vector<8x8xf32>
    %109 = arith.mulf %107, %108 : vector<8x8xf32>
    %110 = arith.addf %109, %1 : vector<8x8xf32>
    %cst_52 = arith.constant dense<0xFF800000> : vector<8xf32>
    %111 = vector.multi_reduction <maximumf>, %110, %cst_52 [1] : vector<8x8xf32> to vector<8xf32>
    %112 = vector.shape_cast %111 : vector<8xf32> to vector<8x1xf32>
    %113 = vector.broadcast %112 : vector<8x1xf32> to vector<8x8xf32>
    %114 = arith.subf %110, %113 : vector<8x8xf32>
    %115 = math.exp %114 : vector<8x8xf32>
    %cst_53 = arith.constant dense<0.000000e+00> : vector<8xf32>
    %116 = vector.multi_reduction <add>, %115, %cst_53 [1] : vector<8x8xf32> to vector<8xf32>
    %117 = vector.shape_cast %116 : vector<8xf32> to vector<8x1xf32>
    %118 = vector.broadcast %117 : vector<8x1xf32> to vector<8x8xf32>
    %119 = arith.divf %115, %118 : vector<8x8xf32>
    %cst_54 = arith.constant dense<0.000000e+00> : vector<8x8xf32>
    %120 = tpu.matmul %119, %105, %cst_54 {dimension_numbers = #tpu.dot_dimension_numbers<[1], [0], [0], [1], [0, 0, 1, 1], [], []>} : vector<8x8xf32>, vector<8x8xf32>, vector<8x8xf32> -> vector<8x8xf32>
    %c0_55 = arith.constant 0 : index
    %c3 = arith.constant 3 : index
    %c0_56 = arith.constant 0 : index
    %c0_57 = arith.constant 0 : index
    %121 = vector.load %arg7[%c0_55, %c3, %c0_56, %c0_57] : memref<2x4x8x32xf32, #tpu.memory_space<vmem>>, vector<1x1x8x32xf32>
    %122 = vector.shape_cast %121 : vector<1x1x8x32xf32> to vector<8x32xf32>
    %cst_58 = arith.constant dense<0.000000e+00> : vector<8x32xf32>
    %123 = tpu.matmul %120, %122, %cst_58 {dimension_numbers = #tpu.dot_dimension_numbers<[1], [0], [0], [1], [0, 0, 1, 1], [], []>} : vector<8x8xf32>, vector<8x32xf32>, vector<8x32xf32> -> vector<8x32xf32>
    %124 = arith.addf %103, %123 : vector<8x32xf32>
    %c5 = arith.constant 5 : index
    %c0_59 = arith.constant 0 : index
    %125 = vector.load %arg4[%c5, %c0_59] : memref<20x64xf32, #tpu.memory_space<vmem>>, vector<1x32xf32>
    %126 = vector.broadcast %125 : vector<1x32xf32> to vector<8x32xf32>
    %127 = arith.addf %124, %126 : vector<8x32xf32>
    %128 = arith.addf %127, %27 : vector<8x32xf32>
    %c6 = arith.constant 6 : index
    %c0_60 = arith.constant 0 : index
    %129 = vector.load %arg4[%c6, %c0_60] : memref<20x64xf32, #tpu.memory_space<vmem>>, vector<1x32xf32>
    %c7 = arith.constant 7 : index
    %c0_61 = arith.constant 0 : index
    %130 = vector.load %arg4[%c7, %c0_61] : memref<20x64xf32, #tpu.memory_space<vmem>>, vector<1x32xf32>
    %cst_62 = arith.constant dense<0.000000e+00> : vector<8xf32>
    %131 = vector.multi_reduction <add>, %128, %cst_62 [1] : vector<8x32xf32> to vector<8xf32>
    %132 = vector.shape_cast %131 : vector<8xf32> to vector<8x1xf32>
    %cst_63 = arith.constant 3.200000e+01 : f32
    %133 = vector.broadcast %cst_63 : f32 to vector<8x1xf32>
    %134 = arith.divf %132, %133 : vector<8x1xf32>
    %135 = vector.broadcast %134 : vector<8x1xf32> to vector<8x32xf32>
    %136 = arith.subf %128, %135 : vector<8x32xf32>
    %137 = arith.mulf %136, %136 : vector<8x32xf32>
    %cst_64 = arith.constant dense<0.000000e+00> : vector<8xf32>
    %138 = vector.multi_reduction <add>, %137, %cst_64 [1] : vector<8x32xf32> to vector<8xf32>
    %139 = vector.shape_cast %138 : vector<8xf32> to vector<8x1xf32>
    %cst_65 = arith.constant 3.200000e+01 : f32
    %140 = vector.broadcast %cst_65 : f32 to vector<8x1xf32>
    %141 = arith.divf %139, %140 : vector<8x1xf32>
    %142 = vector.broadcast %134 : vector<8x1xf32> to vector<8x32xf32>
    %143 = arith.subf %128, %142 : vector<8x32xf32>
    %cst_66 = arith.constant 9.99999996E-13 : f32
    %144 = vector.broadcast %cst_66 : f32 to vector<8x1xf32>
    %145 = arith.addf %141, %144 : vector<8x1xf32>
    %146 = math.rsqrt %145 : vector<8x1xf32>
    %147 = vector.broadcast %146 : vector<8x1xf32> to vector<8x32xf32>
    %148 = arith.mulf %143, %147 : vector<8x32xf32>
    %149 = vector.broadcast %129 : vector<1x32xf32> to vector<8x32xf32>
    %150 = arith.mulf %148, %149 : vector<8x32xf32>
    %151 = vector.broadcast %130 : vector<1x32xf32> to vector<8x32xf32>
    %152 = arith.addf %150, %151 : vector<8x32xf32>
    %c0_67 = arith.constant 0 : index
    %c0_68 = arith.constant 0 : index
    %c0_69 = arith.constant 0 : index
    %153 = vector.load %arg8[%c0_67, %c0_68, %c0_69] : memref<2x32x64xf32, #tpu.memory_space<vmem>>, vector<1x32x64xf32>
    %154 = vector.shape_cast %153 : vector<1x32x64xf32> to vector<32x64xf32>
    %cst_70 = arith.constant dense<0.000000e+00> : vector<8x64xf32>
    %155 = tpu.matmul %152, %154, %cst_70 {dimension_numbers = #tpu.dot_dimension_numbers<[1], [0], [0], [1], [0, 0, 1, 1], [], []>} : vector<8x32xf32>, vector<32x64xf32>, vector<8x64xf32> -> vector<8x64xf32>
    %c8 = arith.constant 8 : index
    %c0_71 = arith.constant 0 : index
    %156 = vector.load %arg4[%c8, %c0_71] : memref<20x64xf32, #tpu.memory_space<vmem>>, vector<1x64xf32>
    %157 = vector.broadcast %156 : vector<1x64xf32> to vector<8x64xf32>
    %158 = arith.addf %155, %157 : vector<8x64xf32>
    %cst_72 = arith.constant 5.000000e-01 : f32
    %159 = vector.broadcast %cst_72 : f32 to vector<8x64xf32>
    %160 = arith.mulf %159, %158 : vector<8x64xf32>
    %cst_73 = arith.constant 0.707106769 : f32
    %161 = vector.broadcast %cst_73 : f32 to vector<8x64xf32>
    %162 = arith.mulf %158, %161 : vector<8x64xf32>
    %163 = math.erf %162 : vector<8x64xf32>
    %cst_74 = arith.constant 1.000000e+00 : f32
    %164 = vector.broadcast %cst_74 : f32 to vector<8x64xf32>
    %165 = arith.addf %164, %163 : vector<8x64xf32>
    %166 = arith.mulf %160, %165 : vector<8x64xf32>
    %c0_75 = arith.constant 0 : index
    %c0_76 = arith.constant 0 : index
    %c0_77 = arith.constant 0 : index
    %167 = vector.load %arg9[%c0_75, %c0_76, %c0_77] : memref<2x64x32xf32, #tpu.memory_space<vmem>>, vector<1x64x32xf32>
    %168 = vector.shape_cast %167 : vector<1x64x32xf32> to vector<64x32xf32>
    %cst_78 = arith.constant dense<0.000000e+00> : vector<8x32xf32>
    %169 = tpu.matmul %166, %168, %cst_78 {dimension_numbers = #tpu.dot_dimension_numbers<[1], [0], [0], [1], [0, 0, 1, 1], [], []>} : vector<8x64xf32>, vector<64x32xf32>, vector<8x32xf32> -> vector<8x32xf32>
    %c9 = arith.constant 9 : index
    %c0_79 = arith.constant 0 : index
    %170 = vector.load %arg4[%c9, %c0_79] : memref<20x64xf32, #tpu.memory_space<vmem>>, vector<1x32xf32>
    %171 = vector.broadcast %170 : vector<1x32xf32> to vector<8x32xf32>
    %172 = arith.addf %169, %171 : vector<8x32xf32>
    %173 = arith.addf %172, %152 : vector<8x32xf32>
    %c10 = arith.constant 10 : index
    %c0_80 = arith.constant 0 : index
    %174 = vector.load %arg4[%c10, %c0_80] : memref<20x64xf32, #tpu.memory_space<vmem>>, vector<1x32xf32>
    %c11 = arith.constant 11 : index
    %c0_81 = arith.constant 0 : index
    %175 = vector.load %arg4[%c11, %c0_81] : memref<20x64xf32, #tpu.memory_space<vmem>>, vector<1x32xf32>
    %cst_82 = arith.constant dense<0.000000e+00> : vector<8xf32>
    %176 = vector.multi_reduction <add>, %173, %cst_82 [1] : vector<8x32xf32> to vector<8xf32>
    %177 = vector.shape_cast %176 : vector<8xf32> to vector<8x1xf32>
    %cst_83 = arith.constant 3.200000e+01 : f32
    %178 = vector.broadcast %cst_83 : f32 to vector<8x1xf32>
    %179 = arith.divf %177, %178 : vector<8x1xf32>
    %180 = vector.broadcast %179 : vector<8x1xf32> to vector<8x32xf32>
    %181 = arith.subf %173, %180 : vector<8x32xf32>
    %182 = arith.mulf %181, %181 : vector<8x32xf32>
    %cst_84 = arith.constant dense<0.000000e+00> : vector<8xf32>
    %183 = vector.multi_reduction <add>, %182, %cst_84 [1] : vector<8x32xf32> to vector<8xf32>
    %184 = vector.shape_cast %183 : vector<8xf32> to vector<8x1xf32>
    %cst_85 = arith.constant 3.200000e+01 : f32
    %185 = vector.broadcast %cst_85 : f32 to vector<8x1xf32>
    %186 = arith.divf %184, %185 : vector<8x1xf32>
    %187 = vector.broadcast %179 : vector<8x1xf32> to vector<8x32xf32>
    %188 = arith.subf %173, %187 : vector<8x32xf32>
    %cst_86 = arith.constant 9.99999996E-13 : f32
    %189 = vector.broadcast %cst_86 : f32 to vector<8x1xf32>
    %190 = arith.addf %186, %189 : vector<8x1xf32>
    %191 = math.rsqrt %190 : vector<8x1xf32>
    %192 = vector.broadcast %191 : vector<8x1xf32> to vector<8x32xf32>
    %193 = arith.mulf %188, %192 : vector<8x32xf32>
    %194 = vector.broadcast %174 : vector<1x32xf32> to vector<8x32xf32>
    %195 = arith.mulf %193, %194 : vector<8x32xf32>
    %196 = vector.broadcast %175 : vector<1x32xf32> to vector<8x32xf32>
    %197 = arith.addf %195, %196 : vector<8x32xf32>
    %c1_87 = arith.constant 1 : index
    %c0_88 = arith.constant 0 : index
    %c0_89 = arith.constant 0 : index
    %198 = vector.load %arg5[%c1_87, %c0_88, %c0_89] : memref<2x32x64xf32, #tpu.memory_space<vmem>>, vector<1x32x64xf32>
    %199 = vector.shape_cast %198 : vector<1x32x64xf32> to vector<32x64xf32>
    %cst_90 = arith.constant dense<0.000000e+00> : vector<8x64xf32>
    %200 = tpu.matmul %197, %199, %cst_90 {dimension_numbers = #tpu.dot_dimension_numbers<[1], [0], [0], [1], [0, 0, 1, 1], [], []>} : vector<8x32xf32>, vector<32x64xf32>, vector<8x64xf32> -> vector<8x64xf32>
    %c12 = arith.constant 12 : index
    %c0_91 = arith.constant 0 : index
    %201 = vector.load %arg4[%c12, %c0_91] : memref<20x64xf32, #tpu.memory_space<vmem>>, vector<1x64xf32>
    %202 = vector.broadcast %201 : vector<1x64xf32> to vector<8x64xf32>
    %203 = arith.addf %200, %202 : vector<8x64xf32>
    %204 = tpu.transpose %197, [1, 0] : vector<8x32xf32> -> vector<32x8xf32>
    %c1_92 = arith.constant 1 : index
    %c0_93 = arith.constant 0 : index
    %c0_94 = arith.constant 0 : index
    %205 = vector.load %arg6[%c1_92, %c0_93, %c0_94] : memref<2x32x33xf32, #tpu.memory_space<vmem>>, vector<1x32x33xf32>
    %206 = vector.shape_cast %205 : vector<1x32x33xf32> to vector<32x33xf32>
    %207 = vector.extract_strided_slice %206 {offsets = [0, 0], sizes = [32, 32], strides = [1, 1]} : vector<32x33xf32> to vector<32x32xf32>
    %cst_95 = arith.constant dense<0.000000e+00> : vector<32x8xf32>
    %208 = tpu.matmul %207, %204, %cst_95 {dimension_numbers = #tpu.dot_dimension_numbers<[1], [0], [0], [1], [0, 0, 1, 1], [], []>} : vector<32x32xf32>, vector<32x8xf32>, vector<32x8xf32> -> vector<32x8xf32>
    %209 = vector.extract_strided_slice %206 {offsets = [0, 32], sizes = [32, 1], strides = [1, 1]} : vector<32x33xf32> to vector<32x1xf32>
    %210 = vector.broadcast %209 : vector<32x1xf32> to vector<32x8xf32>
    %211 = arith.addf %208, %210 : vector<32x8xf32>
    %212 = vector.extract_strided_slice %203 {offsets = [0, 0], sizes = [8, 8], strides = [1, 1]} : vector<8x64xf32> to vector<8x8xf32>
    %213 = vector.extract_strided_slice %203 {offsets = [0, 32], sizes = [8, 8], strides = [1, 1]} : vector<8x64xf32> to vector<8x8xf32>
    %214 = vector.extract_strided_slice %211 {offsets = [0, 0], sizes = [8, 8], strides = [1, 1]} : vector<32x8xf32> to vector<8x8xf32>
    %cst_96 = arith.constant dense<0.000000e+00> : vector<8x8xf32>
    %215 = tpu.matmul %212, %214, %cst_96 {dimension_numbers = #tpu.dot_dimension_numbers<[1], [0], [0], [1], [0, 0, 1, 1], [], []>} : vector<8x8xf32>, vector<8x8xf32>, vector<8x8xf32> -> vector<8x8xf32>
    %cst_97 = arith.constant 0.353553385 : f32
    %216 = vector.broadcast %cst_97 : f32 to vector<8x8xf32>
    %217 = arith.mulf %215, %216 : vector<8x8xf32>
    %218 = arith.addf %217, %1 : vector<8x8xf32>
    %cst_98 = arith.constant dense<0xFF800000> : vector<8xf32>
    %219 = vector.multi_reduction <maximumf>, %218, %cst_98 [1] : vector<8x8xf32> to vector<8xf32>
    %220 = vector.shape_cast %219 : vector<8xf32> to vector<8x1xf32>
    %221 = vector.broadcast %220 : vector<8x1xf32> to vector<8x8xf32>
    %222 = arith.subf %218, %221 : vector<8x8xf32>
    %223 = math.exp %222 : vector<8x8xf32>
    %cst_99 = arith.constant dense<0.000000e+00> : vector<8xf32>
    %224 = vector.multi_reduction <add>, %223, %cst_99 [1] : vector<8x8xf32> to vector<8xf32>
    %225 = vector.shape_cast %224 : vector<8xf32> to vector<8x1xf32>
    %226 = vector.broadcast %225 : vector<8x1xf32> to vector<8x8xf32>
    %227 = arith.divf %223, %226 : vector<8x8xf32>
    %cst_100 = arith.constant dense<0.000000e+00> : vector<8x8xf32>
    %228 = tpu.matmul %227, %213, %cst_100 {dimension_numbers = #tpu.dot_dimension_numbers<[1], [0], [0], [1], [0, 0, 1, 1], [], []>} : vector<8x8xf32>, vector<8x8xf32>, vector<8x8xf32> -> vector<8x8xf32>
    %c1_101 = arith.constant 1 : index
    %c0_102 = arith.constant 0 : index
    %c0_103 = arith.constant 0 : index
    %c0_104 = arith.constant 0 : index
    %229 = vector.load %arg7[%c1_101, %c0_102, %c0_103, %c0_104] : memref<2x4x8x32xf32, #tpu.memory_space<vmem>>, vector<1x1x8x32xf32>
    %230 = vector.shape_cast %229 : vector<1x1x8x32xf32> to vector<8x32xf32>
    %cst_105 = arith.constant dense<0.000000e+00> : vector<8x32xf32>
    %231 = tpu.matmul %228, %230, %cst_105 {dimension_numbers = #tpu.dot_dimension_numbers<[1], [0], [0], [1], [0, 0, 1, 1], [], []>} : vector<8x8xf32>, vector<8x32xf32>, vector<8x32xf32> -> vector<8x32xf32>
    %232 = vector.extract_strided_slice %203 {offsets = [0, 8], sizes = [8, 8], strides = [1, 1]} : vector<8x64xf32> to vector<8x8xf32>
    %233 = vector.extract_strided_slice %203 {offsets = [0, 40], sizes = [8, 8], strides = [1, 1]} : vector<8x64xf32> to vector<8x8xf32>
    %234 = vector.extract_strided_slice %211 {offsets = [8, 0], sizes = [8, 8], strides = [1, 1]} : vector<32x8xf32> to vector<8x8xf32>
    %cst_106 = arith.constant dense<0.000000e+00> : vector<8x8xf32>
    %235 = tpu.matmul %232, %234, %cst_106 {dimension_numbers = #tpu.dot_dimension_numbers<[1], [0], [0], [1], [0, 0, 1, 1], [], []>} : vector<8x8xf32>, vector<8x8xf32>, vector<8x8xf32> -> vector<8x8xf32>
    %cst_107 = arith.constant 0.353553385 : f32
    %236 = vector.broadcast %cst_107 : f32 to vector<8x8xf32>
    %237 = arith.mulf %235, %236 : vector<8x8xf32>
    %238 = arith.addf %237, %1 : vector<8x8xf32>
    %cst_108 = arith.constant dense<0xFF800000> : vector<8xf32>
    %239 = vector.multi_reduction <maximumf>, %238, %cst_108 [1] : vector<8x8xf32> to vector<8xf32>
    %240 = vector.shape_cast %239 : vector<8xf32> to vector<8x1xf32>
    %241 = vector.broadcast %240 : vector<8x1xf32> to vector<8x8xf32>
    %242 = arith.subf %238, %241 : vector<8x8xf32>
    %243 = math.exp %242 : vector<8x8xf32>
    %cst_109 = arith.constant dense<0.000000e+00> : vector<8xf32>
    %244 = vector.multi_reduction <add>, %243, %cst_109 [1] : vector<8x8xf32> to vector<8xf32>
    %245 = vector.shape_cast %244 : vector<8xf32> to vector<8x1xf32>
    %246 = vector.broadcast %245 : vector<8x1xf32> to vector<8x8xf32>
    %247 = arith.divf %243, %246 : vector<8x8xf32>
    %cst_110 = arith.constant dense<0.000000e+00> : vector<8x8xf32>
    %248 = tpu.matmul %247, %233, %cst_110 {dimension_numbers = #tpu.dot_dimension_numbers<[1], [0], [0], [1], [0, 0, 1, 1], [], []>} : vector<8x8xf32>, vector<8x8xf32>, vector<8x8xf32> -> vector<8x8xf32>
    %c1_111 = arith.constant 1 : index
    %c1_112 = arith.constant 1 : index
    %c0_113 = arith.constant 0 : index
    %c0_114 = arith.constant 0 : index
    %249 = vector.load %arg7[%c1_111, %c1_112, %c0_113, %c0_114] : memref<2x4x8x32xf32, #tpu.memory_space<vmem>>, vector<1x1x8x32xf32>
    %250 = vector.shape_cast %249 : vector<1x1x8x32xf32> to vector<8x32xf32>
    %cst_115 = arith.constant dense<0.000000e+00> : vector<8x32xf32>
    %251 = tpu.matmul %248, %250, %cst_115 {dimension_numbers = #tpu.dot_dimension_numbers<[1], [0], [0], [1], [0, 0, 1, 1], [], []>} : vector<8x8xf32>, vector<8x32xf32>, vector<8x32xf32> -> vector<8x32xf32>
    %252 = arith.addf %231, %251 : vector<8x32xf32>
    %253 = vector.extract_strided_slice %203 {offsets = [0, 16], sizes = [8, 8], strides = [1, 1]} : vector<8x64xf32> to vector<8x8xf32>
    %254 = vector.extract_strided_slice %203 {offsets = [0, 48], sizes = [8, 8], strides = [1, 1]} : vector<8x64xf32> to vector<8x8xf32>
    %255 = vector.extract_strided_slice %211 {offsets = [16, 0], sizes = [8, 8], strides = [1, 1]} : vector<32x8xf32> to vector<8x8xf32>
    %cst_116 = arith.constant dense<0.000000e+00> : vector<8x8xf32>
    %256 = tpu.matmul %253, %255, %cst_116 {dimension_numbers = #tpu.dot_dimension_numbers<[1], [0], [0], [1], [0, 0, 1, 1], [], []>} : vector<8x8xf32>, vector<8x8xf32>, vector<8x8xf32> -> vector<8x8xf32>
    %cst_117 = arith.constant 0.353553385 : f32
    %257 = vector.broadcast %cst_117 : f32 to vector<8x8xf32>
    %258 = arith.mulf %256, %257 : vector<8x8xf32>
    %259 = arith.addf %258, %1 : vector<8x8xf32>
    %cst_118 = arith.constant dense<0xFF800000> : vector<8xf32>
    %260 = vector.multi_reduction <maximumf>, %259, %cst_118 [1] : vector<8x8xf32> to vector<8xf32>
    %261 = vector.shape_cast %260 : vector<8xf32> to vector<8x1xf32>
    %262 = vector.broadcast %261 : vector<8x1xf32> to vector<8x8xf32>
    %263 = arith.subf %259, %262 : vector<8x8xf32>
    %264 = math.exp %263 : vector<8x8xf32>
    %cst_119 = arith.constant dense<0.000000e+00> : vector<8xf32>
    %265 = vector.multi_reduction <add>, %264, %cst_119 [1] : vector<8x8xf32> to vector<8xf32>
    %266 = vector.shape_cast %265 : vector<8xf32> to vector<8x1xf32>
    %267 = vector.broadcast %266 : vector<8x1xf32> to vector<8x8xf32>
    %268 = arith.divf %264, %267 : vector<8x8xf32>
    %cst_120 = arith.constant dense<0.000000e+00> : vector<8x8xf32>
    %269 = tpu.matmul %268, %254, %cst_120 {dimension_numbers = #tpu.dot_dimension_numbers<[1], [0], [0], [1], [0, 0, 1, 1], [], []>} : vector<8x8xf32>, vector<8x8xf32>, vector<8x8xf32> -> vector<8x8xf32>
    %c1_121 = arith.constant 1 : index
    %c2_122 = arith.constant 2 : index
    %c0_123 = arith.constant 0 : index
    %c0_124 = arith.constant 0 : index
    %270 = vector.load %arg7[%c1_121, %c2_122, %c0_123, %c0_124] : memref<2x4x8x32xf32, #tpu.memory_space<vmem>>, vector<1x1x8x32xf32>
    %271 = vector.shape_cast %270 : vector<1x1x8x32xf32> to vector<8x32xf32>
    %cst_125 = arith.constant dense<0.000000e+00> : vector<8x32xf32>
    %272 = tpu.matmul %269, %271, %cst_125 {dimension_numbers = #tpu.dot_dimension_numbers<[1], [0], [0], [1], [0, 0, 1, 1], [], []>} : vector<8x8xf32>, vector<8x32xf32>, vector<8x32xf32> -> vector<8x32xf32>
    %273 = arith.addf %252, %272 : vector<8x32xf32>
    %274 = vector.extract_strided_slice %203 {offsets = [0, 24], sizes = [8, 8], strides = [1, 1]} : vector<8x64xf32> to vector<8x8xf32>
    %275 = vector.extract_strided_slice %203 {offsets = [0, 56], sizes = [8, 8], strides = [1, 1]} : vector<8x64xf32> to vector<8x8xf32>
    %276 = vector.extract_strided_slice %211 {offsets = [24, 0], sizes = [8, 8], strides = [1, 1]} : vector<32x8xf32> to vector<8x8xf32>
    %cst_126 = arith.constant dense<0.000000e+00> : vector<8x8xf32>
    %277 = tpu.matmul %274, %276, %cst_126 {dimension_numbers = #tpu.dot_dimension_numbers<[1], [0], [0], [1], [0, 0, 1, 1], [], []>} : vector<8x8xf32>, vector<8x8xf32>, vector<8x8xf32> -> vector<8x8xf32>
    %cst_127 = arith.constant 0.353553385 : f32
    %278 = vector.broadcast %cst_127 : f32 to vector<8x8xf32>
    %279 = arith.mulf %277, %278 : vector<8x8xf32>
    %280 = arith.addf %279, %1 : vector<8x8xf32>
    %cst_128 = arith.constant dense<0xFF800000> : vector<8xf32>
    %281 = vector.multi_reduction <maximumf>, %280, %cst_128 [1] : vector<8x8xf32> to vector<8xf32>
    %282 = vector.shape_cast %281 : vector<8xf32> to vector<8x1xf32>
    %283 = vector.broadcast %282 : vector<8x1xf32> to vector<8x8xf32>
    %284 = arith.subf %280, %283 : vector<8x8xf32>
    %285 = math.exp %284 : vector<8x8xf32>
    %cst_129 = arith.constant dense<0.000000e+00> : vector<8xf32>
    %286 = vector.multi_reduction <add>, %285, %cst_129 [1] : vector<8x8xf32> to vector<8xf32>
    %287 = vector.shape_cast %286 : vector<8xf32> to vector<8x1xf32>
    %288 = vector.broadcast %287 : vector<8x1xf32> to vector<8x8xf32>
    %289 = arith.divf %285, %288 : vector<8x8xf32>
    %cst_130 = arith.constant dense<0.000000e+00> : vector<8x8xf32>
    %290 = tpu.matmul %289, %275, %cst_130 {dimension_numbers = #tpu.dot_dimension_numbers<[1], [0], [0], [1], [0, 0, 1, 1], [], []>} : vector<8x8xf32>, vector<8x8xf32>, vector<8x8xf32> -> vector<8x8xf32>
    %c1_131 = arith.constant 1 : index
    %c3_132 = arith.constant 3 : index
    %c0_133 = arith.constant 0 : index
    %c0_134 = arith.constant 0 : index
    %291 = vector.load %arg7[%c1_131, %c3_132, %c0_133, %c0_134] : memref<2x4x8x32xf32, #tpu.memory_space<vmem>>, vector<1x1x8x32xf32>
    %292 = vector.shape_cast %291 : vector<1x1x8x32xf32> to vector<8x32xf32>
    %cst_135 = arith.constant dense<0.000000e+00> : vector<8x32xf32>
    %293 = tpu.matmul %290, %292, %cst_135 {dimension_numbers = #tpu.dot_dimension_numbers<[1], [0], [0], [1], [0, 0, 1, 1], [], []>} : vector<8x8xf32>, vector<8x32xf32>, vector<8x32xf32> -> vector<8x32xf32>
    %294 = arith.addf %273, %293 : vector<8x32xf32>
    %c13 = arith.constant 13 : index
    %c0_136 = arith.constant 0 : index
    %295 = vector.load %arg4[%c13, %c0_136] : memref<20x64xf32, #tpu.memory_space<vmem>>, vector<1x32xf32>
    %296 = vector.broadcast %295 : vector<1x32xf32> to vector<8x32xf32>
    %297 = arith.addf %294, %296 : vector<8x32xf32>
    %298 = arith.addf %297, %197 : vector<8x32xf32>
    %c14 = arith.constant 14 : index
    %c0_137 = arith.constant 0 : index
    %299 = vector.load %arg4[%c14, %c0_137] : memref<20x64xf32, #tpu.memory_space<vmem>>, vector<1x32xf32>
    %c15 = arith.constant 15 : index
    %c0_138 = arith.constant 0 : index
    %300 = vector.load %arg4[%c15, %c0_138] : memref<20x64xf32, #tpu.memory_space<vmem>>, vector<1x32xf32>
    %cst_139 = arith.constant dense<0.000000e+00> : vector<8xf32>
    %301 = vector.multi_reduction <add>, %298, %cst_139 [1] : vector<8x32xf32> to vector<8xf32>
    %302 = vector.shape_cast %301 : vector<8xf32> to vector<8x1xf32>
    %cst_140 = arith.constant 3.200000e+01 : f32
    %303 = vector.broadcast %cst_140 : f32 to vector<8x1xf32>
    %304 = arith.divf %302, %303 : vector<8x1xf32>
    %305 = vector.broadcast %304 : vector<8x1xf32> to vector<8x32xf32>
    %306 = arith.subf %298, %305 : vector<8x32xf32>
    %307 = arith.mulf %306, %306 : vector<8x32xf32>
    %cst_141 = arith.constant dense<0.000000e+00> : vector<8xf32>
    %308 = vector.multi_reduction <add>, %307, %cst_141 [1] : vector<8x32xf32> to vector<8xf32>
    %309 = vector.shape_cast %308 : vector<8xf32> to vector<8x1xf32>
    %cst_142 = arith.constant 3.200000e+01 : f32
    %310 = vector.broadcast %cst_142 : f32 to vector<8x1xf32>
    %311 = arith.divf %309, %310 : vector<8x1xf32>
    %312 = vector.broadcast %304 : vector<8x1xf32> to vector<8x32xf32>
    %313 = arith.subf %298, %312 : vector<8x32xf32>
    %cst_143 = arith.constant 9.99999996E-13 : f32
    %314 = vector.broadcast %cst_143 : f32 to vector<8x1xf32>
    %315 = arith.addf %311, %314 : vector<8x1xf32>
    %316 = math.rsqrt %315 : vector<8x1xf32>
    %317 = vector.broadcast %316 : vector<8x1xf32> to vector<8x32xf32>
    %318 = arith.mulf %313, %317 : vector<8x32xf32>
    %319 = vector.broadcast %299 : vector<1x32xf32> to vector<8x32xf32>
    %320 = arith.mulf %318, %319 : vector<8x32xf32>
    %321 = vector.broadcast %300 : vector<1x32xf32> to vector<8x32xf32>
    %322 = arith.addf %320, %321 : vector<8x32xf32>
    %c1_144 = arith.constant 1 : index
    %c0_145 = arith.constant 0 : index
    %c0_146 = arith.constant 0 : index
    %323 = vector.load %arg8[%c1_144, %c0_145, %c0_146] : memref<2x32x64xf32, #tpu.memory_space<vmem>>, vector<1x32x64xf32>
    %324 = vector.shape_cast %323 : vector<1x32x64xf32> to vector<32x64xf32>
    %cst_147 = arith.constant dense<0.000000e+00> : vector<8x64xf32>
    %325 = tpu.matmul %322, %324, %cst_147 {dimension_numbers = #tpu.dot_dimension_numbers<[1], [0], [0], [1], [0, 0, 1, 1], [], []>} : vector<8x32xf32>, vector<32x64xf32>, vector<8x64xf32> -> vector<8x64xf32>
    %c16 = arith.constant 16 : index
    %c0_148 = arith.constant 0 : index
    %326 = vector.load %arg4[%c16, %c0_148] : memref<20x64xf32, #tpu.memory_space<vmem>>, vector<1x64xf32>
    %327 = vector.broadcast %326 : vector<1x64xf32> to vector<8x64xf32>
    %328 = arith.addf %325, %327 : vector<8x64xf32>
    %cst_149 = arith.constant 5.000000e-01 : f32
    %329 = vector.broadcast %cst_149 : f32 to vector<8x64xf32>
    %330 = arith.mulf %329, %328 : vector<8x64xf32>
    %cst_150 = arith.constant 0.707106769 : f32
    %331 = vector.broadcast %cst_150 : f32 to vector<8x64xf32>
    %332 = arith.mulf %328, %331 : vector<8x64xf32>
    %333 = math.erf %332 : vector<8x64xf32>
    %cst_151 = arith.constant 1.000000e+00 : f32
    %334 = vector.broadcast %cst_151 : f32 to vector<8x64xf32>
    %335 = arith.addf %334, %333 : vector<8x64xf32>
    %336 = arith.mulf %330, %335 : vector<8x64xf32>
    %c1_152 = arith.constant 1 : index
    %c0_153 = arith.constant 0 : index
    %c0_154 = arith.constant 0 : index
    %337 = vector.load %arg9[%c1_152, %c0_153, %c0_154] : memref<2x64x32xf32, #tpu.memory_space<vmem>>, vector<1x64x32xf32>
    %338 = vector.shape_cast %337 : vector<1x64x32xf32> to vector<64x32xf32>
    %cst_155 = arith.constant dense<0.000000e+00> : vector<8x32xf32>
    %339 = tpu.matmul %336, %338, %cst_155 {dimension_numbers = #tpu.dot_dimension_numbers<[1], [0], [0], [1], [0, 0, 1, 1], [], []>} : vector<8x64xf32>, vector<64x32xf32>, vector<8x32xf32> -> vector<8x32xf32>
    %c17 = arith.constant 17 : index
    %c0_156 = arith.constant 0 : index
    %340 = vector.load %arg4[%c17, %c0_156] : memref<20x64xf32, #tpu.memory_space<vmem>>, vector<1x32xf32>
    %341 = vector.broadcast %340 : vector<1x32xf32> to vector<8x32xf32>
    %342 = arith.addf %339, %341 : vector<8x32xf32>
    %343 = arith.addf %342, %322 : vector<8x32xf32>
    %c18 = arith.constant 18 : index
    %c0_157 = arith.constant 0 : index
    %344 = vector.load %arg4[%c18, %c0_157] : memref<20x64xf32, #tpu.memory_space<vmem>>, vector<1x32xf32>
    %c19 = arith.constant 19 : index
    %c0_158 = arith.constant 0 : index
    %345 = vector.load %arg4[%c19, %c0_158] : memref<20x64xf32, #tpu.memory_space<vmem>>, vector<1x32xf32>
    %cst_159 = arith.constant dense<0.000000e+00> : vector<8xf32>
    %346 = vector.multi_reduction <add>, %343, %cst_159 [1] : vector<8x32xf32> to vector<8xf32>
    %347 = vector.shape_cast %346 : vector<8xf32> to vector<8x1xf32>
    %cst_160 = arith.constant 3.200000e+01 : f32
    %348 = vector.broadcast %cst_160 : f32 to vector<8x1xf32>
    %349 = arith.divf %347, %348 : vector<8x1xf32>
    %350 = vector.broadcast %349 : vector<8x1xf32> to vector<8x32xf32>
    %351 = arith.subf %343, %350 : vector<8x32xf32>
    %352 = arith.mulf %351, %351 : vector<8x32xf32>
    %cst_161 = arith.constant dense<0.000000e+00> : vector<8xf32>
    %353 = vector.multi_reduction <add>, %352, %cst_161 [1] : vector<8x32xf32> to vector<8xf32>
    %354 = vector.shape_cast %353 : vector<8xf32> to vector<8x1xf32>
    %cst_162 = arith.constant 3.200000e+01 : f32
    %355 = vector.broadcast %cst_162 : f32 to vector<8x1xf32>
    %356 = arith.divf %354, %355 : vector<8x1xf32>
    %357 = vector.broadcast %349 : vector<8x1xf32> to vector<8x32xf32>
    %358 = arith.subf %343, %357 : vector<8x32xf32>
    %cst_163 = arith.constant 9.99999996E-13 : f32
    %359 = vector.broadcast %cst_163 : f32 to vector<8x1xf32>
    %360 = arith.addf %356, %359 : vector<8x1xf32>
    %361 = math.rsqrt %360 : vector<8x1xf32>
    %362 = vector.broadcast %361 : vector<8x1xf32> to vector<8x32xf32>
    %363 = arith.mulf %358, %362 : vector<8x32xf32>
    %364 = vector.broadcast %344 : vector<1x32xf32> to vector<8x32xf32>
    %365 = arith.mulf %363, %364 : vector<8x32xf32>
    %366 = vector.broadcast %345 : vector<1x32xf32> to vector<8x32xf32>
    %367 = arith.addf %365, %366 : vector<8x32xf32>
    %c0_164 = arith.constant 0 : index
    %c0_165 = arith.constant 0 : index
    %368 = vector.load %arg10[%c0_164, %c0_165] : memref<48x64xf32, #tpu.memory_space<vmem>>, vector<32x64xf32>
    %c32 = arith.constant 32 : index
    %c0_166 = arith.constant 0 : index
    %369 = vector.load %arg10[%c32, %c0_166] : memref<48x64xf32, #tpu.memory_space<vmem>>, vector<16x64xf32>
    %cst_167 = arith.constant dense<0.000000e+00> : vector<8x64xf32>
    %370 = tpu.matmul %367, %368, %cst_167 {dimension_numbers = #tpu.dot_dimension_numbers<[1], [0], [0], [1], [0, 0, 1, 1], [], []>} : vector<8x32xf32>, vector<32x64xf32>, vector<8x64xf32> -> vector<8x64xf32>
    %c2_168 = arith.constant 2 : index
    %c0_169 = arith.constant 0 : index
    %371 = vector.load %arg4[%c2_168, %c0_169] : memref<20x64xf32, #tpu.memory_space<vmem>>, vector<1x64xf32>
    %372 = vector.broadcast %371 : vector<1x64xf32> to vector<8x64xf32>
    %373 = arith.addf %370, %372 : vector<8x64xf32>
    %cst_170 = arith.constant 0.000000e+00 : f32
    %374 = vector.broadcast %cst_170 : f32 to vector<1x16xf32>
    %cst_171 = arith.constant 0.000000e+00 : f32
    %375 = vector.broadcast %cst_171 : f32 to vector<1x16xf32>
    %cst_172 = arith.constant 0.000000e+00 : f32
    %376 = vector.broadcast %cst_172 : f32 to vector<1x16xf32>
    %377 = arith.index_cast %arg0 : i32 to index
    %378 = memref.load %arg1[%377] : memref<2xi32, #tpu.memory_space<smem>>
    %379 = vector.extract_strided_slice %373 {offsets = [0, 0], sizes = [1, 64], strides = [1, 1]} : vector<8x64xf32> to vector<1x64xf32>
    %cst_173 = arith.constant dense<0.000000e+00> : vector<1x64xf32>
    %380 = tpu.matmul %374, %369, %cst_173 {dimension_numbers = #tpu.dot_dimension_numbers<[1], [0], [0], [1], [0, 0, 1, 1], [], []>} : vector<1x16xf32>, vector<16x64xf32>, vector<1x64xf32> -> vector<1x64xf32>
    %381 = arith.addf %379, %380 : vector<1x64xf32>
    %382 = vector.extract_strided_slice %381 {offsets = [0, 0], sizes = [1, 16], strides = [1, 1]} : vector<1x64xf32> to vector<1x16xf32>
    %383 = arith.negf %382 : vector<1x16xf32>
    %384 = math.exp %383 : vector<1x16xf32>
    %cst_174 = arith.constant 1.000000e+00 : f32
    %385 = vector.broadcast %cst_174 : f32 to vector<1x16xf32>
    %386 = arith.addf %385, %384 : vector<1x16xf32>
    %387 = arith.divf %385, %386 : vector<1x16xf32>
    %388 = vector.extract_strided_slice %381 {offsets = [0, 16], sizes = [1, 16], strides = [1, 1]} : vector<1x64xf32> to vector<1x16xf32>
    %389 = arith.negf %388 : vector<1x16xf32>
    %390 = math.exp %389 : vector<1x16xf32>
    %cst_175 = arith.constant 1.000000e+00 : f32
    %391 = vector.broadcast %cst_175 : f32 to vector<1x16xf32>
    %392 = arith.addf %391, %390 : vector<1x16xf32>
    %393 = arith.divf %391, %392 : vector<1x16xf32>
    %394 = vector.extract_strided_slice %381 {offsets = [0, 32], sizes = [1, 16], strides = [1, 1]} : vector<1x64xf32> to vector<1x16xf32>
    %395 = math.tanh %394 : vector<1x16xf32>
    %396 = vector.extract_strided_slice %381 {offsets = [0, 48], sizes = [1, 16], strides = [1, 1]} : vector<1x64xf32> to vector<1x16xf32>
    %397 = arith.negf %396 : vector<1x16xf32>
    %398 = math.exp %397 : vector<1x16xf32>
    %cst_176 = arith.constant 1.000000e+00 : f32
    %399 = vector.broadcast %cst_176 : f32 to vector<1x16xf32>
    %400 = arith.addf %399, %398 : vector<1x16xf32>
    %401 = arith.divf %399, %400 : vector<1x16xf32>
    %402 = arith.mulf %393, %375 : vector<1x16xf32>
    %403 = arith.mulf %387, %395 : vector<1x16xf32>
    %404 = arith.addf %402, %403 : vector<1x16xf32>
    %405 = math.tanh %404 : vector<1x16xf32>
    %406 = arith.mulf %401, %405 : vector<1x16xf32>
    %c0_i32 = arith.constant 0 : i32
    %407 = arith.cmpi eq, %378, %c0_i32 : i32
    %408 = arith.extui %407 : i1 to i32
    %409 = arith.sitofp %408 : i32 to f32
    %410 = arith.subf %406, %376 : vector<1x16xf32>
    %411 = vector.broadcast %409 : f32 to vector<1x16xf32>
    %412 = arith.mulf %411, %410 : vector<1x16xf32>
    %413 = arith.addf %376, %412 : vector<1x16xf32>
    %414 = vector.extract_strided_slice %373 {offsets = [1, 0], sizes = [1, 64], strides = [1, 1]} : vector<8x64xf32> to vector<1x64xf32>
    %cst_177 = arith.constant dense<0.000000e+00> : vector<1x64xf32>
    %415 = tpu.matmul %406, %369, %cst_177 {dimension_numbers = #tpu.dot_dimension_numbers<[1], [0], [0], [1], [0, 0, 1, 1], [], []>} : vector<1x16xf32>, vector<16x64xf32>, vector<1x64xf32> -> vector<1x64xf32>
    %416 = arith.addf %414, %415 : vector<1x64xf32>
    %417 = vector.extract_strided_slice %416 {offsets = [0, 0], sizes = [1, 16], strides = [1, 1]} : vector<1x64xf32> to vector<1x16xf32>
    %418 = arith.negf %417 : vector<1x16xf32>
    %419 = math.exp %418 : vector<1x16xf32>
    %cst_178 = arith.constant 1.000000e+00 : f32
    %420 = vector.broadcast %cst_178 : f32 to vector<1x16xf32>
    %421 = arith.addf %420, %419 : vector<1x16xf32>
    %422 = arith.divf %420, %421 : vector<1x16xf32>
    %423 = vector.extract_strided_slice %416 {offsets = [0, 16], sizes = [1, 16], strides = [1, 1]} : vector<1x64xf32> to vector<1x16xf32>
    %424 = arith.negf %423 : vector<1x16xf32>
    %425 = math.exp %424 : vector<1x16xf32>
    %cst_179 = arith.constant 1.000000e+00 : f32
    %426 = vector.broadcast %cst_179 : f32 to vector<1x16xf32>
    %427 = arith.addf %426, %425 : vector<1x16xf32>
    %428 = arith.divf %426, %427 : vector<1x16xf32>
    %429 = vector.extract_strided_slice %416 {offsets = [0, 32], sizes = [1, 16], strides = [1, 1]} : vector<1x64xf32> to vector<1x16xf32>
    %430 = math.tanh %429 : vector<1x16xf32>
    %431 = vector.extract_strided_slice %416 {offsets = [0, 48], sizes = [1, 16], strides = [1, 1]} : vector<1x64xf32> to vector<1x16xf32>
    %432 = arith.negf %431 : vector<1x16xf32>
    %433 = math.exp %432 : vector<1x16xf32>
    %cst_180 = arith.constant 1.000000e+00 : f32
    %434 = vector.broadcast %cst_180 : f32 to vector<1x16xf32>
    %435 = arith.addf %434, %433 : vector<1x16xf32>
    %436 = arith.divf %434, %435 : vector<1x16xf32>
    %437 = arith.mulf %428, %404 : vector<1x16xf32>
    %438 = arith.mulf %422, %430 : vector<1x16xf32>
    %439 = arith.addf %437, %438 : vector<1x16xf32>
    %440 = math.tanh %439 : vector<1x16xf32>
    %441 = arith.mulf %436, %440 : vector<1x16xf32>
    %c1_i32 = arith.constant 1 : i32
    %442 = arith.cmpi eq, %378, %c1_i32 : i32
    %443 = arith.extui %442 : i1 to i32
    %444 = arith.sitofp %443 : i32 to f32
    %445 = arith.subf %441, %413 : vector<1x16xf32>
    %446 = vector.broadcast %444 : f32 to vector<1x16xf32>
    %447 = arith.mulf %446, %445 : vector<1x16xf32>
    %448 = arith.addf %413, %447 : vector<1x16xf32>
    %449 = vector.extract_strided_slice %373 {offsets = [2, 0], sizes = [1, 64], strides = [1, 1]} : vector<8x64xf32> to vector<1x64xf32>
    %cst_181 = arith.constant dense<0.000000e+00> : vector<1x64xf32>
    %450 = tpu.matmul %441, %369, %cst_181 {dimension_numbers = #tpu.dot_dimension_numbers<[1], [0], [0], [1], [0, 0, 1, 1], [], []>} : vector<1x16xf32>, vector<16x64xf32>, vector<1x64xf32> -> vector<1x64xf32>
    %451 = arith.addf %449, %450 : vector<1x64xf32>
    %452 = vector.extract_strided_slice %451 {offsets = [0, 0], sizes = [1, 16], strides = [1, 1]} : vector<1x64xf32> to vector<1x16xf32>
    %453 = arith.negf %452 : vector<1x16xf32>
    %454 = math.exp %453 : vector<1x16xf32>
    %cst_182 = arith.constant 1.000000e+00 : f32
    %455 = vector.broadcast %cst_182 : f32 to vector<1x16xf32>
    %456 = arith.addf %455, %454 : vector<1x16xf32>
    %457 = arith.divf %455, %456 : vector<1x16xf32>
    %458 = vector.extract_strided_slice %451 {offsets = [0, 16], sizes = [1, 16], strides = [1, 1]} : vector<1x64xf32> to vector<1x16xf32>
    %459 = arith.negf %458 : vector<1x16xf32>
    %460 = math.exp %459 : vector<1x16xf32>
    %cst_183 = arith.constant 1.000000e+00 : f32
    %461 = vector.broadcast %cst_183 : f32 to vector<1x16xf32>
    %462 = arith.addf %461, %460 : vector<1x16xf32>
    %463 = arith.divf %461, %462 : vector<1x16xf32>
    %464 = vector.extract_strided_slice %451 {offsets = [0, 32], sizes = [1, 16], strides = [1, 1]} : vector<1x64xf32> to vector<1x16xf32>
    %465 = math.tanh %464 : vector<1x16xf32>
    %466 = vector.extract_strided_slice %451 {offsets = [0, 48], sizes = [1, 16], strides = [1, 1]} : vector<1x64xf32> to vector<1x16xf32>
    %467 = arith.negf %466 : vector<1x16xf32>
    %468 = math.exp %467 : vector<1x16xf32>
    %cst_184 = arith.constant 1.000000e+00 : f32
    %469 = vector.broadcast %cst_184 : f32 to vector<1x16xf32>
    %470 = arith.addf %469, %468 : vector<1x16xf32>
    %471 = arith.divf %469, %470 : vector<1x16xf32>
    %472 = arith.mulf %463, %439 : vector<1x16xf32>
    %473 = arith.mulf %457, %465 : vector<1x16xf32>
    %474 = arith.addf %472, %473 : vector<1x16xf32>
    %475 = math.tanh %474 : vector<1x16xf32>
    %476 = arith.mulf %471, %475 : vector<1x16xf32>
    %c2_i32 = arith.constant 2 : i32
    %477 = arith.cmpi eq, %378, %c2_i32 : i32
    %478 = arith.extui %477 : i1 to i32
    %479 = arith.sitofp %478 : i32 to f32
    %480 = arith.subf %476, %448 : vector<1x16xf32>
    %481 = vector.broadcast %479 : f32 to vector<1x16xf32>
    %482 = arith.mulf %481, %480 : vector<1x16xf32>
    %483 = arith.addf %448, %482 : vector<1x16xf32>
    %484 = vector.extract_strided_slice %373 {offsets = [3, 0], sizes = [1, 64], strides = [1, 1]} : vector<8x64xf32> to vector<1x64xf32>
    %cst_185 = arith.constant dense<0.000000e+00> : vector<1x64xf32>
    %485 = tpu.matmul %476, %369, %cst_185 {dimension_numbers = #tpu.dot_dimension_numbers<[1], [0], [0], [1], [0, 0, 1, 1], [], []>} : vector<1x16xf32>, vector<16x64xf32>, vector<1x64xf32> -> vector<1x64xf32>
    %486 = arith.addf %484, %485 : vector<1x64xf32>
    %487 = vector.extract_strided_slice %486 {offsets = [0, 0], sizes = [1, 16], strides = [1, 1]} : vector<1x64xf32> to vector<1x16xf32>
    %488 = arith.negf %487 : vector<1x16xf32>
    %489 = math.exp %488 : vector<1x16xf32>
    %cst_186 = arith.constant 1.000000e+00 : f32
    %490 = vector.broadcast %cst_186 : f32 to vector<1x16xf32>
    %491 = arith.addf %490, %489 : vector<1x16xf32>
    %492 = arith.divf %490, %491 : vector<1x16xf32>
    %493 = vector.extract_strided_slice %486 {offsets = [0, 16], sizes = [1, 16], strides = [1, 1]} : vector<1x64xf32> to vector<1x16xf32>
    %494 = arith.negf %493 : vector<1x16xf32>
    %495 = math.exp %494 : vector<1x16xf32>
    %cst_187 = arith.constant 1.000000e+00 : f32
    %496 = vector.broadcast %cst_187 : f32 to vector<1x16xf32>
    %497 = arith.addf %496, %495 : vector<1x16xf32>
    %498 = arith.divf %496, %497 : vector<1x16xf32>
    %499 = vector.extract_strided_slice %486 {offsets = [0, 32], sizes = [1, 16], strides = [1, 1]} : vector<1x64xf32> to vector<1x16xf32>
    %500 = math.tanh %499 : vector<1x16xf32>
    %501 = vector.extract_strided_slice %486 {offsets = [0, 48], sizes = [1, 16], strides = [1, 1]} : vector<1x64xf32> to vector<1x16xf32>
    %502 = arith.negf %501 : vector<1x16xf32>
    %503 = math.exp %502 : vector<1x16xf32>
    %cst_188 = arith.constant 1.000000e+00 : f32
    %504 = vector.broadcast %cst_188 : f32 to vector<1x16xf32>
    %505 = arith.addf %504, %503 : vector<1x16xf32>
    %506 = arith.divf %504, %505 : vector<1x16xf32>
    %507 = arith.mulf %498, %474 : vector<1x16xf32>
    %508 = arith.mulf %492, %500 : vector<1x16xf32>
    %509 = arith.addf %507, %508 : vector<1x16xf32>
    %510 = math.tanh %509 : vector<1x16xf32>
    %511 = arith.mulf %506, %510 : vector<1x16xf32>
    %c3_i32 = arith.constant 3 : i32
    %512 = arith.cmpi eq, %378, %c3_i32 : i32
    %513 = arith.extui %512 : i1 to i32
    %514 = arith.sitofp %513 : i32 to f32
    %515 = arith.subf %511, %483 : vector<1x16xf32>
    %516 = vector.broadcast %514 : f32 to vector<1x16xf32>
    %517 = arith.mulf %516, %515 : vector<1x16xf32>
    %518 = arith.addf %483, %517 : vector<1x16xf32>
    %519 = vector.extract_strided_slice %373 {offsets = [4, 0], sizes = [1, 64], strides = [1, 1]} : vector<8x64xf32> to vector<1x64xf32>
    %cst_189 = arith.constant dense<0.000000e+00> : vector<1x64xf32>
    %520 = tpu.matmul %511, %369, %cst_189 {dimension_numbers = #tpu.dot_dimension_numbers<[1], [0], [0], [1], [0, 0, 1, 1], [], []>} : vector<1x16xf32>, vector<16x64xf32>, vector<1x64xf32> -> vector<1x64xf32>
    %521 = arith.addf %519, %520 : vector<1x64xf32>
    %522 = vector.extract_strided_slice %521 {offsets = [0, 0], sizes = [1, 16], strides = [1, 1]} : vector<1x64xf32> to vector<1x16xf32>
    %523 = arith.negf %522 : vector<1x16xf32>
    %524 = math.exp %523 : vector<1x16xf32>
    %cst_190 = arith.constant 1.000000e+00 : f32
    %525 = vector.broadcast %cst_190 : f32 to vector<1x16xf32>
    %526 = arith.addf %525, %524 : vector<1x16xf32>
    %527 = arith.divf %525, %526 : vector<1x16xf32>
    %528 = vector.extract_strided_slice %521 {offsets = [0, 16], sizes = [1, 16], strides = [1, 1]} : vector<1x64xf32> to vector<1x16xf32>
    %529 = arith.negf %528 : vector<1x16xf32>
    %530 = math.exp %529 : vector<1x16xf32>
    %cst_191 = arith.constant 1.000000e+00 : f32
    %531 = vector.broadcast %cst_191 : f32 to vector<1x16xf32>
    %532 = arith.addf %531, %530 : vector<1x16xf32>
    %533 = arith.divf %531, %532 : vector<1x16xf32>
    %534 = vector.extract_strided_slice %521 {offsets = [0, 32], sizes = [1, 16], strides = [1, 1]} : vector<1x64xf32> to vector<1x16xf32>
    %535 = math.tanh %534 : vector<1x16xf32>
    %536 = vector.extract_strided_slice %521 {offsets = [0, 48], sizes = [1, 16], strides = [1, 1]} : vector<1x64xf32> to vector<1x16xf32>
    %537 = arith.negf %536 : vector<1x16xf32>
    %538 = math.exp %537 : vector<1x16xf32>
    %cst_192 = arith.constant 1.000000e+00 : f32
    %539 = vector.broadcast %cst_192 : f32 to vector<1x16xf32>
    %540 = arith.addf %539, %538 : vector<1x16xf32>
    %541 = arith.divf %539, %540 : vector<1x16xf32>
    %542 = arith.mulf %533, %509 : vector<1x16xf32>
    %543 = arith.mulf %527, %535 : vector<1x16xf32>
    %544 = arith.addf %542, %543 : vector<1x16xf32>
    %545 = math.tanh %544 : vector<1x16xf32>
    %546 = arith.mulf %541, %545 : vector<1x16xf32>
    %c4_i32 = arith.constant 4 : i32
    %547 = arith.cmpi eq, %378, %c4_i32 : i32
    %548 = arith.extui %547 : i1 to i32
    %549 = arith.sitofp %548 : i32 to f32
    %550 = arith.subf %546, %518 : vector<1x16xf32>
    %551 = vector.broadcast %549 : f32 to vector<1x16xf32>
    %552 = arith.mulf %551, %550 : vector<1x16xf32>
    %553 = arith.addf %518, %552 : vector<1x16xf32>
    %554 = vector.extract_strided_slice %373 {offsets = [5, 0], sizes = [1, 64], strides = [1, 1]} : vector<8x64xf32> to vector<1x64xf32>
    %cst_193 = arith.constant dense<0.000000e+00> : vector<1x64xf32>
    %555 = tpu.matmul %546, %369, %cst_193 {dimension_numbers = #tpu.dot_dimension_numbers<[1], [0], [0], [1], [0, 0, 1, 1], [], []>} : vector<1x16xf32>, vector<16x64xf32>, vector<1x64xf32> -> vector<1x64xf32>
    %556 = arith.addf %554, %555 : vector<1x64xf32>
    %557 = vector.extract_strided_slice %556 {offsets = [0, 0], sizes = [1, 16], strides = [1, 1]} : vector<1x64xf32> to vector<1x16xf32>
    %558 = arith.negf %557 : vector<1x16xf32>
    %559 = math.exp %558 : vector<1x16xf32>
    %cst_194 = arith.constant 1.000000e+00 : f32
    %560 = vector.broadcast %cst_194 : f32 to vector<1x16xf32>
    %561 = arith.addf %560, %559 : vector<1x16xf32>
    %562 = arith.divf %560, %561 : vector<1x16xf32>
    %563 = vector.extract_strided_slice %556 {offsets = [0, 16], sizes = [1, 16], strides = [1, 1]} : vector<1x64xf32> to vector<1x16xf32>
    %564 = arith.negf %563 : vector<1x16xf32>
    %565 = math.exp %564 : vector<1x16xf32>
    %cst_195 = arith.constant 1.000000e+00 : f32
    %566 = vector.broadcast %cst_195 : f32 to vector<1x16xf32>
    %567 = arith.addf %566, %565 : vector<1x16xf32>
    %568 = arith.divf %566, %567 : vector<1x16xf32>
    %569 = vector.extract_strided_slice %556 {offsets = [0, 32], sizes = [1, 16], strides = [1, 1]} : vector<1x64xf32> to vector<1x16xf32>
    %570 = math.tanh %569 : vector<1x16xf32>
    %571 = vector.extract_strided_slice %556 {offsets = [0, 48], sizes = [1, 16], strides = [1, 1]} : vector<1x64xf32> to vector<1x16xf32>
    %572 = arith.negf %571 : vector<1x16xf32>
    %573 = math.exp %572 : vector<1x16xf32>
    %cst_196 = arith.constant 1.000000e+00 : f32
    %574 = vector.broadcast %cst_196 : f32 to vector<1x16xf32>
    %575 = arith.addf %574, %573 : vector<1x16xf32>
    %576 = arith.divf %574, %575 : vector<1x16xf32>
    %577 = arith.mulf %568, %544 : vector<1x16xf32>
    %578 = arith.mulf %562, %570 : vector<1x16xf32>
    %579 = arith.addf %577, %578 : vector<1x16xf32>
    %580 = math.tanh %579 : vector<1x16xf32>
    %581 = arith.mulf %576, %580 : vector<1x16xf32>
    %c5_i32 = arith.constant 5 : i32
    %582 = arith.cmpi eq, %378, %c5_i32 : i32
    %583 = arith.extui %582 : i1 to i32
    %584 = arith.sitofp %583 : i32 to f32
    %585 = arith.subf %581, %553 : vector<1x16xf32>
    %586 = vector.broadcast %584 : f32 to vector<1x16xf32>
    %587 = arith.mulf %586, %585 : vector<1x16xf32>
    %588 = arith.addf %553, %587 : vector<1x16xf32>
    %589 = vector.extract_strided_slice %373 {offsets = [6, 0], sizes = [1, 64], strides = [1, 1]} : vector<8x64xf32> to vector<1x64xf32>
    %cst_197 = arith.constant dense<0.000000e+00> : vector<1x64xf32>
    %590 = tpu.matmul %581, %369, %cst_197 {dimension_numbers = #tpu.dot_dimension_numbers<[1], [0], [0], [1], [0, 0, 1, 1], [], []>} : vector<1x16xf32>, vector<16x64xf32>, vector<1x64xf32> -> vector<1x64xf32>
    %591 = arith.addf %589, %590 : vector<1x64xf32>
    %592 = vector.extract_strided_slice %591 {offsets = [0, 0], sizes = [1, 16], strides = [1, 1]} : vector<1x64xf32> to vector<1x16xf32>
    %593 = arith.negf %592 : vector<1x16xf32>
    %594 = math.exp %593 : vector<1x16xf32>
    %cst_198 = arith.constant 1.000000e+00 : f32
    %595 = vector.broadcast %cst_198 : f32 to vector<1x16xf32>
    %596 = arith.addf %595, %594 : vector<1x16xf32>
    %597 = arith.divf %595, %596 : vector<1x16xf32>
    %598 = vector.extract_strided_slice %591 {offsets = [0, 16], sizes = [1, 16], strides = [1, 1]} : vector<1x64xf32> to vector<1x16xf32>
    %599 = arith.negf %598 : vector<1x16xf32>
    %600 = math.exp %599 : vector<1x16xf32>
    %cst_199 = arith.constant 1.000000e+00 : f32
    %601 = vector.broadcast %cst_199 : f32 to vector<1x16xf32>
    %602 = arith.addf %601, %600 : vector<1x16xf32>
    %603 = arith.divf %601, %602 : vector<1x16xf32>
    %604 = vector.extract_strided_slice %591 {offsets = [0, 32], sizes = [1, 16], strides = [1, 1]} : vector<1x64xf32> to vector<1x16xf32>
    %605 = math.tanh %604 : vector<1x16xf32>
    %606 = vector.extract_strided_slice %591 {offsets = [0, 48], sizes = [1, 16], strides = [1, 1]} : vector<1x64xf32> to vector<1x16xf32>
    %607 = arith.negf %606 : vector<1x16xf32>
    %608 = math.exp %607 : vector<1x16xf32>
    %cst_200 = arith.constant 1.000000e+00 : f32
    %609 = vector.broadcast %cst_200 : f32 to vector<1x16xf32>
    %610 = arith.addf %609, %608 : vector<1x16xf32>
    %611 = arith.divf %609, %610 : vector<1x16xf32>
    %612 = arith.mulf %603, %579 : vector<1x16xf32>
    %613 = arith.mulf %597, %605 : vector<1x16xf32>
    %614 = arith.addf %612, %613 : vector<1x16xf32>
    %615 = math.tanh %614 : vector<1x16xf32>
    %616 = arith.mulf %611, %615 : vector<1x16xf32>
    %c6_i32 = arith.constant 6 : i32
    %617 = arith.cmpi eq, %378, %c6_i32 : i32
    %618 = arith.extui %617 : i1 to i32
    %619 = arith.sitofp %618 : i32 to f32
    %620 = arith.subf %616, %588 : vector<1x16xf32>
    %621 = vector.broadcast %619 : f32 to vector<1x16xf32>
    %622 = arith.mulf %621, %620 : vector<1x16xf32>
    %623 = arith.addf %588, %622 : vector<1x16xf32>
    %624 = vector.extract_strided_slice %373 {offsets = [7, 0], sizes = [1, 64], strides = [1, 1]} : vector<8x64xf32> to vector<1x64xf32>
    %cst_201 = arith.constant dense<0.000000e+00> : vector<1x64xf32>
    %625 = tpu.matmul %616, %369, %cst_201 {dimension_numbers = #tpu.dot_dimension_numbers<[1], [0], [0], [1], [0, 0, 1, 1], [], []>} : vector<1x16xf32>, vector<16x64xf32>, vector<1x64xf32> -> vector<1x64xf32>
    %626 = arith.addf %624, %625 : vector<1x64xf32>
    %627 = vector.extract_strided_slice %626 {offsets = [0, 0], sizes = [1, 16], strides = [1, 1]} : vector<1x64xf32> to vector<1x16xf32>
    %628 = arith.negf %627 : vector<1x16xf32>
    %629 = math.exp %628 : vector<1x16xf32>
    %cst_202 = arith.constant 1.000000e+00 : f32
    %630 = vector.broadcast %cst_202 : f32 to vector<1x16xf32>
    %631 = arith.addf %630, %629 : vector<1x16xf32>
    %632 = arith.divf %630, %631 : vector<1x16xf32>
    %633 = vector.extract_strided_slice %626 {offsets = [0, 16], sizes = [1, 16], strides = [1, 1]} : vector<1x64xf32> to vector<1x16xf32>
    %634 = arith.negf %633 : vector<1x16xf32>
    %635 = math.exp %634 : vector<1x16xf32>
    %cst_203 = arith.constant 1.000000e+00 : f32
    %636 = vector.broadcast %cst_203 : f32 to vector<1x16xf32>
    %637 = arith.addf %636, %635 : vector<1x16xf32>
    %638 = arith.divf %636, %637 : vector<1x16xf32>
    %639 = vector.extract_strided_slice %626 {offsets = [0, 32], sizes = [1, 16], strides = [1, 1]} : vector<1x64xf32> to vector<1x16xf32>
    %640 = math.tanh %639 : vector<1x16xf32>
    %641 = vector.extract_strided_slice %626 {offsets = [0, 48], sizes = [1, 16], strides = [1, 1]} : vector<1x64xf32> to vector<1x16xf32>
    %642 = arith.negf %641 : vector<1x16xf32>
    %643 = math.exp %642 : vector<1x16xf32>
    %cst_204 = arith.constant 1.000000e+00 : f32
    %644 = vector.broadcast %cst_204 : f32 to vector<1x16xf32>
    %645 = arith.addf %644, %643 : vector<1x16xf32>
    %646 = arith.divf %644, %645 : vector<1x16xf32>
    %647 = arith.mulf %638, %614 : vector<1x16xf32>
    %648 = arith.mulf %632, %640 : vector<1x16xf32>
    %649 = arith.addf %647, %648 : vector<1x16xf32>
    %650 = math.tanh %649 : vector<1x16xf32>
    %651 = arith.mulf %646, %650 : vector<1x16xf32>
    %c7_i32 = arith.constant 7 : i32
    %652 = arith.cmpi eq, %378, %c7_i32 : i32
    %653 = arith.extui %652 : i1 to i32
    %654 = arith.sitofp %653 : i32 to f32
    %655 = arith.subf %651, %623 : vector<1x16xf32>
    %656 = vector.broadcast %654 : f32 to vector<1x16xf32>
    %657 = arith.mulf %656, %655 : vector<1x16xf32>
    %658 = arith.addf %623, %657 : vector<1x16xf32>
    %c0_205 = arith.constant 0 : index
    %c0_206 = arith.constant 0 : index
    %659 = vector.load %arg11[%c0_205, %c0_206] : memref<16x2xf32, #tpu.memory_space<vmem>>, vector<16x2xf32>
    %cst_207 = arith.constant dense<0.000000e+00> : vector<1x2xf32>
    %660 = tpu.matmul %658, %659, %cst_207 {dimension_numbers = #tpu.dot_dimension_numbers<[1], [0], [0], [1], [0, 0, 1, 1], [], []>} : vector<1x16xf32>, vector<16x2xf32>, vector<1x2xf32> -> vector<1x2xf32>
    %c3_208 = arith.constant 3 : index
    %c0_209 = arith.constant 0 : index
    %661 = vector.load %arg4[%c3_208, %c0_209] : memref<20x64xf32, #tpu.memory_space<vmem>>, vector<1x2xf32>
    %662 = arith.addf %660, %661 : vector<1x2xf32>
    %663 = vector.shape_cast %662 : vector<1x2xf32> to vector<1x1x2xf32>
    %c0_210 = arith.constant 0 : index
    %c0_211 = arith.constant 0 : index
    %c0_212 = arith.constant 0 : index
    %664 = vector.load %arg12[%c0_210, %c0_211, %c0_212] : memref<1x1x2xf32, #tpu.memory_space<vmem>>, vector<1x1x2xf32>
    tpu.vector_store %arg12[%c0_210, %c0_211, %c0_212], %663 {strides = array<i32>} : memref<1x1x2xf32, #tpu.memory_space<vmem>>, vector<1x1x2xf32>,
    return
  }
  func.func @transform_0(%arg0: i32, %arg1: memref<2xi32, #tpu.memory_space<smem>>) -> (i32, i32, i32) {
    %c0_i32 = arith.constant 0 : i32
    %c0_i32_0 = arith.constant 0 : i32
    %c0_i32_1 = arith.constant 0 : i32
    return %arg0, %c0_i32, %c0_i32_0 : i32, i32, i32
  }
  func.func @transform_1(%arg0: i32, %arg1: memref<2xi32, #tpu.memory_space<smem>>) -> (i32, i32, i32) {
    %c0_i32 = arith.constant 0 : i32
    %c0_i32_0 = arith.constant 0 : i32
    %c0_i32_1 = arith.constant 0 : i32
    return %arg0, %c0_i32, %c0_i32_0 : i32, i32, i32
  }
  func.func @transform_2(%arg0: i32, %arg1: memref<2xi32, #tpu.memory_space<smem>>) -> (i32, i32) {
    %c0_i32 = arith.constant 0 : i32
    %c0_i32_0 = arith.constant 0 : i32
    %c0_i32_1 = arith.constant 0 : i32
    return %c0_i32, %c0_i32_0 : i32, i32
  }
  func.func @transform_3(%arg0: i32, %arg1: memref<2xi32, #tpu.memory_space<smem>>) -> (i32, i32, i32) {
    %c0_i32 = arith.constant 0 : i32
    %c0_i32_0 = arith.constant 0 : i32
    %c0_i32_1 = arith.constant 0 : i32
    %c0_i32_2 = arith.constant 0 : i32
    return %c0_i32, %c0_i32_0, %c0_i32_1 : i32, i32, i32
  }
  func.func @transform_4(%arg0: i32, %arg1: memref<2xi32, #tpu.memory_space<smem>>) -> (i32, i32, i32) {
    %c0_i32 = arith.constant 0 : i32
    %c0_i32_0 = arith.constant 0 : i32
    %c0_i32_1 = arith.constant 0 : i32
    %c0_i32_2 = arith.constant 0 : i32
    return %c0_i32, %c0_i32_0, %c0_i32_1 : i32, i32, i32
  }
  func.func @transform_5(%arg0: i32, %arg1: memref<2xi32, #tpu.memory_space<smem>>) -> (i32, i32, i32, i32) {
    %c0_i32 = arith.constant 0 : i32
    %c0_i32_0 = arith.constant 0 : i32
    %c0_i32_1 = arith.constant 0 : i32
    %c0_i32_2 = arith.constant 0 : i32
    %c0_i32_3 = arith.constant 0 : i32
    return %c0_i32, %c0_i32_0, %c0_i32_1, %c0_i32_2 : i32, i32, i32, i32
  }
  func.func @transform_6(%arg0: i32, %arg1: memref<2xi32, #tpu.memory_space<smem>>) -> (i32, i32, i32) {
    %c0_i32 = arith.constant 0 : i32
    %c0_i32_0 = arith.constant 0 : i32
    %c0_i32_1 = arith.constant 0 : i32
    %c0_i32_2 = arith.constant 0 : i32
    return %c0_i32, %c0_i32_0, %c0_i32_1 : i32, i32, i32
  }
  func.func @transform_7(%arg0: i32, %arg1: memref<2xi32, #tpu.memory_space<smem>>) -> (i32, i32, i32) {
    %c0_i32 = arith.constant 0 : i32
    %c0_i32_0 = arith.constant 0 : i32
    %c0_i32_1 = arith.constant 0 : i32
    %c0_i32_2 = arith.constant 0 : i32
    return %c0_i32, %c0_i32_0, %c0_i32_1 : i32, i32, i32
  }
  func.func @transform_8(%arg0: i32, %arg1: memref<2xi32, #tpu.memory_space<smem>>) -> (i32, i32) {
    %c0_i32 = arith.constant 0 : i32
    %c0_i32_0 = arith.constant 0 : i32
    %c0_i32_1 = arith.constant 0 : i32
    return %c0_i32, %c0_i32_0 : i32, i32
  }
  func.func @transform_9(%arg0: i32, %arg1: memref<2xi32, #tpu.memory_space<smem>>) -> (i32, i32) {
    %c0_i32 = arith.constant 0 : i32
    %c0_i32_0 = arith.constant 0 : i32
    %c0_i32_1 = arith.constant 0 : i32
    return %c0_i32, %c0_i32_0 : i32, i32
  }
  func.func @transform_10(%arg0: i32, %arg1: memref<2xi32, #tpu.memory_space<smem>>) -> (i32, i32, i32) {
    %c0_i32 = arith.constant 0 : i32
    %c0_i32_0 = arith.constant 0 : i32
    %c0_i32_1 = arith.constant 0 : i32
    return %arg0, %c0_i32, %c0_i32_0 : i32, i32, i32
  }
}

</mosaic_0001>

<llo_original>
// kernel: finetuned_bert_forward.1
$region0: #{finetuned_bert_forward.1}
  #allocation0 [shape = 'u32[]', space=smem, size = 0x4, offset = 0x4, fixed_abs, tag = 'smem constant byte address 0x4 - core index']
  #allocation1 [shape = 'u32[144,128]{1,0:T(1,128)}', space=vmem, size = 0x12000, scoped, tag = 'internal scratch']
  #allocation2 [shape = 's32[1]{0}', space=sflag, size = 0x4, scoped, tag = 'scoped memory for finetuned_bert_forward.1']
  #allocation3 [shape = 'u8[512]{0}', space=smem, size = 0x200, scoped, tag = 'prefetched SMEM operand 0']
  %s0 = inlined_call_operand.vmem [shape: s32[2], index: 0, kind: input, shape index: {}]
  %s1 = inlined_call_operand.vmem [shape: f32[2,8,32], index: 1, kind: input, shape index: {}]
  %s2 = inlined_call_operand.vmem [shape: f32[2,8,8], index: 2, kind: input, shape index: {}]
  %s3 = inlined_call_operand.vmem [shape: f32[20,64], index: 3, kind: input, shape index: {}]
  %s4 = inlined_call_operand.vmem [shape: f32[2,32,64], index: 4, kind: input, shape index: {}]
  %s5 = inlined_call_operand.vmem [shape: f32[2,32,33], index: 5, kind: input, shape index: {}]
  %s6 = inlined_call_operand.vmem [shape: f32[2,4,8,32], index: 6, kind: input, shape index: {}]
  %s7 = inlined_call_operand.vmem [shape: f32[2,32,64], index: 7, kind: input, shape index: {}]
  %s8 = inlined_call_operand.vmem [shape: f32[2,64,32], index: 8, kind: input, shape index: {}]
  %s9 = inlined_call_operand.vmem [shape: f32[48,64], index: 9, kind: input, shape index: {}]
  %s10 = inlined_call_operand.vmem [shape: f32[16,2], index: 10, kind: input, shape index: {}]
  %s11 = inlined_call_operand.hbm [shape: f32[2,1,2], index: 11, kind: output, shape index: {}]
  %s12 = sld [smem:[#allocation0]]
  $region73: #{finetuned_bert_forward.1} parent=0
    _
  %s14 = ssub.s32 1, %s12
  %s15 = scalar_select 0, %s14, %s12
  %s16 = sshll.u32 %s0, 4
  %s17 = int_to_ptr.vmem [resolvable:$true] %s16
  %19 = dma.vmem_to_smem %s17, 16, [#allocation3], [#allocation2]
  %20 = dma.done [#allocation2], 16
  %21 = sfence
  $region1: #{finetuned_bert_forward.1} parent=0
    #allocation4 [shape = 'u8[1024]{0}', space=vmem, size = 0x400, scoped, tag = 'output window, operand 0']
    #allocation5 [shape = 's32[2]{0}', space=sflag, size = 0x8, scoped, tag = 'scoped memory for finetuned_bert_forward.1']
    %22 = vsyncpa [#allocation5], 0
    %s23 = scalar_lea.sflag [#allocation5], 1
    %24 = vsyncpa %s23, 0
    loop: start=0, step=1, limit=4
    $region2: #{finetuned_bert_forward.1} parent=1 // loop_pre_header
      _
    $region3: #{finetuned_bert_forward.1} parent=1 // loop_header
      %s26 = sphi 0, %s30
      %p27 = scmp.ge.s32.totalorder %s26, 4
      %s36 = sphi 0, %s38
      %s39 = sphi 0, %s36
      %s40 = sphi 0, %s39
      %s56 = sphi 0, %s40
      %s62 = sphi 0, %s64
      %s65 = sphi 0, %s62
      %s66 = sphi 0, %s65
      %s82 = sphi 0, %s66
      %s86 = sphi 0, %s86
      %s88 = sphi 0, %s86
      %s89 = sphi 0, %s88
      %s103 = sphi 0, %s89
      %s107 = sphi 0, %s107
      %s109 = sphi 0, %s107
      %s110 = sphi 0, %s109
      %s124 = sphi 0, %s110
      %s128 = sphi 0, %s128
      %s130 = sphi 0, %s128
      %s131 = sphi 0, %s130
      %s145 = sphi 0, %s131
      %s149 = sphi 0, %s149
      %s151 = sphi 0, %s149
      %s152 = sphi 0, %s151
      %s166 = sphi 0, %s152
      %s170 = sphi 0, %s170
      %s172 = sphi 0, %s170
      %s173 = sphi 0, %s172
      %s187 = sphi 0, %s173
      %s191 = sphi 0, %s191
      %s193 = sphi 0, %s191
      %s194 = sphi 0, %s193
      %s208 = sphi 0, %s194
      %s212 = sphi 0, %s212
      %s214 = sphi 0, %s212
      %s215 = sphi 0, %s214
      %s229 = sphi 0, %s215
      %s233 = sphi 0, %s233
      %s235 = sphi 0, %s233
      %s236 = sphi 0, %s235
      %s250 = sphi 0, %s236
      %s256 = sphi 0, %s258
      %s259 = sphi 0, %s256
      %s260 = sphi 0, %s259
      %s276 = sphi 0, %s260
    $region4: #{finetuned_bert_forward.1} parent=1 // loop_header_branch
      %29 = sbr.rel (%p27) target = $region8
    $region5: #{finetuned_bert_forward.1} parent=1 // loop_body
      %s31 = ssub.s32 %s26, 1
      %s32 = ssub.s32 %s26, 2
      %s33 = sadd.s32 %s26, 1
      %s34 = ssub.s32 %s26, %s33
      %p35 = scmp.eq.s32.totalorder %s34, 0
      %s37 = sadd.s32 %s36, 1
      %s38 = scalar_select %p35, %s36, %s37
      %p41 = pneg %p35
      %p42 = scmp.eq.s32.totalorder %s26, 1
      %p43 = por %p41, %p42
      %p44 = scmp.ne.s32.totalorder %s36, %s39
      %p45 = scmp.eq.s32.totalorder %s26, 0
      %p46 = por %p44, %p45
      %p47 = scmp.ne.s32.totalorder %s36, %s39
      %p48 = scmp.eq.s32.totalorder %s31, 1
      %p49 = por %p47, %p48
      %p50 = scmp.ne.s32.totalorder %s39, %s40
      %p51 = scmp.eq.s32.totalorder %s31, 0
      %p52 = por %p50, %p51
      %p53 = scmp.ne.s32.totalorder %s39, %s40
      %p54 = scmp.eq.s32.totalorder %s32, 1
      %p55 = por %p53, %p54
      %p57 = scmp.ne.s32.totalorder %s40, %s56
      %p58 = scmp.eq.s32.totalorder %s32, 0
      %p59 = por %p57, %p58
      %s60 = ssub.s32 %s26, %s33
      %p61 = scmp.eq.s32.totalorder %s60, 0
      %s63 = sadd.s32 %s62, 1
      %s64 = scalar_select %p61, %s62, %s63
      %p67 = pneg %p61
      %p68 = scmp.eq.s32.totalorder %s26, 1
      %p69 = por %p67, %p68
      %p70 = scmp.ne.s32.totalorder %s62, %s65
      %p71 = scmp.eq.s32.totalorder %s26, 0
      %p72 = por %p70, %p71
      %p73 = scmp.ne.s32.totalorder %s62, %s65
      %p74 = scmp.eq.s32.totalorder %s31, 1
      %p75 = por %p73, %p74
      %p76 = scmp.ne.s32.totalorder %s65, %s66
      %p77 = scmp.eq.s32.totalorder %s31, 0
      %p78 = por %p76, %p77
      %p79 = scmp.ne.s32.totalorder %s65, %s66
      %p80 = scmp.eq.s32.totalorder %s32, 1
      %p81 = por %p79, %p80
      %p83 = scmp.ne.s32.totalorder %s66, %s82
      %p84 = scmp.eq.s32.totalorder %s32, 0
      %p85 = por %p83, %p84
      %s87 = sadd.s32 %s86, 1
      %p90 = scmp.eq.s32.totalorder %s26, 1
      %p91 = scmp.ne.s32.totalorder %s86, %s88
      %p92 = scmp.eq.s32.totalorder %s26, 0
      %p93 = por %p91, %p92
      %p94 = scmp.ne.s32.totalorder %s86, %s88
      %p95 = scmp.eq.s32.totalorder %s31, 1
      %p96 = por %p94, %p95
      %p97 = scmp.ne.s32.totalorder %s88, %s89
      %p98 = scmp.eq.s32.totalorder %s31, 0
      %p99 = por %p97, %p98
      %p100 = scmp.ne.s32.totalorder %s88, %s89
      %p101 = scmp.eq.s32.totalorder %s32, 1
      %p102 = por %p100, %p101
      %p104 = scmp.ne.s32.totalorder %s89, %s103
      %p105 = scmp.eq.s32.totalorder %s32, 0
      %p106 = por %p104, %p105
      %s108 = sadd.s32 %s107, 1
      %p111 = scmp.eq.s32.totalorder %s26, 1
      %p112 = scmp.ne.s32.totalorder %s107, %s109
      %p113 = scmp.eq.s32.totalorder %s26, 0
      %p114 = por %p112, %p113
      %p115 = scmp.ne.s32.totalorder %s107, %s109
      %p116 = scmp.eq.s32.totalorder %s31, 1
      %p117 = por %p115, %p116
      %p118 = scmp.ne.s32.totalorder %s109, %s110
      %p119 = scmp.eq.s32.totalorder %s31, 0
      %p120 = por %p118, %p119
      %p121 = scmp.ne.s32.totalorder %s109, %s110
      %p122 = scmp.eq.s32.totalorder %s32, 1
      %p123 = por %p121, %p122
      %p125 = scmp.ne.s32.totalorder %s110, %s124
      %p126 = scmp.eq.s32.totalorder %s32, 0
      %p127 = por %p125, %p126
      %s129 = sadd.s32 %s128, 1
      %p132 = scmp.eq.s32.totalorder %s26, 1
      %p133 = scmp.ne.s32.totalorder %s128, %s130
      %p134 = scmp.eq.s32.totalorder %s26, 0
      %p135 = por %p133, %p134
      %p136 = scmp.ne.s32.totalorder %s128, %s130
      %p137 = scmp.eq.s32.totalorder %s31, 1
      %p138 = por %p136, %p137
      %p139 = scmp.ne.s32.totalorder %s130, %s131
      %p140 = scmp.eq.s32.totalorder %s31, 0
      %p141 = por %p139, %p140
      %p142 = scmp.ne.s32.totalorder %s130, %s131
      %p143 = scmp.eq.s32.totalorder %s32, 1
      %p144 = por %p142, %p143
      %p146 = scmp.ne.s32.totalorder %s131, %s145
      %p147 = scmp.eq.s32.totalorder %s32, 0
      %p148 = por %p146, %p147
      %s150 = sadd.s32 %s149, 1
      %p153 = scmp.eq.s32.totalorder %s26, 1
      %p154 = scmp.ne.s32.totalorder %s149, %s151
      %p155 = scmp.eq.s32.totalorder %s26, 0
      %p156 = por %p154, %p155
      %p157 = scmp.ne.s32.totalorder %s149, %s151
      %p158 = scmp.eq.s32.totalorder %s31, 1
      %p159 = por %p157, %p158
      %p160 = scmp.ne.s32.totalorder %s151, %s152
      %p161 = scmp.eq.s32.totalorder %s31, 0
      %p162 = por %p160, %p161
      %p163 = scmp.ne.s32.totalorder %s151, %s152
      %p164 = scmp.eq.s32.totalorder %s32, 1
      %p165 = por %p163, %p164
      %p167 = scmp.ne.s32.totalorder %s152, %s166
      %p168 = scmp.eq.s32.totalorder %s32, 0
      %p169 = por %p167, %p168
      %s171 = sadd.s32 %s170, 1
      %p174 = scmp.eq.s32.totalorder %s26, 1
      %p175 = scmp.ne.s32.totalorder %s170, %s172
      %p176 = scmp.eq.s32.totalorder %s26, 0
      %p177 = por %p175, %p176
      %p178 = scmp.ne.s32.totalorder %s170, %s172
      %p179 = scmp.eq.s32.totalorder %s31, 1
      %p180 = por %p178, %p179
      %p181 = scmp.ne.s32.totalorder %s172, %s173
      %p182 = scmp.eq.s32.totalorder %s31, 0
      %p183 = por %p181, %p182
      %p184 = scmp.ne.s32.totalorder %s172, %s173
      %p185 = scmp.eq.s32.totalorder %s32, 1
      %p186 = por %p184, %p185
      %p188 = scmp.ne.s32.totalorder %s173, %s187
      %p189 = scmp.eq.s32.totalorder %s32, 0
      %p190 = por %p188, %p189
      %s192 = sadd.s32 %s191, 1
      %p195 = scmp.eq.s32.totalorder %s26, 1
      %p196 = scmp.ne.s32.totalorder %s191, %s193
      %p197 = scmp.eq.s32.totalorder %s26, 0
      %p198 = por %p196, %p197
      %p199 = scmp.ne.s32.totalorder %s191, %s193
      %p200 = scmp.eq.s32.totalorder %s31, 1
      %p201 = por %p199, %p200
      %p202 = scmp.ne.s32.totalorder %s193, %s194
      %p203 = scmp.eq.s32.totalorder %s31, 0
      %p204 = por %p202, %p203
      %p205 = scmp.ne.s32.totalorder %s193, %s194
      %p206 = scmp.eq.s32.totalorder %s32, 1
      %p207 = por %p205, %p206
      %p209 = scmp.ne.s32.totalorder %s194, %s208
      %p210 = scmp.eq.s32.totalorder %s32, 0
      %p211 = por %p209, %p210
      %s213 = sadd.s32 %s212, 1
      %p216 = scmp.eq.s32.totalorder %s26, 1
      %p217 = scmp.ne.s32.totalorder %s212, %s214
      %p218 = scmp.eq.s32.totalorder %s26, 0
      %p219 = por %p217, %p218
      %p220 = scmp.ne.s32.totalorder %s212, %s214
      %p221 = scmp.eq.s32.totalorder %s31, 1
      %p222 = por %p220, %p221
      %p223 = scmp.ne.s32.totalorder %s214, %s215
      %p224 = scmp.eq.s32.totalorder %s31, 0
      %p225 = por %p223, %p224
      %p226 = scmp.ne.s32.totalorder %s214, %s215
      %p227 = scmp.eq.s32.totalorder %s32, 1
      %p228 = por %p226, %p227
      %p230 = scmp.ne.s32.totalorder %s215, %s229
      %p231 = scmp.eq.s32.totalorder %s32, 0
      %p232 = por %p230, %p231
      %s234 = sadd.s32 %s233, 1
      %p237 = scmp.eq.s32.totalorder %s26, 1
      %p238 = scmp.ne.s32.totalorder %s233, %s235
      %p239 = scmp.eq.s32.totalorder %s26, 0
      %p240 = por %p238, %p239
      %p241 = scmp.ne.s32.totalorder %s233, %s235
      %p242 = scmp.eq.s32.totalorder %s31, 1
      %p243 = por %p241, %p242
      %p244 = scmp.ne.s32.totalorder %s235, %s236
      %p245 = scmp.eq.s32.totalorder %s31, 0
      %p246 = por %p244, %p245
      %p247 = scmp.ne.s32.totalorder %s235, %s236
      %p248 = scmp.eq.s32.totalorder %s32, 1
      %p249 = por %p247, %p248
      %p251 = scmp.ne.s32.totalorder %s236, %s250
      %p252 = scmp.eq.s32.totalorder %s32, 0
      %p253 = por %p251, %p252
      %s254 = ssub.s32 %s26, %s33
      %p255 = scmp.eq.s32.totalorder %s254, 0
      %s257 = sadd.s32 %s256, 1
      %s258 = scalar_select %p255, %s256, %s257
      %p261 = pneg %p255
      %p262 = scmp.eq.s32.totalorder %s26, 1
      %p263 = por %p261, %p262
      %p264 = scmp.ne.s32.totalorder %s256, %s259
      %p265 = scmp.eq.s32.totalorder %s26, 0
      %p266 = por %p264, %p265
      %p267 = scmp.ne.s32.totalorder %s256, %s259
      %p268 = scmp.eq.s32.totalorder %s31, 1
      %p269 = por %p267, %p268
      %p270 = scmp.ne.s32.totalorder %s259, %s260
      %p271 = scmp.eq.s32.totalorder %s31, 0
      %p272 = por %p270, %p271
      %p273 = scmp.ne.s32.totalorder %s259, %s260
      %p274 = scmp.eq.s32.totalorder %s32, 1
      %p275 = por %p273, %p274
      %p277 = scmp.ne.s32.totalorder %s260, %s276
      %p278 = scmp.eq.s32.totalorder %s32, 0
      %p279 = por %p277, %p278
      %p280 = scmp.le.s32.totalorder 1, %s26
      %p281 = scmp.lt.s32.totalorder %s26, 3
      %p282 = pnand %p280, %p281
      %p283 = pneg %p282
      // Predicated region
      $region9: #{finetuned_bert_forward.1} parent=5 // pred_check
        _
      $region10: #{finetuned_bert_forward.1} parent=5 // pred_check_branch
        %285 = sbr.rel (%p282) target = $region12
      $region11: #{finetuned_bert_forward.1} parent=5 // pred_region
        %s286 = ssub.s32 %s26, 1
        // Predicated region
        $region13: #{finetuned_bert_forward.1} parent=11 // pred_check
          %p287 = pneg %p99
        $region14: #{finetuned_bert_forward.1} parent=11 // pred_check_branch
          %289 = sbr.rel (%p287) target = $region16
        $region15: #{finetuned_bert_forward.1} parent=11 // pred_region
          _
        $region16: #{finetuned_bert_forward.1} parent=11 // pred_fallthru
          _
        // Predicated region
        $region17: #{finetuned_bert_forward.1} parent=11 // pred_check
          %p290 = pneg %p120
        $region18: #{finetuned_bert_forward.1} parent=11 // pred_check_branch
          %292 = sbr.rel (%p290) target = $region20
        $region19: #{finetuned_bert_forward.1} parent=11 // pred_region
          _
        $region20: #{finetuned_bert_forward.1} parent=11 // pred_fallthru
          _
        // Predicated region
        $region21: #{finetuned_bert_forward.1} parent=11 // pred_check
          %p293 = pneg %p141
        $region22: #{finetuned_bert_forward.1} parent=11 // pred_check_branch
          %295 = sbr.rel (%p293) target = $region24
        $region23: #{finetuned_bert_forward.1} parent=11 // pred_region
          _
        $region24: #{finetuned_bert_forward.1} parent=11 // pred_fallthru
          _
        // Predicated region
        $region25: #{finetuned_bert_forward.1} parent=11 // pred_check
          %p296 = pneg %p162
        $region26: #{finetuned_bert_forward.1} parent=11 // pred_check_branch
          %298 = sbr.rel (%p296) target = $region28
        $region27: #{finetuned_bert_forward.1} parent=11 // pred_region
          _
        $region28: #{finetuned_bert_forward.1} parent=11 // pred_fallthru
          _
        // Predicated region
        $region29: #{finetuned_bert_forward.1} parent=11 // pred_check
          %p299 = pneg %p183
        $region30: #{finetuned_bert_forward.1} parent=11 // pred_check_branch
          %301 = sbr.rel (%p299) target = $region32
        $region31: #{finetuned_bert_forward.1} parent=11 // pred_region
          _
        $region32: #{finetuned_bert_forward.1} parent=11 // pred_fallthru
          _
        // Predicated region
        $region33: #{finetuned_bert_forward.1} parent=11 // pred_check
          %p302 = pneg %p204
        $region34: #{finetuned_bert_forward.1} parent=11 // pred_check_branch
          %304 = sbr.rel (%p302) target = $region36
        $region35: #{finetuned_bert_forward.1} parent=11 // pred_region
          _
        $region36: #{finetuned_bert_forward.1} parent=11 // pred_fallthru
          _
        // Predicated region
        $region37: #{finetuned_bert_forward.1} parent=11 // pred_check
          %p305 = pneg %p225
        $region38: #{finetuned_bert_forward.1} parent=11 // pred_check_branch
          %307 = sbr.rel (%p305) target = $region40
        $region39: #{finetuned_bert_forward.1} parent=11 // pred_region
          _
        $region40: #{finetuned_bert_forward.1} parent=11 // pred_fallthru
          _
        // Predicated region
        $region41: #{finetuned_bert_forward.1} parent=11 // pred_check
          %p308 = pneg %p246
        $region42: #{finetuned_bert_forward.1} parent=11 // pred_check_branch
          %310 = sbr.rel (%p308) target = $region44
        $region43: #{finetuned_bert_forward.1} parent=11 // pred_region
          _
        $region44: #{finetuned_bert_forward.1} parent=11 // pred_fallthru
          _
      $region12: #{finetuned_bert_forward.1} parent=5 // pred_fallthru
        _
      %p311 = scmp.lt.s32.totalorder %s26, 2
      // Predicated region
      $region45: #{finetuned_bert_forward.1} parent=5 // pred_check
        %p312 = pneg %p311
      $region46: #{finetuned_bert_forward.1} parent=5 // pred_check_branch
        %314 = sbr.rel (%p312) target = $region48
      $region47: #{finetuned_bert_forward.1} parent=5 // pred_region
        // Predicated region
        $region49: #{finetuned_bert_forward.1} parent=47 // pred_check
          %p315 = pneg %p46
        $region50: #{finetuned_bert_forward.1} parent=47 // pred_check_branch
          %317 = sbr.rel (%p315) target = $region52
        $region51: #{finetuned_bert_forward.1} parent=47 // pred_region
          %p318 = scmp.lt.s32.totalorder %s26, 1
          %s319 = scalar_select %p318, %s26, 1
          %s320 = smul.addr %s319, 8
          %s321 = scalar_lea.vmem %s1, %s320
        $region52: #{finetuned_bert_forward.1} parent=47 // pred_fallthru
          _
        // Predicated region
        $region53: #{finetuned_bert_forward.1} parent=47 // pred_check
          %p322 = pneg %p72
        $region54: #{finetuned_bert_forward.1} parent=47 // pred_check_branch
          %324 = sbr.rel (%p322) target = $region56
        $region55: #{finetuned_bert_forward.1} parent=47 // pred_region
          %p325 = scmp.lt.s32.totalorder %s26, 1
          %s326 = scalar_select %p325, %s26, 1
          %s327 = smul.addr %s326, 8
          %s328 = scalar_lea.vmem %s2, %s327
        $region56: #{finetuned_bert_forward.1} parent=47 // pred_fallthru
          _
      $region48: #{finetuned_bert_forward.1} parent=5 // pred_fallthru
        _
      %p329 = scmp.le.s32.totalorder 1, %s26
      %p330 = scmp.lt.s32.totalorder %s26, 3
      %p331 = pnand %p329, %p330
      %p332 = pneg %p331
      // Predicated region
      $region57: #{finetuned_bert_forward.1} parent=5 // pred_check
        _
      $region58: #{finetuned_bert_forward.1} parent=5 // pred_check_branch
        %334 = sbr.rel (%p331) target = $region60
      $region59: #{finetuned_bert_forward.1} parent=5 // pred_region
        %s335 = ssub.s32 %s26, 1
        %p336 = scmp.lt.s32.totalorder %s31, 1
        %s337 = scalar_select %p336, %s31, 1
        %s338 = smul.addr %s337, 8
        %s339 = scalar_lea.vmem %s1, %s338
        %p340 = pneg %p52
        %p341 = pneg %p49
        %p342 = scmp.lt.s32.totalorder %s31, 1
        %s343 = scalar_select %p342, %s31, 1
        %s344 = smul.addr %s343, 8
        %s345 = scalar_lea.vmem %s2, %s344
        %p346 = pneg %p78
        %p347 = pneg %p75
        %p348 = pneg %p99
        %p349 = pneg %p96
        %p350 = pneg %p120
        %p351 = pneg %p117
        %p352 = pneg %p141
        %p353 = pneg %p138
        %p354 = pneg %p162
        %p355 = pneg %p159
        %p356 = pneg %p183
        %p357 = pneg %p180
        %p358 = pneg %p204
        %p359 = pneg %p201
        %p360 = pneg %p225
        %p361 = pneg %p222
        %p362 = pneg %p246
        %p363 = pneg %p243
        %p364 = pneg %p272
        %p365 = pneg %p269
        %s366 = sand.u32 %s259, 1
        %s367 = scalar_lea.sflag [#allocation5], %s366
        %s368 = sand.u32 %s259, 1
        %s369 = scalar_lea.vmem [#allocation4], %s368
        %p370 = scmp.lt.s32.totalorder %s31, 1
        %s371 = scalar_select %p370, %s31, 1
        %s372 = smul.addr %s371, 8
        %s373 = scalar_lea.vmem %s1, %s372
        %p374 = scmp.lt.s32.totalorder %s31, 1
        %s375 = scalar_select %p374, %s31, 1
        %s376 = smul.addr %s375, 8
        %s377 = scalar_lea.vmem %s2, %s376
        %v378 = vld [vmem:[%s377] sm:$0xff]
        %v379 = vld [vmem:[%s373] sm:$0xff]
        %v380 = vld [vmem:[%s3] sm:$0x1]
        %v381 = vld [vmem:[%s3 + $0x1] sm:$0x1]
        %vm382 = vcmask 261120
        %v383 = vsel %vm382, %v379, 0.0
        %384 = vadd.xlane.f32.xlu0 %v383
        %v385 = vpop.xlane.xlu0 %384
        %v386 = vrcp.pop 32.0
        %v387 = vmul.f32 %v385, %v386
        %v388 = vsub.f32 %v379, %v387
        %v389 = vmul.f32 %v388, %v388
        %v390 = vsel %vm382, %v389, 0.0
        %391 = vadd.xlane.f32.xlu0 %v390
        %v392 = vpop.xlane.xlu0 %391
        %v393 = vmul.f32 %v392, %v386
        %v394 = vadd.f32 %v393, 1e-12
        %v395 = vrsqrt.pop %v394
        %v396 = vmul.f32 %v388, %v395
        %v397 = vlaneseq
        %v398 = vshrl.u32 %v397, 7
        %v399 = vsub.s32 0, %v398
        %v400 = vrot.slane %v380, %v399
        %v401 = vmul.f32 %v396, %v400
        %v402 = vlaneseq
        %v403 = vshrl.u32 %v402, 7
        %v404 = vsub.s32 0, %v403
        %v405 = vrot.slane %v381, %v404
        %v406 = vadd.f32 %v401, %v405
        %v407 = vld [vmem:[%s4] sm:$0xff]
        %v408 = vld [vmem:[%s4 + $0x8] sm:$0xff]
        %v409 = vld [vmem:[%s4 + $0x10] sm:$0xff]
        %v410 = vld [vmem:[%s4 + $0x18] sm:$0xff]
        %v411 = vld [vmem:[%s3 + $0x4] sm:$0x1]
        %v412 = vlaneseq
        %v413 = vshrl.u32 %v412, 7
        %v414 = vsub.s32 0, %v413
        %v415 = vrot.slane %v411, %v414
        %v417 = vsel %vm382, %v406, 0
        %419 = vmatprep.subr.mxu0 0.0
        %420 = vmatpush1.msra.mxu0 0.0
        %421 = vmatprep.subr.mxu0 0.0
        %422 = vmatpush1.msra.mxu0 0.0
        %423 = vmatprep.subr.mxu0 0.0
        %424 = vmatpush1.msra.mxu0 0.0
        %425 = vmatprep.subr.mxu0 0.0
        %426 = vmatpush1.msra.mxu0 0.0
        %427 = vmatprep.subr.mxu0 0.0
        %428 = vmatpush1.msra.mxu0 0.0
        %429 = vmatprep.subr.mxu0 0.0
        %430 = vmatpush1.msra.mxu0 0.0
        %431 = vmatprep.subr.mxu0 0.0
        %432 = vmatpush1.msra.mxu0 0.0
        %433 = vmatprep.subr.mxu0 0.0
        %434 = vmatpush1.msra.mxu0 0.0
        %435 = vmatprep.subr.mxu0 0.0
        %436 = vmatpush1.msra.mxu0 0.0
        %437 = vmatprep.subr.mxu0 0.0
        %438 = vmatpush1.msra.mxu0 0.0
        %439 = vmatprep.subr.mxu0 0.0
        %440 = vmatpush1.msra.mxu0 0.0
        %441 = vmatprep.subr.mxu0 0.0
        %442 = vmatpush1.msra.mxu0 0.0
        %443 = vmatprep.subr.mxu0 0.0
        %444 = vmatpush1.msra.mxu0 %v410
        %445 = vmatprep.subr.mxu0 0.0
        %446 = vmatpush1.msra.mxu0 %v409
        %447 = vmatprep.subr.mxu0 0.0
        %448 = vmatpush1.msra.mxu0 %v408
        %449 = vmatprep.subr.mxu0 0.0
        %450 = vmatpush1.msra.mxu0 %v407
        %451 = vmatprep.subr.mxu0 0.0
        %452 = vmatpush2.msra.mxu0 0.0
        %453 = vmatprep.subr.mxu0 0.0
        %454 = vmatpush2.msra.mxu0 0.0
        %455 = vmatprep.subr.mxu0 0.0
        %456 = vmatpush2.msra.mxu0 0.0
        %457 = vmatprep.subr.mxu0 0.0
        %458 = vmatpush2.msra.mxu0 0.0
        %459 = vmatprep.subr.mxu0 0.0
        %460 = vmatpush2.msra.mxu0 0.0
        %461 = vmatprep.subr.mxu0 0.0
        %462 = vmatpush2.msra.mxu0 0.0
        %463 = vmatprep.subr.mxu0 0.0
        %464 = vmatpush2.msra.mxu0 0.0
        %465 = vmatprep.subr.mxu0 0.0
        %466 = vmatpush2.msra.mxu0 0.0
        %467 = vmatprep.subr.mxu0 0.0
        %468 = vmatpush2.msra.mxu0 0.0
        %469 = vmatprep.subr.mxu0 0.0
        %470 = vmatpush2.msra.mxu0 0.0
        %471 = vmatprep.subr.mxu0 0.0
        %472 = vmatpush2.msra.mxu0 0.0
        %473 = vmatprep.subr.mxu0 0.0
        %474 = vmatpush2.msra.mxu0 0.0
        %475 = vmatprep.subr.mxu0 0.0
        %476 = vmatpush2.msra.mxu0 0.0
        %477 = vmatprep.subr.mxu0 0.0
        %478 = vmatpush2.msra.mxu0 0.0
        %479 = vmatprep.subr.mxu0 0.0
        %480 = vmatpush2.msra.mxu0 0.0
        %481 = vmatprep.subr.mxu0 0.0
        %482 = vmatpush2.msra.mxu0 0.0
        %483 = vmatprep.mubr.f32.mxu0 0.0
        %484 = vmatmul.mubr.f32.gmra.mxu0 %v417
        %v485 = vpop.f32.mrf.mxu0
        %v486 = vadd.f32 %v415, %v485
        %v487 = vpop.f32.mrf.mxu0
        %488 = vdwg.mxu0
        %v489 = vld [vmem:[%s5] sm:$0xff]
        %v490 = vld [vmem:[%s5 + $0x8] sm:$0xff]
        %v491 = vld [vmem:[%s5 + $0x10] sm:$0xff]
        %v492 = vld [vmem:[%s5 + $0x18] sm:$0xff]
        %494 = vset.pattern.permute.xlu0 32
        %495 = vperm.xlu0 %494, %v489
        %v496 = vpop.permute.xlu0 %495
        %499 = vset.pattern.permute.xlu0 32
        %500 = vperm.xlu0 %499, %v490
        %v501 = vpop.permute.xlu0 %500
        %504 = vset.pattern.permute.xlu0 32
        %505 = vperm.xlu0 %504, %v491
        %v506 = vpop.permute.xlu0 %505
        %509 = vset.pattern.permute.xlu0 32
        %510 = vperm.xlu0 %509, %v492
        %v511 = vpop.permute.xlu0 %510
        %v513 = vsel %vm382, %v489, 0
        %v515 = vsel %vm382, %v490, 0
        %v517 = vsel %vm382, %v491, 0
        %v519 = vsel %vm382, %v492, 0
        %521 = vmatprep.subr.mxu0 0.0
        %522 = vmatpush1.xpose.msra.mxu0 0.0
        %523 = vmatprep.subr.mxu0 0.0
        %524 = vmatpush1.xpose.msra.mxu0 0.0
        %525 = vmatprep.subr.mxu0 0.0
        %526 = vmatpush1.xpose.msra.mxu0 0.0
        %527 = vmatprep.subr.mxu0 0.0
        %528 = vmatpush1.xpose.msra.mxu0 0.0
        %529 = vmatprep.subr.mxu0 0.0
        %530 = vmatpush1.xpose.msra.mxu0 0.0
        %531 = vmatprep.subr.mxu0 0.0
        %532 = vmatpush1.xpose.msra.mxu0 0.0
        %533 = vmatprep.subr.mxu0 0.0
        %534 = vmatpush1.xpose.msra.mxu0 0.0
        %535 = vmatprep.subr.mxu0 0.0
        %536 = vmatpush1.xpose.msra.mxu0 0.0
        %537 = vmatprep.subr.mxu0 0.0
        %538 = vmatpush1.xpose.msra.mxu0 0.0
        %539 = vmatprep.subr.mxu0 0.0
        %540 = vmatpush1.xpose.msra.mxu0 0.0
        %541 = vmatprep.subr.mxu0 0.0
        %542 = vmatpush1.xpose.msra.mxu0 0.0
        %543 = vmatprep.subr.mxu0 0.0
        %544 = vmatpush1.xpose.msra.mxu0 0.0
        %545 = vmatprep.subr.mxu0 0.0
        %546 = vmatpush1.xpose.msra.mxu0 0.0
        %547 = vmatprep.subr.mxu0 0.0
        %548 = vmatpush1.xpose.msra.mxu0 0.0
        %549 = vmatprep.subr.mxu0 0.0
        %550 = vmatpush1.xpose.msra.mxu0 0.0
        %551 = vmatprep.subr.mxu0 0.0
        %552 = vmatpush1.xpose.msra.mxu0 %v417
        %553 = vmatprep.subr.mxu0 0.0
        %554 = vmatpush2.xpose.msra.mxu0 0.0
        %555 = vmatprep.subr.mxu0 0.0
        %556 = vmatpush2.xpose.msra.mxu0 0.0
        %557 = vmatprep.subr.mxu0 0.0
        %558 = vmatpush2.xpose.msra.mxu0 0.0
        %559 = vmatprep.subr.mxu0 0.0
        %560 = vmatpush2.xpose.msra.mxu0 0.0
        %561 = vmatprep.subr.mxu0 0.0
        %562 = vmatpush2.xpose.msra.mxu0 0.0
        %563 = vmatprep.subr.mxu0 0.0
        %564 = vmatpush2.xpose.msra.mxu0 0.0
        %565 = vmatprep.subr.mxu0 0.0
        %566 = vmatpush2.xpose.msra.mxu0 0.0
        %567 = vmatprep.subr.mxu0 0.0
        %568 = vmatpush2.xpose.msra.mxu0 0.0
        %569 = vmatprep.subr.mxu0 0.0
        %570 = vmatpush2.xpose.msra.mxu0 0.0
        %571 = vmatprep.subr.mxu0 0.0
        %572 = vmatpush2.xpose.msra.mxu0 0.0
        %573 = vmatprep.subr.mxu0 0.0
        %574 = vmatpush2.xpose.msra.mxu0 0.0
        %575 = vmatprep.subr.mxu0 0.0
        %576 = vmatpush2.xpose.msra.mxu0 0.0
        %577 = vmatprep.subr.mxu0 0.0
        %578 = vmatpush2.xpose.msra.mxu0 0.0
        %579 = vmatprep.subr.mxu0 0.0
        %580 = vmatpush2.xpose.msra.mxu0 0.0
        %581 = vmatprep.subr.mxu0 0.0
        %582 = vmatpush2.xpose.msra.mxu0 0.0
        %583 = vmatprep.subr.mxu0 0.0
        %584 = vmatpush2.xpose.msra.mxu0 0.0
        %585 = vmatprep.mubr.f32.mxu0 0.0
        %586 = vmatmul.mubr.f32.gmra.mxu0 %v513
        %v587 = vpop.f32.mrf.mxu0
        %v588 = vadd.f32 %v496, %v587
        %v589 = vpop.f32.mrf.mxu0
        %590 = vmatprep.mubr.f32.mxu0 0.0
        %591 = vmatmul.mubr.f32.gmra.mxu0 %v515
        %v592 = vpop.f32.mrf.mxu0
        %v593 = vadd.f32 %v501, %v592
        %v594 = vpop.f32.mrf.mxu0
        %595 = vmatprep.mubr.f32.mxu0 0.0
        %596 = vmatmul.mubr.f32.gmra.mxu0 %v517
        %v597 = vpop.f32.mrf.mxu0
        %v598 = vadd.f32 %v506, %v597
        %v599 = vpop.f32.mrf.mxu0
        %600 = vmatprep.mubr.f32.mxu0 0.0
        %601 = vmatmul.mubr.f32.gmra.mxu0 %v519
        %v602 = vpop.f32.mrf.mxu0
        %v603 = vadd.f32 %v511, %v602
        %v604 = vpop.f32.mrf.mxu0
        %605 = vdwg.mxu0
        %vm606 = vcmask 64512
        %v608 = vsel %vm606, %v486, 0
        %610 = vmatprep.subr.mxu0 0.0
        %611 = vmatpush1.msra.mxu0 0.0
        %612 = vmatprep.subr.mxu0 0.0
        %613 = vmatpush1.msra.mxu0 0.0
        %614 = vmatprep.subr.mxu0 0.0
        %615 = vmatpush1.msra.mxu0 0.0
        %616 = vmatprep.subr.mxu0 0.0
        %617 = vmatpush1.msra.mxu0 0.0
        %618 = vmatprep.subr.mxu0 0.0
        %619 = vmatpush1.msra.mxu0 0.0
        %620 = vmatprep.subr.mxu0 0.0
        %621 = vmatpush1.msra.mxu0 0.0
        %622 = vmatprep.subr.mxu0 0.0
        %623 = vmatpush1.msra.mxu0 0.0
        %624 = vmatprep.subr.mxu0 0.0
        %625 = vmatpush1.msra.mxu0 0.0
        %626 = vmatprep.subr.mxu0 0.0
        %627 = vmatpush1.msra.mxu0 0.0
        %628 = vmatprep.subr.mxu0 0.0
        %629 = vmatpush1.msra.mxu0 0.0
        %630 = vmatprep.subr.mxu0 0.0
        %631 = vmatpush1.msra.mxu0 0.0
        %632 = vmatprep.subr.mxu0 0.0
        %633 = vmatpush1.msra.mxu0 0.0
        %634 = vmatprep.subr.mxu0 0.0
        %635 = vmatpush1.msra.mxu0 0.0
        %636 = vmatprep.subr.mxu0 0.0
        %637 = vmatpush1.msra.mxu0 0.0
        %638 = vmatprep.subr.mxu0 0.0
        %639 = vmatpush1.msra.mxu0 0.0
        %640 = vmatprep.subr.mxu0 0.0
        %641 = vmatpush1.msra.mxu0 %v588
        %642 = vmatprep.subr.mxu0 0.0
        %643 = vmatpush2.msra.mxu0 0.0
        %644 = vmatprep.subr.mxu0 0.0
        %645 = vmatpush2.msra.mxu0 0.0
        %646 = vmatprep.subr.mxu0 0.0
        %647 = vmatpush2.msra.mxu0 0.0
        %648 = vmatprep.subr.mxu0 0.0
        %649 = vmatpush2.msra.mxu0 0.0
        %650 = vmatprep.subr.mxu0 0.0
        %651 = vmatpush2.msra.mxu0 0.0
        %652 = vmatprep.subr.mxu0 0.0
        %653 = vmatpush2.msra.mxu0 0.0
        %654 = vmatprep.subr.mxu0 0.0
        %655 = vmatpush2.msra.mxu0 0.0
        %656 = vmatprep.subr.mxu0 0.0
        %657 = vmatpush2.msra.mxu0 0.0
        %658 = vmatprep.subr.mxu0 0.0
        %659 = vmatpush2.msra.mxu0 0.0
        %660 = vmatprep.subr.mxu0 0.0
        %661 = vmatpush2.msra.mxu0 0.0
        %662 = vmatprep.subr.mxu0 0.0
        %663 = vmatpush2.msra.mxu0 0.0
        %664 = vmatprep.subr.mxu0 0.0
        %665 = vmatpush2.msra.mxu0 0.0
        %666 = vmatprep.subr.mxu0 0.0
        %667 = vmatpush2.msra.mxu0 0.0
        %668 = vmatprep.subr.mxu0 0.0
        %669 = vmatpush2.msra.mxu0 0.0
        %670 = vmatprep.subr.mxu0 0.0
        %671 = vmatpush2.msra.mxu0 0.0
        %672 = vmatprep.subr.mxu0 0.0
        %673 = vmatpush2.msra.mxu0 0.0
        %674 = vmatprep.mubr.f32.mxu0 0.0
        %675 = vmatmul.mubr.f32.gmra.mxu0 %v608
        %v676 = vpop.f32.mrf.mxu0
        %v677 = vadd.f32 0.0, %v676
        %v678 = vpop.f32.mrf.mxu0
        %679 = vdwg.mxu0
        %v680 = vmul.f32 %v677, 0.35355338
        %v681 = vadd.f32 %v680, %v378
        %v682 = vsel %vm606, %v681, -inf
        %683 = vmax.xlane.f32.xlu0 %v682
        %v684 = vpop.xlane.xlu0 %683
        %v685 = vsub.f32 %v681, %v684
        %v686 = vmul.f32 %v685, 1.442695
        %v687 = vpow.pop %v686
        %v688 = vsel %vm606, %v687, 0.0
        %689 = vadd.xlane.f32.xlu0 %v688
        %v690 = vpop.xlane.xlu0 %689
        %v691 = vrcp.pop %v690
        %v692 = vmul.f32 %v687, %v691
        %693 = vrot.lane.b32.xlu0 %v486, 96
        %v694 = vpop.permute.xlu0 %693
        %v697 = vsel %vm606, %v692, 0
        %699 = vmatprep.subr.mxu0 0.0
        %700 = vmatpush1.msra.mxu0 0.0
        %701 = vmatprep.subr.mxu0 0.0
        %702 = vmatpush1.msra.mxu0 0.0
        %703 = vmatprep.subr.mxu0 0.0
        %704 = vmatpush1.msra.mxu0 0.0
        %705 = vmatprep.subr.mxu0 0.0
        %706 = vmatpush1.msra.mxu0 0.0
        %707 = vmatprep.subr.mxu0 0.0
        %708 = vmatpush1.msra.mxu0 0.0
        %709 = vmatprep.subr.mxu0 0.0
        %710 = vmatpush1.msra.mxu0 0.0
        %711 = vmatprep.subr.mxu0 0.0
        %712 = vmatpush1.msra.mxu0 0.0
        %713 = vmatprep.subr.mxu0 0.0
        %714 = vmatpush1.msra.mxu0 0.0
        %715 = vmatprep.subr.mxu0 0.0
        %716 = vmatpush1.msra.mxu0 0.0
        %717 = vmatprep.subr.mxu0 0.0
        %718 = vmatpush1.msra.mxu0 0.0
        %719 = vmatprep.subr.mxu0 0.0
        %720 = vmatpush1.msra.mxu0 0.0
        %721 = vmatprep.subr.mxu0 0.0
        %722 = vmatpush1.msra.mxu0 0.0
        %723 = vmatprep.subr.mxu0 0.0
        %724 = vmatpush1.msra.mxu0 0.0
        %725 = vmatprep.subr.mxu0 0.0
        %726 = vmatpush1.msra.mxu0 0.0
        %727 = vmatprep.subr.mxu0 0.0
        %728 = vmatpush1.msra.mxu0 0.0
        %729 = vmatprep.subr.mxu0 0.0
        %730 = vmatpush1.msra.mxu0 %v694
        %731 = vmatprep.subr.mxu0 0.0
        %732 = vmatpush2.msra.mxu0 0.0
        %733 = vmatprep.subr.mxu0 0.0
        %734 = vmatpush2.msra.mxu0 0.0
        %735 = vmatprep.subr.mxu0 0.0
        %736 = vmatpush2.msra.mxu0 0.0
        %737 = vmatprep.subr.mxu0 0.0
        %738 = vmatpush2.msra.mxu0 0.0
        %739 = vmatprep.subr.mxu0 0.0
        %740 = vmatpush2.msra.mxu0 0.0
        %741 = vmatprep.subr.mxu0 0.0
        %742 = vmatpush2.msra.mxu0 0.0
        %743 = vmatprep.subr.mxu0 0.0
        %744 = vmatpush2.msra.mxu0 0.0
        %745 = vmatprep.subr.mxu0 0.0
        %746 = vmatpush2.msra.mxu0 0.0
        %747 = vmatprep.subr.mxu0 0.0
        %748 = vmatpush2.msra.mxu0 0.0
        %749 = vmatprep.subr.mxu0 0.0
        %750 = vmatpush2.msra.mxu0 0.0
        %751 = vmatprep.subr.mxu0 0.0
        %752 = vmatpush2.msra.mxu0 0.0
        %753 = vmatprep.subr.mxu0 0.0
        %754 = vmatpush2.msra.mxu0 0.0
        %755 = vmatprep.subr.mxu0 0.0
        %756 = vmatpush2.msra.mxu0 0.0
        %757 = vmatprep.subr.mxu0 0.0
        %758 = vmatpush2.msra.mxu0 0.0
        %759 = vmatprep.subr.mxu0 0.0
        %760 = vmatpush2.msra.mxu0 0.0
        %761 = vmatprep.subr.mxu0 0.0
        %762 = vmatpush2.msra.mxu0 0.0
        %763 = vmatprep.mubr.f32.mxu0 0.0
        %764 = vmatmul.mubr.f32.gmra.mxu0 %v697
        %v765 = vpop.f32.mrf.mxu0
        %v766 = vadd.f32 0.0, %v765
        %v767 = vpop.f32.mrf.mxu0
        %768 = vdwg.mxu0
        %v769 = vld [vmem:[%s6] sm:$0xff]
        %770 = vrot.lane.b32.xlu0 %v486, 120
        %v771 = vpop.permute.xlu0 %770
        %v772 = vsel %vm606, %v771, 0
        %774 = vmatprep.subr.mxu0 0.0
        %775 = vmatpush1.msra.mxu0 0.0
        %776 = vmatprep.subr.mxu0 0.0
        %777 = vmatpush1.msra.mxu0 0.0
        %778 = vmatprep.subr.mxu0 0.0
        %779 = vmatpush1.msra.mxu0 0.0
        %780 = vmatprep.subr.mxu0 0.0
        %781 = vmatpush1.msra.mxu0 0.0
        %782 = vmatprep.subr.mxu0 0.0
        %783 = vmatpush1.msra.mxu0 0.0
        %784 = vmatprep.subr.mxu0 0.0
        %785 = vmatpush1.msra.mxu0 0.0
        %786 = vmatprep.subr.mxu0 0.0
        %787 = vmatpush1.msra.mxu0 0.0
        %788 = vmatprep.subr.mxu0 0.0
        %789 = vmatpush1.msra.mxu0 0.0
        %790 = vmatprep.subr.mxu0 0.0
        %791 = vmatpush1.msra.mxu0 0.0
        %792 = vmatprep.subr.mxu0 0.0
        %793 = vmatpush1.msra.mxu0 0.0
        %794 = vmatprep.subr.mxu0 0.0
        %795 = vmatpush1.msra.mxu0 0.0
        %796 = vmatprep.subr.mxu0 0.0
        %797 = vmatpush1.msra.mxu0 0.0
        %798 = vmatprep.subr.mxu0 0.0
        %799 = vmatpush1.msra.mxu0 0.0
        %800 = vmatprep.subr.mxu0 0.0
        %801 = vmatpush1.msra.mxu0 0.0
        %802 = vmatprep.subr.mxu0 0.0
        %803 = vmatpush1.msra.mxu0 0.0
        %804 = vmatprep.subr.mxu0 0.0
        %805 = vmatpush1.msra.mxu0 %v593
        %806 = vmatprep.subr.mxu0 0.0
        %807 = vmatpush2.msra.mxu0 0.0
        %808 = vmatprep.subr.mxu0 0.0
        %809 = vmatpush2.msra.mxu0 0.0
        %810 = vmatprep.subr.mxu0 0.0
        %811 = vmatpush2.msra.mxu0 0.0
        %812 = vmatprep.subr.mxu0 0.0
        %813 = vmatpush2.msra.mxu0 0.0
        %814 = vmatprep.subr.mxu0 0.0
        %815 = vmatpush2.msra.mxu0 0.0
        %816 = vmatprep.subr.mxu0 0.0
        %817 = vmatpush2.msra.mxu0 0.0
        %818 = vmatprep.subr.mxu0 0.0
        %819 = vmatpush2.msra.mxu0 0.0
        %820 = vmatprep.subr.mxu0 0.0
        %821 = vmatpush2.msra.mxu0 0.0
        %822 = vmatprep.subr.mxu0 0.0
        %823 = vmatpush2.msra.mxu0 0.0
        %824 = vmatprep.subr.mxu0 0.0
        %825 = vmatpush2.msra.mxu0 0.0
        %826 = vmatprep.subr.mxu0 0.0
        %827 = vmatpush2.msra.mxu0 0.0
        %828 = vmatprep.subr.mxu0 0.0
        %829 = vmatpush2.msra.mxu0 0.0
        %830 = vmatprep.subr.mxu0 0.0
        %831 = vmatpush2.msra.mxu0 0.0
        %832 = vmatprep.subr.mxu0 0.0
        %833 = vmatpush2.msra.mxu0 0.0
        %834 = vmatprep.subr.mxu0 0.0
        %835 = vmatpush2.msra.mxu0 0.0
        %836 = vmatprep.subr.mxu0 0.0
        %837 = vmatpush2.msra.mxu0 0.0
        %838 = vmatprep.mubr.f32.mxu0 0.0
        %839 = vmatmul.mubr.f32.gmra.mxu0 %v772
        %v840 = vpop.f32.mrf.mxu0
        %v841 = vadd.f32 0.0, %v840
        %v842 = vpop.f32.mrf.mxu0
        %843 = vdwg.mxu0
        %v844 = vmul.f32 %v841, 0.35355338
        %v845 = vadd.f32 %v844, %v378
        %v846 = vsel %vm606, %v845, -inf
        %847 = vmax.xlane.f32.xlu0 %v846
        %v848 = vpop.xlane.xlu0 %847
        %v849 = vsub.f32 %v845, %v848
        %v850 = vmul.f32 %v849, 1.442695
        %v851 = vpow.pop %v850
        %v852 = vsel %vm606, %v851, 0.0
        %853 = vadd.xlane.f32.xlu0 %v852
        %v854 = vpop.xlane.xlu0 %853
        %v855 = vrcp.pop %v854
        %v856 = vmul.f32 %v851, %v855
        %857 = vrot.lane.b32.xlu0 %v486, 88
        %v858 = vpop.permute.xlu0 %857
        %v861 = vsel %vm606, %v856, 0
        %863 = vmatprep.subr.mxu0 0.0
        %864 = vmatpush1.msra.mxu0 0.0
        %865 = vmatprep.subr.mxu0 0.0
        %866 = vmatpush1.msra.mxu0 0.0
        %867 = vmatprep.subr.mxu0 0.0
        %868 = vmatpush1.msra.mxu0 0.0
        %869 = vmatprep.subr.mxu0 0.0
        %870 = vmatpush1.msra.mxu0 0.0
        %871 = vmatprep.subr.mxu0 0.0
        %872 = vmatpush1.msra.mxu0 0.0
        %873 = vmatprep.subr.mxu0 0.0
        %874 = vmatpush1.msra.mxu0 0.0
        %875 = vmatprep.subr.mxu0 0.0
        %876 = vmatpush1.msra.mxu0 0.0
        %877 = vmatprep.subr.mxu0 0.0
        %878 = vmatpush1.msra.mxu0 0.0
        %879 = vmatprep.subr.mxu0 0.0
        %880 = vmatpush1.msra.mxu0 0.0
        %881 = vmatprep.subr.mxu0 0.0
        %882 = vmatpush1.msra.mxu0 0.0
        %883 = vmatprep.subr.mxu0 0.0
        %884 = vmatpush1.msra.mxu0 0.0
        %885 = vmatprep.subr.mxu0 0.0
        %886 = vmatpush1.msra.mxu0 0.0
        %887 = vmatprep.subr.mxu0 0.0
        %888 = vmatpush1.msra.mxu0 0.0
        %889 = vmatprep.subr.mxu0 0.0
        %890 = vmatpush1.msra.mxu0 0.0
        %891 = vmatprep.subr.mxu0 0.0
        %892 = vmatpush1.msra.mxu0 0.0
        %893 = vmatprep.subr.mxu0 0.0
        %894 = vmatpush1.msra.mxu0 %v858
        %895 = vmatprep.subr.mxu0 0.0
        %896 = vmatpush2.msra.mxu0 0.0
        %897 = vmatprep.subr.mxu0 0.0
        %898 = vmatpush2.msra.mxu0 0.0
        %899 = vmatprep.subr.mxu0 0.0
        %900 = vmatpush2.msra.mxu0 0.0
        %901 = vmatprep.subr.mxu0 0.0
        %902 = vmatpush2.msra.mxu0 0.0
        %903 = vmatprep.subr.mxu0 0.0
        %904 = vmatpush2.msra.mxu0 0.0
        %905 = vmatprep.subr.mxu0 0.0
        %906 = vmatpush2.msra.mxu0 0.0
        %907 = vmatprep.subr.mxu0 0.0
        %908 = vmatpush2.msra.mxu0 0.0
        %909 = vmatprep.subr.mxu0 0.0
        %910 = vmatpush2.msra.mxu0 0.0
        %911 = vmatprep.subr.mxu0 0.0
        %912 = vmatpush2.msra.mxu0 0.0
        %913 = vmatprep.subr.mxu0 0.0
        %914 = vmatpush2.msra.mxu0 0.0
        %915 = vmatprep.subr.mxu0 0.0
        %916 = vmatpush2.msra.mxu0 0.0
        %917 = vmatprep.subr.mxu0 0.0
        %918 = vmatpush2.msra.mxu0 0.0
        %919 = vmatprep.subr.mxu0 0.0
        %920 = vmatpush2.msra.mxu0 0.0
        %921 = vmatprep.subr.mxu0 0.0
        %922 = vmatpush2.msra.mxu0 0.0
        %923 = vmatprep.subr.mxu0 0.0
        %924 = vmatpush2.msra.mxu0 0.0
        %925 = vmatprep.subr.mxu0 0.0
        %926 = vmatpush2.msra.mxu0 0.0
        %927 = vmatprep.mubr.f32.mxu0 0.0
        %928 = vmatmul.mubr.f32.gmra.mxu0 %v861
        %v929 = vpop.f32.mrf.mxu0
        %v930 = vadd.f32 0.0, %v929
        %v931 = vpop.f32.mrf.mxu0
        %932 = vdwg.mxu0
        %s933 = scalar_lea.vmem %s6, 8
        %v934 = vld [vmem:[%s933] sm:$0xff]
        %v936 = vsel %vm606, %v930, 0
        %938 = vmatprep.subr.mxu0 0.0
        %939 = vmatpush1.msra.mxu0 0.0
        %940 = vmatprep.subr.mxu0 0.0
        %941 = vmatpush1.msra.mxu0 0.0
        %942 = vmatprep.subr.mxu0 0.0
        %943 = vmatpush1.msra.mxu0 0.0
        %944 = vmatprep.subr.mxu0 0.0
        %945 = vmatpush1.msra.mxu0 0.0
        %946 = vmatprep.subr.mxu0 0.0
        %947 = vmatpush1.msra.mxu0 0.0
        %948 = vmatprep.subr.mxu0 0.0
        %949 = vmatpush1.msra.mxu0 0.0
        %950 = vmatprep.subr.mxu0 0.0
        %951 = vmatpush1.msra.mxu0 0.0
        %952 = vmatprep.subr.mxu0 0.0
        %953 = vmatpush1.msra.mxu0 0.0
        %954 = vmatprep.subr.mxu0 0.0
        %955 = vmatpush1.msra.mxu0 0.0
        %956 = vmatprep.subr.mxu0 0.0
        %957 = vmatpush1.msra.mxu0 0.0
        %958 = vmatprep.subr.mxu0 0.0
        %959 = vmatpush1.msra.mxu0 0.0
        %960 = vmatprep.subr.mxu0 0.0
        %961 = vmatpush1.msra.mxu0 0.0
        %962 = vmatprep.subr.mxu0 0.0
        %963 = vmatpush1.msra.mxu0 0.0
        %964 = vmatprep.subr.mxu0 0.0
        %965 = vmatpush1.msra.mxu0 0.0
        %966 = vmatprep.subr.mxu0 0.0
        %967 = vmatpush1.msra.mxu0 0.0
        %968 = vmatprep.subr.mxu0 0.0
        %969 = vmatpush1.msra.mxu0 %v934
        %970 = vmatprep.subr.mxu0 0.0
        %971 = vmatpush2.msra.mxu0 0.0
        %972 = vmatprep.subr.mxu0 0.0
        %973 = vmatpush2.msra.mxu0 0.0
        %974 = vmatprep.subr.mxu0 0.0
        %975 = vmatpush2.msra.mxu0 0.0
        %976 = vmatprep.subr.mxu0 0.0
        %977 = vmatpush2.msra.mxu0 0.0
        %978 = vmatprep.subr.mxu0 0.0
        %979 = vmatpush2.msra.mxu0 0.0
        %980 = vmatprep.subr.mxu0 0.0
        %981 = vmatpush2.msra.mxu0 0.0
        %982 = vmatprep.subr.mxu0 0.0
        %983 = vmatpush2.msra.mxu0 0.0
        %984 = vmatprep.subr.mxu0 0.0
        %985 = vmatpush2.msra.mxu0 0.0
        %986 = vmatprep.subr.mxu0 0.0
        %987 = vmatpush2.msra.mxu0 0.0
        %988 = vmatprep.subr.mxu0 0.0
        %989 = vmatpush2.msra.mxu0 0.0
        %990 = vmatprep.subr.mxu0 0.0
        %991 = vmatpush2.msra.mxu0 0.0
        %992 = vmatprep.subr.mxu0 0.0
        %993 = vmatpush2.msra.mxu0 0.0
        %994 = vmatprep.subr.mxu0 0.0
        %995 = vmatpush2.msra.mxu0 0.0
        %996 = vmatprep.subr.mxu0 0.0
        %997 = vmatpush2.msra.mxu0 0.0
        %998 = vmatprep.subr.mxu0 0.0
        %999 = vmatpush2.msra.mxu0 0.0
        %1000 = vmatprep.subr.mxu0 0.0
        %1001 = vmatpush2.msra.mxu0 0.0
        %1002 = vmatprep.mubr.f32.mxu0 0.0
        %1003 = vmatmul.mubr.f32.gmra.mxu0 %v936
        %v1004 = vpop.f32.mrf.mxu0
        %v1005 = vadd.f32 0.0, %v1004
        %v1006 = vpop.f32.mrf.mxu0
        %1007 = vdwg.mxu0
        %v1009 = vsel %vm606, %v766, 0
        %1011 = vmatprep.subr.mxu0 0.0
        %1012 = vmatpush1.msra.mxu0 0.0
        %1013 = vmatprep.subr.mxu0 0.0
        %1014 = vmatpush1.msra.mxu0 0.0
        %1015 = vmatprep.subr.mxu0 0.0
        %1016 = vmatpush1.msra.mxu0 0.0
        %1017 = vmatprep.subr.mxu0 0.0
        %1018 = vmatpush1.msra.mxu0 0.0
        %1019 = vmatprep.subr.mxu0 0.0
        %1020 = vmatpush1.msra.mxu0 0.0
        %1021 = vmatprep.subr.mxu0 0.0
        %1022 = vmatpush1.msra.mxu0 0.0
        %1023 = vmatprep.subr.mxu0 0.0
        %1024 = vmatpush1.msra.mxu0 0.0
        %1025 = vmatprep.subr.mxu0 0.0
        %1026 = vmatpush1.msra.mxu0 0.0
        %1027 = vmatprep.subr.mxu0 0.0
        %1028 = vmatpush1.msra.mxu0 0.0
        %1029 = vmatprep.subr.mxu0 0.0
        %1030 = vmatpush1.msra.mxu0 0.0
        %1031 = vmatprep.subr.mxu0 0.0
        %1032 = vmatpush1.msra.mxu0 0.0
        %1033 = vmatprep.subr.mxu0 0.0
        %1034 = vmatpush1.msra.mxu0 0.0
        %1035 = vmatprep.subr.mxu0 0.0
        %1036 = vmatpush1.msra.mxu0 0.0
        %1037 = vmatprep.subr.mxu0 0.0
        %1038 = vmatpush1.msra.mxu0 0.0
        %1039 = vmatprep.subr.mxu0 0.0
        %1040 = vmatpush1.msra.mxu0 0.0
        %1041 = vmatprep.subr.mxu0 0.0
        %1042 = vmatpush1.msra.mxu0 %v769
        %1043 = vmatprep.subr.mxu0 0.0
        %1044 = vmatpush2.msra.mxu0 0.0
        %1045 = vmatprep.subr.mxu0 0.0
        %1046 = vmatpush2.msra.mxu0 0.0
        %1047 = vmatprep.subr.mxu0 0.0
        %1048 = vmatpush2.msra.mxu0 0.0
        %1049 = vmatprep.subr.mxu0 0.0
        %1050 = vmatpush2.msra.mxu0 0.0
        %1051 = vmatprep.subr.mxu0 0.0
        %1052 = vmatpush2.msra.mxu0 0.0
        %1053 = vmatprep.subr.mxu0 0.0
        %1054 = vmatpush2.msra.mxu0 0.0
        %1055 = vmatprep.subr.mxu0 0.0
        %1056 = vmatpush2.msra.mxu0 0.0
        %1057 = vmatprep.subr.mxu0 0.0
        %1058 = vmatpush2.msra.mxu0 0.0
        %1059 = vmatprep.subr.mxu0 0.0
        %1060 = vmatpush2.msra.mxu0 0.0
        %1061 = vmatprep.subr.mxu0 0.0
        %1062 = vmatpush2.msra.mxu0 0.0
        %1063 = vmatprep.subr.mxu0 0.0
        %1064 = vmatpush2.msra.mxu0 0.0
        %1065 = vmatprep.subr.mxu0 0.0
        %1066 = vmatpush2.msra.mxu0 0.0
        %1067 = vmatprep.subr.mxu0 0.0
        %1068 = vmatpush2.msra.mxu0 0.0
        %1069 = vmatprep.subr.mxu0 0.0
        %1070 = vmatpush2.msra.mxu0 0.0
        %1071 = vmatprep.subr.mxu0 0.0
        %1072 = vmatpush2.msra.mxu0 0.0
        %1073 = vmatprep.subr.mxu0 0.0
        %1074 = vmatpush2.msra.mxu0 0.0
        %1075 = vmatprep.mubr.f32.mxu0 0.0
        %1076 = vmatmul.mubr.f32.gmra.mxu0 %v1009
        %v1077 = vpop.f32.mrf.mxu0
        %v1078 = vadd.f32 %v1005, %v1077
        %v1079 = vpop.f32.mrf.mxu0
        %1080 = vdwg.mxu0
        %1081 = vrot.lane.b32.xlu0 %v486, 112
        %v1082 = vpop.permute.xlu0 %1081
        %v1083 = vsel %vm606, %v1082, 0
        %1085 = vmatprep.subr.mxu0 0.0
        %1086 = vmatpush1.msra.mxu0 0.0
        %1087 = vmatprep.subr.mxu0 0.0
        %1088 = vmatpush1.msra.mxu0 0.0
        %1089 = vmatprep.subr.mxu0 0.0
        %1090 = vmatpush1.msra.mxu0 0.0
        %1091 = vmatprep.subr.mxu0 0.0
        %1092 = vmatpush1.msra.mxu0 0.0
        %1093 = vmatprep.subr.mxu0 0.0
        %1094 = vmatpush1.msra.mxu0 0.0
        %1095 = vmatprep.subr.mxu0 0.0
        %1096 = vmatpush1.msra.mxu0 0.0
        %1097 = vmatprep.subr.mxu0 0.0
        %1098 = vmatpush1.msra.mxu0 0.0
        %1099 = vmatprep.subr.mxu0 0.0
        %1100 = vmatpush1.msra.mxu0 0.0
        %1101 = vmatprep.subr.mxu0 0.0
        %1102 = vmatpush1.msra.mxu0 0.0
        %1103 = vmatprep.subr.mxu0 0.0
        %1104 = vmatpush1.msra.mxu0 0.0
        %1105 = vmatprep.subr.mxu0 0.0
        %1106 = vmatpush1.msra.mxu0 0.0
        %1107 = vmatprep.subr.mxu0 0.0
        %1108 = vmatpush1.msra.mxu0 0.0
        %1109 = vmatprep.subr.mxu0 0.0
        %1110 = vmatpush1.msra.mxu0 0.0
        %1111 = vmatprep.subr.mxu0 0.0
        %1112 = vmatpush1.msra.mxu0 0.0
        %1113 = vmatprep.subr.mxu0 0.0
        %1114 = vmatpush1.msra.mxu0 0.0
        %1115 = vmatprep.subr.mxu0 0.0
        %1116 = vmatpush1.msra.mxu0 %v598
        %1117 = vmatprep.subr.mxu0 0.0
        %1118 = vmatpush2.msra.mxu0 0.0
        %1119 = vmatprep.subr.mxu0 0.0
        %1120 = vmatpush2.msra.mxu0 0.0
        %1121 = vmatprep.subr.mxu0 0.0
        %1122 = vmatpush2.msra.mxu0 0.0
        %1123 = vmatprep.subr.mxu0 0.0
        %1124 = vmatpush2.msra.mxu0 0.0
        %1125 = vmatprep.subr.mxu0 0.0
        %1126 = vmatpush2.msra.mxu0 0.0
        %1127 = vmatprep.subr.mxu0 0.0
        %1128 = vmatpush2.msra.mxu0 0.0
        %1129 = vmatprep.subr.mxu0 0.0
        %1130 = vmatpush2.msra.mxu0 0.0
        %1131 = vmatprep.subr.mxu0 0.0
        %1132 = vmatpush2.msra.mxu0 0.0
        %1133 = vmatprep.subr.mxu0 0.0
        %1134 = vmatpush2.msra.mxu0 0.0
        %1135 = vmatprep.subr.mxu0 0.0
        %1136 = vmatpush2.msra.mxu0 0.0
        %1137 = vmatprep.subr.mxu0 0.0
        %1138 = vmatpush2.msra.mxu0 0.0
        %1139 = vmatprep.subr.mxu0 0.0
        %1140 = vmatpush2.msra.mxu0 0.0
        %1141 = vmatprep.subr.mxu0 0.0
        %1142 = vmatpush2.msra.mxu0 0.0
        %1143 = vmatprep.subr.mxu0 0.0
        %1144 = vmatpush2.msra.mxu0 0.0
        %1145 = vmatprep.subr.mxu0 0.0
        %1146 = vmatpush2.msra.mxu0 0.0
        %1147 = vmatprep.subr.mxu0 0.0
        %1148 = vmatpush2.msra.mxu0 0.0
        %1149 = vmatprep.mubr.f32.mxu0 0.0
        %1150 = vmatmul.mubr.f32.gmra.mxu0 %v1083
        %v1151 = vpop.f32.mrf.mxu0
        %v1152 = vadd.f32 0.0, %v1151
        %v1153 = vpop.f32.mrf.mxu0
        %1154 = vdwg.mxu0
        %v1155 = vmul.f32 %v1152, 0.35355338
        %v1156 = vadd.f32 %v1155, %v378
        %v1157 = vsel %vm606, %v1156, -inf
        %1158 = vmax.xlane.f32.xlu0 %v1157
        %v1159 = vpop.xlane.xlu0 %1158
        %v1160 = vsub.f32 %v1156, %v1159
        %v1161 = vmul.f32 %v1160, 1.442695
        %v1162 = vpow.pop %v1161
        %v1163 = vsel %vm606, %v1162, 0.0
        %1164 = vadd.xlane.f32.xlu0 %v1163
        %v1165 = vpop.xlane.xlu0 %1164
        %v1166 = vrcp.pop %v1165
        %v1167 = vmul.f32 %v1162, %v1166
        %1168 = vrot.lane.b32.xlu0 %v486, 80
        %v1169 = vpop.permute.xlu0 %1168
        %v1172 = vsel %vm606, %v1167, 0
        %1174 = vmatprep.subr.mxu0 0.0
        %1175 = vmatpush1.msra.mxu0 0.0
        %1176 = vmatprep.subr.mxu0 0.0
        %1177 = vmatpush1.msra.mxu0 0.0
        %1178 = vmatprep.subr.mxu0 0.0
        %1179 = vmatpush1.msra.mxu0 0.0
        %1180 = vmatprep.subr.mxu0 0.0
        %1181 = vmatpush1.msra.mxu0 0.0
        %1182 = vmatprep.subr.mxu0 0.0
        %1183 = vmatpush1.msra.mxu0 0.0
        %1184 = vmatprep.subr.mxu0 0.0
        %1185 = vmatpush1.msra.mxu0 0.0
        %1186 = vmatprep.subr.mxu0 0.0
        %1187 = vmatpush1.msra.mxu0 0.0
        %1188 = vmatprep.subr.mxu0 0.0
        %1189 = vmatpush1.msra.mxu0 0.0
        %1190 = vmatprep.subr.mxu0 0.0
        %1191 = vmatpush1.msra.mxu0 0.0
        %1192 = vmatprep.subr.mxu0 0.0
        %1193 = vmatpush1.msra.mxu0 0.0
        %1194 = vmatprep.subr.mxu0 0.0
        %1195 = vmatpush1.msra.mxu0 0.0
        %1196 = vmatprep.subr.mxu0 0.0
        %1197 = vmatpush1.msra.mxu0 0.0
        %1198 = vmatprep.subr.mxu0 0.0
        %1199 = vmatpush1.msra.mxu0 0.0
        %1200 = vmatprep.subr.mxu0 0.0
        %1201 = vmatpush1.msra.mxu0 0.0
        %1202 = vmatprep.subr.mxu0 0.0
        %1203 = vmatpush1.msra.mxu0 0.0
        %1204 = vmatprep.subr.mxu0 0.0
        %1205 = vmatpush1.msra.mxu0 %v1169
        %1206 = vmatprep.subr.mxu0 0.0
        %1207 = vmatpush2.msra.mxu0 0.0
        %1208 = vmatprep.subr.mxu0 0.0
        %1209 = vmatpush2.msra.mxu0 0.0
        %1210 = vmatprep.subr.mxu0 0.0
        %1211 = vmatpush2.msra.mxu0 0.0
        %1212 = vmatprep.subr.mxu0 0.0
        %1213 = vmatpush2.msra.mxu0 0.0
        %1214 = vmatprep.subr.mxu0 0.0
        %1215 = vmatpush2.msra.mxu0 0.0
        %1216 = vmatprep.subr.mxu0 0.0
        %1217 = vmatpush2.msra.mxu0 0.0
        %1218 = vmatprep.subr.mxu0 0.0
        %1219 = vmatpush2.msra.mxu0 0.0
        %1220 = vmatprep.subr.mxu0 0.0
        %1221 = vmatpush2.msra.mxu0 0.0
        %1222 = vmatprep.subr.mxu0 0.0
        %1223 = vmatpush2.msra.mxu0 0.0
        %1224 = vmatprep.subr.mxu0 0.0
        %1225 = vmatpush2.msra.mxu0 0.0
        %1226 = vmatprep.subr.mxu0 0.0
        %1227 = vmatpush2.msra.mxu0 0.0
        %1228 = vmatprep.subr.mxu0 0.0
        %1229 = vmatpush2.msra.mxu0 0.0
        %1230 = vmatprep.subr.mxu0 0.0
        %1231 = vmatpush2.msra.mxu0 0.0
        %1232 = vmatprep.subr.mxu0 0.0
        %1233 = vmatpush2.msra.mxu0 0.0
        %1234 = vmatprep.subr.mxu0 0.0
        %1235 = vmatpush2.msra.mxu0 0.0
        %1236 = vmatprep.subr.mxu0 0.0
        %1237 = vmatpush2.msra.mxu0 0.0
        %1238 = vmatprep.mubr.f32.mxu0 0.0
        %1239 = vmatmul.mubr.f32.gmra.mxu0 %v1172
        %v1240 = vpop.f32.mrf.mxu0
        %v1241 = vadd.f32 0.0, %v1240
        %v1242 = vpop.f32.mrf.mxu0
        %1243 = vdwg.mxu0
        %s1244 = scalar_lea.vmem %s6, 16
        %v1245 = vld [vmem:[%s1244] sm:$0xff]
        %v1247 = vsel %vm606, %v1241, 0
        %1249 = vmatprep.subr.mxu0 0.0
        %1250 = vmatpush1.msra.mxu0 0.0
        %1251 = vmatprep.subr.mxu0 0.0
        %1252 = vmatpush1.msra.mxu0 0.0
        %1253 = vmatprep.subr.mxu0 0.0
        %1254 = vmatpush1.msra.mxu0 0.0
        %1255 = vmatprep.subr.mxu0 0.0
        %1256 = vmatpush1.msra.mxu0 0.0
        %1257 = vmatprep.subr.mxu0 0.0
        %1258 = vmatpush1.msra.mxu0 0.0
        %1259 = vmatprep.subr.mxu0 0.0
        %1260 = vmatpush1.msra.mxu0 0.0
        %1261 = vmatprep.subr.mxu0 0.0
        %1262 = vmatpush1.msra.mxu0 0.0
        %1263 = vmatprep.subr.mxu0 0.0
        %1264 = vmatpush1.msra.mxu0 0.0
        %1265 = vmatprep.subr.mxu0 0.0
        %1266 = vmatpush1.msra.mxu0 0.0
        %1267 = vmatprep.subr.mxu0 0.0
        %1268 = vmatpush1.msra.mxu0 0.0
        %1269 = vmatprep.subr.mxu0 0.0
        %1270 = vmatpush1.msra.mxu0 0.0
        %1271 = vmatprep.subr.mxu0 0.0
        %1272 = vmatpush1.msra.mxu0 0.0
        %1273 = vmatprep.subr.mxu0 0.0
        %1274 = vmatpush1.msra.mxu0 0.0
        %1275 = vmatprep.subr.mxu0 0.0
        %1276 = vmatpush1.msra.mxu0 0.0
        %1277 = vmatprep.subr.mxu0 0.0
        %1278 = vmatpush1.msra.mxu0 0.0
        %1279 = vmatprep.subr.mxu0 0.0
        %1280 = vmatpush1.msra.mxu0 %v1245
        %1281 = vmatprep.subr.mxu0 0.0
        %1282 = vmatpush2.msra.mxu0 0.0
        %1283 = vmatprep.subr.mxu0 0.0
        %1284 = vmatpush2.msra.mxu0 0.0
        %1285 = vmatprep.subr.mxu0 0.0
        %1286 = vmatpush2.msra.mxu0 0.0
        %1287 = vmatprep.subr.mxu0 0.0
        %1288 = vmatpush2.msra.mxu0 0.0
        %1289 = vmatprep.subr.mxu0 0.0
        %1290 = vmatpush2.msra.mxu0 0.0
        %1291 = vmatprep.subr.mxu0 0.0
        %1292 = vmatpush2.msra.mxu0 0.0
        %1293 = vmatprep.subr.mxu0 0.0
        %1294 = vmatpush2.msra.mxu0 0.0
        %1295 = vmatprep.subr.mxu0 0.0
        %1296 = vmatpush2.msra.mxu0 0.0
        %1297 = vmatprep.subr.mxu0 0.0
        %1298 = vmatpush2.msra.mxu0 0.0
        %1299 = vmatprep.subr.mxu0 0.0
        %1300 = vmatpush2.msra.mxu0 0.0
        %1301 = vmatprep.subr.mxu0 0.0
        %1302 = vmatpush2.msra.mxu0 0.0
        %1303 = vmatprep.subr.mxu0 0.0
        %1304 = vmatpush2.msra.mxu0 0.0
        %1305 = vmatprep.subr.mxu0 0.0
        %1306 = vmatpush2.msra.mxu0 0.0
        %1307 = vmatprep.subr.mxu0 0.0
        %1308 = vmatpush2.msra.mxu0 0.0
        %1309 = vmatprep.subr.mxu0 0.0
        %1310 = vmatpush2.msra.mxu0 0.0
        %1311 = vmatprep.subr.mxu0 0.0
        %1312 = vmatpush2.msra.mxu0 0.0
        %1313 = vmatprep.mubr.f32.mxu0 0.0
        %1314 = vmatmul.mubr.f32.gmra.mxu0 %v1247
        %v1315 = vpop.f32.mrf.mxu0
        %v1316 = vadd.f32 0.0, %v1315
        %v1317 = vpop.f32.mrf.mxu0
        %1318 = vdwg.mxu0
        %v1319 = vadd.f32 %v1078, %v1316
        %1320 = vrot.lane.b32.xlu0 %v486, 104
        %v1321 = vpop.permute.xlu0 %1320
        %v1322 = vsel %vm606, %v1321, 0
        %1324 = vmatprep.subr.mxu0 0.0
        %1325 = vmatpush1.msra.mxu0 0.0
        %1326 = vmatprep.subr.mxu0 0.0
        %1327 = vmatpush1.msra.mxu0 0.0
        %1328 = vmatprep.subr.mxu0 0.0
        %1329 = vmatpush1.msra.mxu0 0.0
        %1330 = vmatprep.subr.mxu0 0.0
        %1331 = vmatpush1.msra.mxu0 0.0
        %1332 = vmatprep.subr.mxu0 0.0
        %1333 = vmatpush1.msra.mxu0 0.0
        %1334 = vmatprep.subr.mxu0 0.0
        %1335 = vmatpush1.msra.mxu0 0.0
        %1336 = vmatprep.subr.mxu0 0.0
        %1337 = vmatpush1.msra.mxu0 0.0
        %1338 = vmatprep.subr.mxu0 0.0
        %1339 = vmatpush1.msra.mxu0 0.0
        %1340 = vmatprep.subr.mxu0 0.0
        %1341 = vmatpush1.msra.mxu0 0.0
        %1342 = vmatprep.subr.mxu0 0.0
        %1343 = vmatpush1.msra.mxu0 0.0
        %1344 = vmatprep.subr.mxu0 0.0
        %1345 = vmatpush1.msra.mxu0 0.0
        %1346 = vmatprep.subr.mxu0 0.0
        %1347 = vmatpush1.msra.mxu0 0.0
        %1348 = vmatprep.subr.mxu0 0.0
        %1349 = vmatpush1.msra.mxu0 0.0
        %1350 = vmatprep.subr.mxu0 0.0
        %1351 = vmatpush1.msra.mxu0 0.0
        %1352 = vmatprep.subr.mxu0 0.0
        %1353 = vmatpush1.msra.mxu0 0.0
        %1354 = vmatprep.subr.mxu0 0.0
        %1355 = vmatpush1.msra.mxu0 %v603
        %1356 = vmatprep.subr.mxu0 0.0
        %1357 = vmatpush2.msra.mxu0 0.0
        %1358 = vmatprep.subr.mxu0 0.0
        %1359 = vmatpush2.msra.mxu0 0.0
        %1360 = vmatprep.subr.mxu0 0.0
        %1361 = vmatpush2.msra.mxu0 0.0
        %1362 = vmatprep.subr.mxu0 0.0
        %1363 = vmatpush2.msra.mxu0 0.0
        %1364 = vmatprep.subr.mxu0 0.0
        %1365 = vmatpush2.msra.mxu0 0.0
        %1366 = vmatprep.subr.mxu0 0.0
        %1367 = vmatpush2.msra.mxu0 0.0
        %1368 = vmatprep.subr.mxu0 0.0
        %1369 = vmatpush2.msra.mxu0 0.0
        %1370 = vmatprep.subr.mxu0 0.0
        %1371 = vmatpush2.msra.mxu0 0.0
        %1372 = vmatprep.subr.mxu0 0.0
        %1373 = vmatpush2.msra.mxu0 0.0
        %1374 = vmatprep.subr.mxu0 0.0
        %1375 = vmatpush2.msra.mxu0 0.0
        %1376 = vmatprep.subr.mxu0 0.0
        %1377 = vmatpush2.msra.mxu0 0.0
        %1378 = vmatprep.subr.mxu0 0.0
        %1379 = vmatpush2.msra.mxu0 0.0
        %1380 = vmatprep.subr.mxu0 0.0
        %1381 = vmatpush2.msra.mxu0 0.0
        %1382 = vmatprep.subr.mxu0 0.0
        %1383 = vmatpush2.msra.mxu0 0.0
        %1384 = vmatprep.subr.mxu0 0.0
        %1385 = vmatpush2.msra.mxu0 0.0
        %1386 = vmatprep.subr.mxu0 0.0
        %1387 = vmatpush2.msra.mxu0 0.0
        %1388 = vmatprep.mubr.f32.mxu0 0.0
        %1389 = vmatmul.mubr.f32.gmra.mxu0 %v1322
        %v1390 = vpop.f32.mrf.mxu0
        %v1391 = vadd.f32 0.0, %v1390
        %v1392 = vpop.f32.mrf.mxu0
        %1393 = vdwg.mxu0
        %v1394 = vmul.f32 %v1391, 0.35355338
        %v1395 = vadd.f32 %v1394, %v378
        %v1396 = vsel %vm606, %v1395, -inf
        %1397 = vmax.xlane.f32.xlu0 %v1396
        %v1398 = vpop.xlane.xlu0 %1397
        %v1399 = vsub.f32 %v1395, %v1398
        %v1400 = vmul.f32 %v1399, 1.442695
        %v1401 = vpow.pop %v1400
        %v1402 = vsel %vm606, %v1401, 0.0
        %1403 = vadd.xlane.f32.xlu0 %v1402
        %v1404 = vpop.xlane.xlu0 %1403
        %v1405 = vrcp.pop %v1404
        %v1406 = vmul.f32 %v1401, %v1405
        %1407 = vrot.lane.b32.xlu0 %v486, 72
        %v1408 = vpop.permute.xlu0 %1407
        %v1411 = vsel %vm606, %v1406, 0
        %1413 = vmatprep.subr.mxu0 0.0
        %1414 = vmatpush1.msra.mxu0 0.0
        %1415 = vmatprep.subr.mxu0 0.0
        %1416 = vmatpush1.msra.mxu0 0.0
        %1417 = vmatprep.subr.mxu0 0.0
        %1418 = vmatpush1.msra.mxu0 0.0
        %1419 = vmatprep.subr.mxu0 0.0
        %1420 = vmatpush1.msra.mxu0 0.0
        %1421 = vmatprep.subr.mxu0 0.0
        %1422 = vmatpush1.msra.mxu0 0.0
        %1423 = vmatprep.subr.mxu0 0.0
        %1424 = vmatpush1.msra.mxu0 0.0
        %1425 = vmatprep.subr.mxu0 0.0
        %1426 = vmatpush1.msra.mxu0 0.0
        %1427 = vmatprep.subr.mxu0 0.0
        %1428 = vmatpush1.msra.mxu0 0.0
        %1429 = vmatprep.subr.mxu0 0.0
        %1430 = vmatpush1.msra.mxu0 0.0
        %1431 = vmatprep.subr.mxu0 0.0
        %1432 = vmatpush1.msra.mxu0 0.0
        %1433 = vmatprep.subr.mxu0 0.0
        %1434 = vmatpush1.msra.mxu0 0.0
        %1435 = vmatprep.subr.mxu0 0.0
        %1436 = vmatpush1.msra.mxu0 0.0
        %1437 = vmatprep.subr.mxu0 0.0
        %1438 = vmatpush1.msra.mxu0 0.0
        %1439 = vmatprep.subr.mxu0 0.0
        %1440 = vmatpush1.msra.mxu0 0.0
        %1441 = vmatprep.subr.mxu0 0.0
        %1442 = vmatpush1.msra.mxu0 0.0
        %1443 = vmatprep.subr.mxu0 0.0
        %1444 = vmatpush1.msra.mxu0 %v1408
        %1445 = vmatprep.subr.mxu0 0.0
        %1446 = vmatpush2.msra.mxu0 0.0
        %1447 = vmatprep.subr.mxu0 0.0
        %1448 = vmatpush2.msra.mxu0 0.0
        %1449 = vmatprep.subr.mxu0 0.0
        %1450 = vmatpush2.msra.mxu0 0.0
        %1451 = vmatprep.subr.mxu0 0.0
        %1452 = vmatpush2.msra.mxu0 0.0
        %1453 = vmatprep.subr.mxu0 0.0
        %1454 = vmatpush2.msra.mxu0 0.0
        %1455 = vmatprep.subr.mxu0 0.0
        %1456 = vmatpush2.msra.mxu0 0.0
        %1457 = vmatprep.subr.mxu0 0.0
        %1458 = vmatpush2.msra.mxu0 0.0
        %1459 = vmatprep.subr.mxu0 0.0
        %1460 = vmatpush2.msra.mxu0 0.0
        %1461 = vmatprep.subr.mxu0 0.0
        %1462 = vmatpush2.msra.mxu0 0.0
        %1463 = vmatprep.subr.mxu0 0.0
        %1464 = vmatpush2.msra.mxu0 0.0
        %1465 = vmatprep.subr.mxu0 0.0
        %1466 = vmatpush2.msra.mxu0 0.0
        %1467 = vmatprep.subr.mxu0 0.0
        %1468 = vmatpush2.msra.mxu0 0.0
        %1469 = vmatprep.subr.mxu0 0.0
        %1470 = vmatpush2.msra.mxu0 0.0
        %1471 = vmatprep.subr.mxu0 0.0
        %1472 = vmatpush2.msra.mxu0 0.0
        %1473 = vmatprep.subr.mxu0 0.0
        %1474 = vmatpush2.msra.mxu0 0.0
        %1475 = vmatprep.subr.mxu0 0.0
        %1476 = vmatpush2.msra.mxu0 0.0
        %1477 = vmatprep.mubr.f32.mxu0 0.0
        %1478 = vmatmul.mubr.f32.gmra.mxu0 %v1411
        %v1479 = vpop.f32.mrf.mxu0
        %v1480 = vadd.f32 0.0, %v1479
        %v1481 = vpop.f32.mrf.mxu0
        %1482 = vdwg.mxu0
        %s1483 = scalar_lea.vmem %s6, 24
        %v1484 = vld [vmem:[%s1483] sm:$0xff]
        %v1486 = vsel %vm606, %v1480, 0
        %1488 = vmatprep.subr.mxu0 0.0
        %1489 = vmatpush1.msra.mxu0 0.0
        %1490 = vmatprep.subr.mxu0 0.0
        %1491 = vmatpush1.msra.mxu0 0.0
        %1492 = vmatprep.subr.mxu0 0.0
        %1493 = vmatpush1.msra.mxu0 0.0
        %1494 = vmatprep.subr.mxu0 0.0
        %1495 = vmatpush1.msra.mxu0 0.0
        %1496 = vmatprep.subr.mxu0 0.0
        %1497 = vmatpush1.msra.mxu0 0.0
        %1498 = vmatprep.subr.mxu0 0.0
        %1499 = vmatpush1.msra.mxu0 0.0
        %1500 = vmatprep.subr.mxu0 0.0
        %1501 = vmatpush1.msra.mxu0 0.0
        %1502 = vmatprep.subr.mxu0 0.0
        %1503 = vmatpush1.msra.mxu0 0.0
        %1504 = vmatprep.subr.mxu0 0.0
        %1505 = vmatpush1.msra.mxu0 0.0
        %1506 = vmatprep.subr.mxu0 0.0
        %1507 = vmatpush1.msra.mxu0 0.0
        %1508 = vmatprep.subr.mxu0 0.0
        %1509 = vmatpush1.msra.mxu0 0.0
        %1510 = vmatprep.subr.mxu0 0.0
        %1511 = vmatpush1.msra.mxu0 0.0
        %1512 = vmatprep.subr.mxu0 0.0
        %1513 = vmatpush1.msra.mxu0 0.0
        %1514 = vmatprep.subr.mxu0 0.0
        %1515 = vmatpush1.msra.mxu0 0.0
        %1516 = vmatprep.subr.mxu0 0.0
        %1517 = vmatpush1.msra.mxu0 0.0
        %1518 = vmatprep.subr.mxu0 0.0
        %1519 = vmatpush1.msra.mxu0 %v1484
        %1520 = vmatprep.subr.mxu0 0.0
        %1521 = vmatpush2.msra.mxu0 0.0
        %1522 = vmatprep.subr.mxu0 0.0
        %1523 = vmatpush2.msra.mxu0 0.0
        %1524 = vmatprep.subr.mxu0 0.0
        %1525 = vmatpush2.msra.mxu0 0.0
        %1526 = vmatprep.subr.mxu0 0.0
        %1527 = vmatpush2.msra.mxu0 0.0
        %1528 = vmatprep.subr.mxu0 0.0
        %1529 = vmatpush2.msra.mxu0 0.0
        %1530 = vmatprep.subr.mxu0 0.0
        %1531 = vmatpush2.msra.mxu0 0.0
        %1532 = vmatprep.subr.mxu0 0.0
        %1533 = vmatpush2.msra.mxu0 0.0
        %1534 = vmatprep.subr.mxu0 0.0
        %1535 = vmatpush2.msra.mxu0 0.0
        %1536 = vmatprep.subr.mxu0 0.0
        %1537 = vmatpush2.msra.mxu0 0.0
        %1538 = vmatprep.subr.mxu0 0.0
        %1539 = vmatpush2.msra.mxu0 0.0
        %1540 = vmatprep.subr.mxu0 0.0
        %1541 = vmatpush2.msra.mxu0 0.0
        %1542 = vmatprep.subr.mxu0 0.0
        %1543 = vmatpush2.msra.mxu0 0.0
        %1544 = vmatprep.subr.mxu0 0.0
        %1545 = vmatpush2.msra.mxu0 0.0
        %1546 = vmatprep.subr.mxu0 0.0
        %1547 = vmatpush2.msra.mxu0 0.0
        %1548 = vmatprep.subr.mxu0 0.0
        %1549 = vmatpush2.msra.mxu0 0.0
        %1550 = vmatprep.subr.mxu0 0.0
        %1551 = vmatpush2.msra.mxu0 0.0
        %1552 = vmatprep.mubr.f32.mxu0 0.0
        %1553 = vmatmul.mubr.f32.gmra.mxu0 %v1486
        %v1554 = vpop.f32.mrf.mxu0
        %v1555 = vadd.f32 0.0, %v1554
        %v1556 = vpop.f32.mrf.mxu0
        %1557 = vdwg.mxu0
        %v1558 = vadd.f32 %v1319, %v1555
        %v1559 = vld [vmem:[%s3 + $0x5] sm:$0x1]
        %v1560 = vlaneseq
        %v1561 = vshrl.u32 %v1560, 7
        %v1562 = vsub.s32 0, %v1561
        %v1563 = vrot.slane %v1559, %v1562
        %v1564 = vadd.f32 %v1558, %v1563
        %v1565 = vadd.f32 %v1564, %v406
        %v1566 = vld [vmem:[%s3 + $0x6] sm:$0x1]
        %v1567 = vld [vmem:[%s3 + $0x7] sm:$0x1]
        %v1568 = vsel %vm382, %v1565, 0.0
        %1569 = vadd.xlane.f32.xlu0 %v1568
        %v1570 = vpop.xlane.xlu0 %1569
        %v1571 = vmul.f32 %v1570, %v386
        %v1572 = vsub.f32 %v1565, %v1571
        %v1573 = vmul.f32 %v1572, %v1572
        %v1574 = vsel %vm382, %v1573, 0.0
        %1575 = vadd.xlane.f32.xlu0 %v1574
        %v1576 = vpop.xlane.xlu0 %1575
        %v1577 = vmul.f32 %v1576, %v386
        %v1578 = vadd.f32 %v1577, 1e-12
        %v1579 = vrsqrt.pop %v1578
        %v1580 = vmul.f32 %v1572, %v1579
        %v1581 = vlaneseq
        %v1582 = vshrl.u32 %v1581, 7
        %v1583 = vsub.s32 0, %v1582
        %v1584 = vrot.slane %v1566, %v1583
        %v1585 = vmul.f32 %v1580, %v1584
        %v1586 = vlaneseq
        %v1587 = vshrl.u32 %v1586, 7
        %v1588 = vsub.s32 0, %v1587
        %v1589 = vrot.slane %v1567, %v1588
        %v1590 = vadd.f32 %v1585, %v1589
        %v1591 = vld [vmem:[%s7] sm:$0xff]
        %v1592 = vld [vmem:[%s7 + $0x8] sm:$0xff]
        %v1593 = vld [vmem:[%s7 + $0x10] sm:$0xff]
        %v1594 = vld [vmem:[%s7 + $0x18] sm:$0xff]
        %v1595 = vld [vmem:[%s3 + $0x8] sm:$0x1]
        %v1596 = vlaneseq
        %v1597 = vshrl.u32 %v1596, 7
        %v1598 = vsub.s32 0, %v1597
        %v1599 = vrot.slane %v1595, %v1598
        %v1601 = vsel %vm382, %v1590, 0
        %1603 = vmatprep.subr.mxu0 0.0
        %1604 = vmatpush1.msra.mxu0 0.0
        %1605 = vmatprep.subr.mxu0 0.0
        %1606 = vmatpush1.msra.mxu0 0.0
        %1607 = vmatprep.subr.mxu0 0.0
        %1608 = vmatpush1.msra.mxu0 0.0
        %1609 = vmatprep.subr.mxu0 0.0
        %1610 = vmatpush1.msra.mxu0 0.0
        %1611 = vmatprep.subr.mxu0 0.0
        %1612 = vmatpush1.msra.mxu0 0.0
        %1613 = vmatprep.subr.mxu0 0.0
        %1614 = vmatpush1.msra.mxu0 0.0
        %1615 = vmatprep.subr.mxu0 0.0
        %1616 = vmatpush1.msra.mxu0 0.0
        %1617 = vmatprep.subr.mxu0 0.0
        %1618 = vmatpush1.msra.mxu0 0.0
        %1619 = vmatprep.subr.mxu0 0.0
        %1620 = vmatpush1.msra.mxu0 0.0
        %1621 = vmatprep.subr.mxu0 0.0
        %1622 = vmatpush1.msra.mxu0 0.0
        %1623 = vmatprep.subr.mxu0 0.0
        %1624 = vmatpush1.msra.mxu0 0.0
        %1625 = vmatprep.subr.mxu0 0.0
        %1626 = vmatpush1.msra.mxu0 0.0
        %1627 = vmatprep.subr.mxu0 0.0
        %1628 = vmatpush1.msra.mxu0 %v1594
        %1629 = vmatprep.subr.mxu0 0.0
        %1630 = vmatpush1.msra.mxu0 %v1593
        %1631 = vmatprep.subr.mxu0 0.0
        %1632 = vmatpush1.msra.mxu0 %v1592
        %1633 = vmatprep.subr.mxu0 0.0
        %1634 = vmatpush1.msra.mxu0 %v1591
        %1635 = vmatprep.subr.mxu0 0.0
        %1636 = vmatpush2.msra.mxu0 0.0
        %1637 = vmatprep.subr.mxu0 0.0
        %1638 = vmatpush2.msra.mxu0 0.0
        %1639 = vmatprep.subr.mxu0 0.0
        %1640 = vmatpush2.msra.mxu0 0.0
        %1641 = vmatprep.subr.mxu0 0.0
        %1642 = vmatpush2.msra.mxu0 0.0
        %1643 = vmatprep.subr.mxu0 0.0
        %1644 = vmatpush2.msra.mxu0 0.0
        %1645 = vmatprep.subr.mxu0 0.0
        %1646 = vmatpush2.msra.mxu0 0.0
        %1647 = vmatprep.subr.mxu0 0.0
        %1648 = vmatpush2.msra.mxu0 0.0
        %1649 = vmatprep.subr.mxu0 0.0
        %1650 = vmatpush2.msra.mxu0 0.0
        %1651 = vmatprep.subr.mxu0 0.0
        %1652 = vmatpush2.msra.mxu0 0.0
        %1653 = vmatprep.subr.mxu0 0.0
        %1654 = vmatpush2.msra.mxu0 0.0
        %1655 = vmatprep.subr.mxu0 0.0
        %1656 = vmatpush2.msra.mxu0 0.0
        %1657 = vmatprep.subr.mxu0 0.0
        %1658 = vmatpush2.msra.mxu0 0.0
        %1659 = vmatprep.subr.mxu0 0.0
        %1660 = vmatpush2.msra.mxu0 0.0
        %1661 = vmatprep.subr.mxu0 0.0
        %1662 = vmatpush2.msra.mxu0 0.0
        %1663 = vmatprep.subr.mxu0 0.0
        %1664 = vmatpush2.msra.mxu0 0.0
        %1665 = vmatprep.subr.mxu0 0.0
        %1666 = vmatpush2.msra.mxu0 0.0
        %1667 = vmatprep.mubr.f32.mxu0 0.0
        %1668 = vmatmul.mubr.f32.gmra.mxu0 %v1601
        %v1669 = vpop.f32.mrf.mxu0
        %v1670 = vadd.f32 %v1599, %v1669
        %v1671 = vpop.f32.mrf.mxu0
        %1672 = vdwg.mxu0
        %v1673 = vmul.f32 %v1670, 0.5
        %v1674 = vmul.f32 %v1670, 0.70710677
        %v1675 = verf.f32.pop %v1674
        %v1676 = vadd.f32 %v1675, 1.0
        %v1677 = vmul.f32 %v1673, %v1676
        %v1678 = vld [vmem:[%s8] sm:$0xff]
        %v1679 = vld [vmem:[%s8 + $0x8] sm:$0xff]
        %v1680 = vld [vmem:[%s8 + $0x10] sm:$0xff]
        %v1681 = vld [vmem:[%s8 + $0x18] sm:$0xff]
        %v1682 = vld [vmem:[%s8 + $0x20] sm:$0xff]
        %v1683 = vld [vmem:[%s8 + $0x28] sm:$0xff]
        %v1684 = vld [vmem:[%s8 + $0x30] sm:$0xff]
        %v1685 = vld [vmem:[%s8 + $0x38] sm:$0xff]
        %v1686 = vld [vmem:[%s3 + $0x9] sm:$0x1]
        %v1687 = vlaneseq
        %v1688 = vshrl.u32 %v1687, 7
        %v1689 = vsub.s32 0, %v1688
        %v1690 = vrot.slane %v1686, %v1689
        %vm1691 = vcmask 523264
        %v1693 = vsel %vm1691, %v1677, 0
        %1695 = vmatprep.subr.mxu0 0.0
        %1696 = vmatpush1.msra.mxu0 0.0
        %1697 = vmatprep.subr.mxu0 0.0
        %1698 = vmatpush1.msra.mxu0 0.0
        %1699 = vmatprep.subr.mxu0 0.0
        %1700 = vmatpush1.msra.mxu0 0.0
        %1701 = vmatprep.subr.mxu0 0.0
        %1702 = vmatpush1.msra.mxu0 0.0
        %1703 = vmatprep.subr.mxu0 0.0
        %1704 = vmatpush1.msra.mxu0 0.0
        %1705 = vmatprep.subr.mxu0 0.0
        %1706 = vmatpush1.msra.mxu0 0.0
        %1707 = vmatprep.subr.mxu0 0.0
        %1708 = vmatpush1.msra.mxu0 0.0
        %1709 = vmatprep.subr.mxu0 0.0
        %1710 = vmatpush1.msra.mxu0 0.0
        %1711 = vmatprep.subr.mxu0 0.0
        %1712 = vmatpush1.msra.mxu0 %v1685
        %1713 = vmatprep.subr.mxu0 0.0
        %1714 = vmatpush1.msra.mxu0 %v1684
        %1715 = vmatprep.subr.mxu0 0.0
        %1716 = vmatpush1.msra.mxu0 %v1683
        %1717 = vmatprep.subr.mxu0 0.0
        %1718 = vmatpush1.msra.mxu0 %v1682
        %1719 = vmatprep.subr.mxu0 0.0
        %1720 = vmatpush1.msra.mxu0 %v1681
        %1721 = vmatprep.subr.mxu0 0.0
        %1722 = vmatpush1.msra.mxu0 %v1680
        %1723 = vmatprep.subr.mxu0 0.0
        %1724 = vmatpush1.msra.mxu0 %v1679
        %1725 = vmatprep.subr.mxu0 0.0
        %1726 = vmatpush1.msra.mxu0 %v1678
        %1727 = vmatprep.subr.mxu0 0.0
        %1728 = vmatpush2.msra.mxu0 0.0
        %1729 = vmatprep.subr.mxu0 0.0
        %1730 = vmatpush2.msra.mxu0 0.0
        %1731 = vmatprep.subr.mxu0 0.0
        %1732 = vmatpush2.msra.mxu0 0.0
        %1733 = vmatprep.subr.mxu0 0.0
        %1734 = vmatpush2.msra.mxu0 0.0
        %1735 = vmatprep.subr.mxu0 0.0
        %1736 = vmatpush2.msra.mxu0 0.0
        %1737 = vmatprep.subr.mxu0 0.0
        %1738 = vmatpush2.msra.mxu0 0.0
        %1739 = vmatprep.subr.mxu0 0.0
        %1740 = vmatpush2.msra.mxu0 0.0
        %1741 = vmatprep.subr.mxu0 0.0
        %1742 = vmatpush2.msra.mxu0 0.0
        %1743 = vmatprep.subr.mxu0 0.0
        %1744 = vmatpush2.msra.mxu0 0.0
        %1745 = vmatprep.subr.mxu0 0.0
        %1746 = vmatpush2.msra.mxu0 0.0
        %1747 = vmatprep.subr.mxu0 0.0
        %1748 = vmatpush2.msra.mxu0 0.0
        %1749 = vmatprep.subr.mxu0 0.0
        %1750 = vmatpush2.msra.mxu0 0.0
        %1751 = vmatprep.subr.mxu0 0.0
        %1752 = vmatpush2.msra.mxu0 0.0
        %1753 = vmatprep.subr.mxu0 0.0
        %1754 = vmatpush2.msra.mxu0 0.0
        %1755 = vmatprep.subr.mxu0 0.0
        %1756 = vmatpush2.msra.mxu0 0.0
        %1757 = vmatprep.subr.mxu0 0.0
        %1758 = vmatpush2.msra.mxu0 0.0
        %1759 = vmatprep.mubr.f32.mxu0 0.0
        %1760 = vmatmul.mubr.f32.gmra.mxu0 %v1693
        %v1761 = vpop.f32.mrf.mxu0
        %v1762 = vadd.f32 %v1690, %v1761
        %v1763 = vpop.f32.mrf.mxu0
        %1764 = vdwg.mxu0
        %v1765 = vadd.f32 %v1762, %v1590
        %v1766 = vld [vmem:[%s3 + $0xa] sm:$0x1]
        %v1767 = vld [vmem:[%s3 + $0xb] sm:$0x1]
        %v1768 = vsel %vm382, %v1765, 0.0
        %1769 = vadd.xlane.f32.xlu0 %v1768
        %v1770 = vpop.xlane.xlu0 %1769
        %v1771 = vmul.f32 %v1770, %v386
        %v1772 = vsub.f32 %v1765, %v1771
        %v1773 = vmul.f32 %v1772, %v1772
        %v1774 = vsel %vm382, %v1773, 0.0
        %1775 = vadd.xlane.f32.xlu0 %v1774
        %v1776 = vpop.xlane.xlu0 %1775
        %v1777 = vmul.f32 %v1776, %v386
        %v1778 = vadd.f32 %v1777, 1e-12
        %v1779 = vrsqrt.pop %v1778
        %v1780 = vmul.f32 %v1772, %v1779
        %v1781 = vlaneseq
        %v1782 = vshrl.u32 %v1781, 7
        %v1783 = vsub.s32 0, %v1782
        %v1784 = vrot.slane %v1766, %v1783
        %v1785 = vmul.f32 %v1780, %v1784
        %v1786 = vlaneseq
        %v1787 = vshrl.u32 %v1786, 7
        %v1788 = vsub.s32 0, %v1787
        %v1789 = vrot.slane %v1767, %v1788
        %v1790 = vadd.f32 %v1785, %v1789
        %s1791 = scalar_lea.vmem %s4, 32
        %v1792 = vld [vmem:[%s1791] sm:$0xff]
        %v1793 = vld [vmem:[%s1791 + $0x8] sm:$0xff]
        %v1794 = vld [vmem:[%s1791 + $0x10] sm:$0xff]
        %v1795 = vld [vmem:[%s1791 + $0x18] sm:$0xff]
        %v1796 = vld [vmem:[%s3 + $0xc] sm:$0x1]
        %v1797 = vlaneseq
        %v1798 = vshrl.u32 %v1797, 7
        %v1799 = vsub.s32 0, %v1798
        %v1800 = vrot.slane %v1796, %v1799
        %v1802 = vsel %vm382, %v1790, 0
        %1804 = vmatprep.subr.mxu0 0.0
        %1805 = vmatpush1.msra.mxu0 0.0
        %1806 = vmatprep.subr.mxu0 0.0
        %1807 = vmatpush1.msra.mxu0 0.0
        %1808 = vmatprep.subr.mxu0 0.0
        %1809 = vmatpush1.msra.mxu0 0.0
        %1810 = vmatprep.subr.mxu0 0.0
        %1811 = vmatpush1.msra.mxu0 0.0
        %1812 = vmatprep.subr.mxu0 0.0
        %1813 = vmatpush1.msra.mxu0 0.0
        %1814 = vmatprep.subr.mxu0 0.0
        %1815 = vmatpush1.msra.mxu0 0.0
        %1816 = vmatprep.subr.mxu0 0.0
        %1817 = vmatpush1.msra.mxu0 0.0
        %1818 = vmatprep.subr.mxu0 0.0
        %1819 = vmatpush1.msra.mxu0 0.0
        %1820 = vmatprep.subr.mxu0 0.0
        %1821 = vmatpush1.msra.mxu0 0.0
        %1822 = vmatprep.subr.mxu0 0.0
        %1823 = vmatpush1.msra.mxu0 0.0
        %1824 = vmatprep.subr.mxu0 0.0
        %1825 = vmatpush1.msra.mxu0 0.0
        %1826 = vmatprep.subr.mxu0 0.0
        %1827 = vmatpush1.msra.mxu0 0.0
        %1828 = vmatprep.subr.mxu0 0.0
        %1829 = vmatpush1.msra.mxu0 %v1795
        %1830 = vmatprep.subr.mxu0 0.0
        %1831 = vmatpush1.msra.mxu0 %v1794
        %1832 = vmatprep.subr.mxu0 0.0
        %1833 = vmatpush1.msra.mxu0 %v1793
        %1834 = vmatprep.subr.mxu0 0.0
        %1835 = vmatpush1.msra.mxu0 %v1792
        %1836 = vmatprep.subr.mxu0 0.0
        %1837 = vmatpush2.msra.mxu0 0.0
        %1838 = vmatprep.subr.mxu0 0.0
        %1839 = vmatpush2.msra.mxu0 0.0
        %1840 = vmatprep.subr.mxu0 0.0
        %1841 = vmatpush2.msra.mxu0 0.0
        %1842 = vmatprep.subr.mxu0 0.0
        %1843 = vmatpush2.msra.mxu0 0.0
        %1844 = vmatprep.subr.mxu0 0.0
        %1845 = vmatpush2.msra.mxu0 0.0
        %1846 = vmatprep.subr.mxu0 0.0
        %1847 = vmatpush2.msra.mxu0 0.0
        %1848 = vmatprep.subr.mxu0 0.0
        %1849 = vmatpush2.msra.mxu0 0.0
        %1850 = vmatprep.subr.mxu0 0.0
        %1851 = vmatpush2.msra.mxu0 0.0
        %1852 = vmatprep.subr.mxu0 0.0
        %1853 = vmatpush2.msra.mxu0 0.0
        %1854 = vmatprep.subr.mxu0 0.0
        %1855 = vmatpush2.msra.mxu0 0.0
        %1856 = vmatprep.subr.mxu0 0.0
        %1857 = vmatpush2.msra.mxu0 0.0
        %1858 = vmatprep.subr.mxu0 0.0
        %1859 = vmatpush2.msra.mxu0 0.0
        %1860 = vmatprep.subr.mxu0 0.0
        %1861 = vmatpush2.msra.mxu0 0.0
        %1862 = vmatprep.subr.mxu0 0.0
        %1863 = vmatpush2.msra.mxu0 0.0
        %1864 = vmatprep.subr.mxu0 0.0
        %1865 = vmatpush2.msra.mxu0 0.0
        %1866 = vmatprep.subr.mxu0 0.0
        %1867 = vmatpush2.msra.mxu0 0.0
        %1868 = vmatprep.mubr.f32.mxu0 0.0
        %1869 = vmatmul.mubr.f32.gmra.mxu0 %v1802
        %v1870 = vpop.f32.mrf.mxu0
        %v1871 = vadd.f32 %v1800, %v1870
        %v1872 = vpop.f32.mrf.mxu0
        %1873 = vdwg.mxu0
        %s1874 = scalar_lea.vmem %s5, 32
        %v1875 = vld [vmem:[%s1874] sm:$0xff]
        %v1876 = vld [vmem:[%s1874 + $0x8] sm:$0xff]
        %v1877 = vld [vmem:[%s1874 + $0x10] sm:$0xff]
        %v1878 = vld [vmem:[%s1874 + $0x18] sm:$0xff]
        %1880 = vset.pattern.permute.xlu0 32
        %1881 = vperm.xlu0 %1880, %v1875
        %v1882 = vpop.permute.xlu0 %1881
        %1885 = vset.pattern.permute.xlu0 32
        %1886 = vperm.xlu0 %1885, %v1876
        %v1887 = vpop.permute.xlu0 %1886
        %1890 = vset.pattern.permute.xlu0 32
        %1891 = vperm.xlu0 %1890, %v1877
        %v1892 = vpop.permute.xlu0 %1891
        %1895 = vset.pattern.permute.xlu0 32
        %1896 = vperm.xlu0 %1895, %v1878
        %v1897 = vpop.permute.xlu0 %1896
        %v1899 = vsel %vm382, %v1875, 0
        %v1901 = vsel %vm382, %v1876, 0
        %v1903 = vsel %vm382, %v1877, 0
        %v1905 = vsel %vm382, %v1878, 0
        %1907 = vmatprep.subr.mxu0 0.0
        %1908 = vmatpush1.xpose.msra.mxu0 0.0
        %1909 = vmatprep.subr.mxu0 0.0
        %1910 = vmatpush1.xpose.msra.mxu0 0.0
        %1911 = vmatprep.subr.mxu0 0.0
        %1912 = vmatpush1.xpose.msra.mxu0 0.0
        %1913 = vmatprep.subr.mxu0 0.0
        %1914 = vmatpush1.xpose.msra.mxu0 0.0
        %1915 = vmatprep.subr.mxu0 0.0
        %1916 = vmatpush1.xpose.msra.mxu0 0.0
        %1917 = vmatprep.subr.mxu0 0.0
        %1918 = vmatpush1.xpose.msra.mxu0 0.0
        %1919 = vmatprep.subr.mxu0 0.0
        %1920 = vmatpush1.xpose.msra.mxu0 0.0
        %1921 = vmatprep.subr.mxu0 0.0
        %1922 = vmatpush1.xpose.msra.mxu0 0.0
        %1923 = vmatprep.subr.mxu0 0.0
        %1924 = vmatpush1.xpose.msra.mxu0 0.0
        %1925 = vmatprep.subr.mxu0 0.0
        %1926 = vmatpush1.xpose.msra.mxu0 0.0
        %1927 = vmatprep.subr.mxu0 0.0
        %1928 = vmatpush1.xpose.msra.mxu0 0.0
        %1929 = vmatprep.subr.mxu0 0.0
        %1930 = vmatpush1.xpose.msra.mxu0 0.0
        %1931 = vmatprep.subr.mxu0 0.0
        %1932 = vmatpush1.xpose.msra.mxu0 0.0
        %1933 = vmatprep.subr.mxu0 0.0
        %1934 = vmatpush1.xpose.msra.mxu0 0.0
        %1935 = vmatprep.subr.mxu0 0.0
        %1936 = vmatpush1.xpose.msra.mxu0 0.0
        %1937 = vmatprep.subr.mxu0 0.0
        %1938 = vmatpush1.xpose.msra.mxu0 %v1802
        %1939 = vmatprep.subr.mxu0 0.0
        %1940 = vmatpush2.xpose.msra.mxu0 0.0
        %1941 = vmatprep.subr.mxu0 0.0
        %1942 = vmatpush2.xpose.msra.mxu0 0.0
        %1943 = vmatprep.subr.mxu0 0.0
        %1944 = vmatpush2.xpose.msra.mxu0 0.0
        %1945 = vmatprep.subr.mxu0 0.0
        %1946 = vmatpush2.xpose.msra.mxu0 0.0
        %1947 = vmatprep.subr.mxu0 0.0
        %1948 = vmatpush2.xpose.msra.mxu0 0.0
        %1949 = vmatprep.subr.mxu0 0.0
        %1950 = vmatpush2.xpose.msra.mxu0 0.0
        %1951 = vmatprep.subr.mxu0 0.0
        %1952 = vmatpush2.xpose.msra.mxu0 0.0
        %1953 = vmatprep.subr.mxu0 0.0
        %1954 = vmatpush2.xpose.msra.mxu0 0.0
        %1955 = vmatprep.subr.mxu0 0.0
        %1956 = vmatpush2.xpose.msra.mxu0 0.0
        %1957 = vmatprep.subr.mxu0 0.0
        %1958 = vmatpush2.xpose.msra.mxu0 0.0
        %1959 = vmatprep.subr.mxu0 0.0
        %1960 = vmatpush2.xpose.msra.mxu0 0.0
        %1961 = vmatprep.subr.mxu0 0.0
        %1962 = vmatpush2.xpose.msra.mxu0 0.0
        %1963 = vmatprep.subr.mxu0 0.0
        %1964 = vmatpush2.xpose.msra.mxu0 0.0
        %1965 = vmatprep.subr.mxu0 0.0
        %1966 = vmatpush2.xpose.msra.mxu0 0.0
        %1967 = vmatprep.subr.mxu0 0.0
        %1968 = vmatpush2.xpose.msra.mxu0 0.0
        %1969 = vmatprep.subr.mxu0 0.0
        %1970 = vmatpush2.xpose.msra.mxu0 0.0
        %1971 = vmatprep.mubr.f32.mxu0 0.0
        %1972 = vmatmul.mubr.f32.gmra.mxu0 %v1899
        %v1973 = vpop.f32.mrf.mxu0
        %v1974 = vadd.f32 %v1882, %v1973
        %v1975 = vpop.f32.mrf.mxu0
        %1976 = vmatprep.mubr.f32.mxu0 0.0
        %1977 = vmatmul.mubr.f32.gmra.mxu0 %v1901
        %v1978 = vpop.f32.mrf.mxu0
        %v1979 = vadd.f32 %v1887, %v1978
        %v1980 = vpop.f32.mrf.mxu0
        %1981 = vmatprep.mubr.f32.mxu0 0.0
        %1982 = vmatmul.mubr.f32.gmra.mxu0 %v1903
        %v1983 = vpop.f32.mrf.mxu0
        %v1984 = vadd.f32 %v1892, %v1983
        %v1985 = vpop.f32.mrf.mxu0
        %1986 = vmatprep.mubr.f32.mxu0 0.0
        %1987 = vmatmul.mubr.f32.gmra.mxu0 %v1905
        %v1988 = vpop.f32.mrf.mxu0
        %v1989 = vadd.f32 %v1897, %v1988
        %v1990 = vpop.f32.mrf.mxu0
        %1991 = vdwg.mxu0
        %v1993 = vsel %vm606, %v1871, 0
        %1995 = vmatprep.subr.mxu0 0.0
        %1996 = vmatpush1.msra.mxu0 0.0
        %1997 = vmatprep.subr.mxu0 0.0
        %1998 = vmatpush1.msra.mxu0 0.0
        %1999 = vmatprep.subr.mxu0 0.0
        %2000 = vmatpush1.msra.mxu0 0.0
        %2001 = vmatprep.subr.mxu0 0.0
        %2002 = vmatpush1.msra.mxu0 0.0
        %2003 = vmatprep.subr.mxu0 0.0
        %2004 = vmatpush1.msra.mxu0 0.0
        %2005 = vmatprep.subr.mxu0 0.0
        %2006 = vmatpush1.msra.mxu0 0.0
        %2007 = vmatprep.subr.mxu0 0.0
        %2008 = vmatpush1.msra.mxu0 0.0
        %2009 = vmatprep.subr.mxu0 0.0
        %2010 = vmatpush1.msra.mxu0 0.0
        %2011 = vmatprep.subr.mxu0 0.0
        %2012 = vmatpush1.msra.mxu0 0.0
        %2013 = vmatprep.subr.mxu0 0.0
        %2014 = vmatpush1.msra.mxu0 0.0
        %2015 = vmatprep.subr.mxu0 0.0
        %2016 = vmatpush1.msra.mxu0 0.0
        %2017 = vmatprep.subr.mxu0 0.0
        %2018 = vmatpush1.msra.mxu0 0.0
        %2019 = vmatprep.subr.mxu0 0.0
        %2020 = vmatpush1.msra.mxu0 0.0
        %2021 = vmatprep.subr.mxu0 0.0
        %2022 = vmatpush1.msra.mxu0 0.0
        %2023 = vmatprep.subr.mxu0 0.0
        %2024 = vmatpush1.msra.mxu0 0.0
        %2025 = vmatprep.subr.mxu0 0.0
        %2026 = vmatpush1.msra.mxu0 %v1974
        %2027 = vmatprep.subr.mxu0 0.0
        %2028 = vmatpush2.msra.mxu0 0.0
        %2029 = vmatprep.subr.mxu0 0.0
        %2030 = vmatpush2.msra.mxu0 0.0
        %2031 = vmatprep.subr.mxu0 0.0
        %2032 = vmatpush2.msra.mxu0 0.0
        %2033 = vmatprep.subr.mxu0 0.0
        %2034 = vmatpush2.msra.mxu0 0.0
        %2035 = vmatprep.subr.mxu0 0.0
        %2036 = vmatpush2.msra.mxu0 0.0
        %2037 = vmatprep.subr.mxu0 0.0
        %2038 = vmatpush2.msra.mxu0 0.0
        %2039 = vmatprep.subr.mxu0 0.0
        %2040 = vmatpush2.msra.mxu0 0.0
        %2041 = vmatprep.subr.mxu0 0.0
        %2042 = vmatpush2.msra.mxu0 0.0
        %2043 = vmatprep.subr.mxu0 0.0
        %2044 = vmatpush2.msra.mxu0 0.0
        %2045 = vmatprep.subr.mxu0 0.0
        %2046 = vmatpush2.msra.mxu0 0.0
        %2047 = vmatprep.subr.mxu0 0.0
        %2048 = vmatpush2.msra.mxu0 0.0
        %2049 = vmatprep.subr.mxu0 0.0
        %2050 = vmatpush2.msra.mxu0 0.0
        %2051 = vmatprep.subr.mxu0 0.0
        %2052 = vmatpush2.msra.mxu0 0.0
        %2053 = vmatprep.subr.mxu0 0.0
        %2054 = vmatpush2.msra.mxu0 0.0
        %2055 = vmatprep.subr.mxu0 0.0
        %2056 = vmatpush2.msra.mxu0 0.0
        %2057 = vmatprep.subr.mxu0 0.0
        %2058 = vmatpush2.msra.mxu0 0.0
        %2059 = vmatprep.mubr.f32.mxu0 0.0
        %2060 = vmatmul.mubr.f32.gmra.mxu0 %v1993
        %v2061 = vpop.f32.mrf.mxu0
        %v2062 = vadd.f32 0.0, %v2061
        %v2063 = vpop.f32.mrf.mxu0
        %2064 = vdwg.mxu0
        %v2065 = vmul.f32 %v2062, 0.35355338
        %v2066 = vadd.f32 %v2065, %v378
        %v2067 = vsel %vm606, %v2066, -inf
        %2068 = vmax.xlane.f32.xlu0 %v2067
        %v2069 = vpop.xlane.xlu0 %2068
        %v2070 = vsub.f32 %v2066, %v2069
        %v2071 = vmul.f32 %v2070, 1.442695
        %v2072 = vpow.pop %v2071
        %v2073 = vsel %vm606, %v2072, 0.0
        %2074 = vadd.xlane.f32.xlu0 %v2073
        %v2075 = vpop.xlane.xlu0 %2074
        %v2076 = vrcp.pop %v2075
        %v2077 = vmul.f32 %v2072, %v2076
        %2078 = vrot.lane.b32.xlu0 %v1871, 96
        %v2079 = vpop.permute.xlu0 %2078
        %v2082 = vsel %vm606, %v2077, 0
        %2084 = vmatprep.subr.mxu0 0.0
        %2085 = vmatpush1.msra.mxu0 0.0
        %2086 = vmatprep.subr.mxu0 0.0
        %2087 = vmatpush1.msra.mxu0 0.0
        %2088 = vmatprep.subr.mxu0 0.0
        %2089 = vmatpush1.msra.mxu0 0.0
        %2090 = vmatprep.subr.mxu0 0.0
        %2091 = vmatpush1.msra.mxu0 0.0
        %2092 = vmatprep.subr.mxu0 0.0
        %2093 = vmatpush1.msra.mxu0 0.0
        %2094 = vmatprep.subr.mxu0 0.0
        %2095 = vmatpush1.msra.mxu0 0.0
        %2096 = vmatprep.subr.mxu0 0.0
        %2097 = vmatpush1.msra.mxu0 0.0
        %2098 = vmatprep.subr.mxu0 0.0
        %2099 = vmatpush1.msra.mxu0 0.0
        %2100 = vmatprep.subr.mxu0 0.0
        %2101 = vmatpush1.msra.mxu0 0.0
        %2102 = vmatprep.subr.mxu0 0.0
        %2103 = vmatpush1.msra.mxu0 0.0
        %2104 = vmatprep.subr.mxu0 0.0
        %2105 = vmatpush1.msra.mxu0 0.0
        %2106 = vmatprep.subr.mxu0 0.0
        %2107 = vmatpush1.msra.mxu0 0.0
        %2108 = vmatprep.subr.mxu0 0.0
        %2109 = vmatpush1.msra.mxu0 0.0
        %2110 = vmatprep.subr.mxu0 0.0
        %2111 = vmatpush1.msra.mxu0 0.0
        %2112 = vmatprep.subr.mxu0 0.0
        %2113 = vmatpush1.msra.mxu0 0.0
        %2114 = vmatprep.subr.mxu0 0.0
        %2115 = vmatpush1.msra.mxu0 %v2079
        %2116 = vmatprep.subr.mxu0 0.0
        %2117 = vmatpush2.msra.mxu0 0.0
        %2118 = vmatprep.subr.mxu0 0.0
        %2119 = vmatpush2.msra.mxu0 0.0
        %2120 = vmatprep.subr.mxu0 0.0
        %2121 = vmatpush2.msra.mxu0 0.0
        %2122 = vmatprep.subr.mxu0 0.0
        %2123 = vmatpush2.msra.mxu0 0.0
        %2124 = vmatprep.subr.mxu0 0.0
        %2125 = vmatpush2.msra.mxu0 0.0
        %2126 = vmatprep.subr.mxu0 0.0
        %2127 = vmatpush2.msra.mxu0 0.0
        %2128 = vmatprep.subr.mxu0 0.0
        %2129 = vmatpush2.msra.mxu0 0.0
        %2130 = vmatprep.subr.mxu0 0.0
        %2131 = vmatpush2.msra.mxu0 0.0
        %2132 = vmatprep.subr.mxu0 0.0
        %2133 = vmatpush2.msra.mxu0 0.0
        %2134 = vmatprep.subr.mxu0 0.0
        %2135 = vmatpush2.msra.mxu0 0.0
        %2136 = vmatprep.subr.mxu0 0.0
        %2137 = vmatpush2.msra.mxu0 0.0
        %2138 = vmatprep.subr.mxu0 0.0
        %2139 = vmatpush2.msra.mxu0 0.0
        %2140 = vmatprep.subr.mxu0 0.0
        %2141 = vmatpush2.msra.mxu0 0.0
        %2142 = vmatprep.subr.mxu0 0.0
        %2143 = vmatpush2.msra.mxu0 0.0
        %2144 = vmatprep.subr.mxu0 0.0
        %2145 = vmatpush2.msra.mxu0 0.0
        %2146 = vmatprep.subr.mxu0 0.0
        %2147 = vmatpush2.msra.mxu0 0.0
        %2148 = vmatprep.mubr.f32.mxu0 0.0
        %2149 = vmatmul.mubr.f32.gmra.mxu0 %v2082
        %v2150 = vpop.f32.mrf.mxu0
        %v2151 = vadd.f32 0.0, %v2150
        %v2152 = vpop.f32.mrf.mxu0
        %2153 = vdwg.mxu0
        %s2154 = scalar_lea.vmem %s6, 32
        %v2155 = vld [vmem:[%s2154] sm:$0xff]
        %2156 = vrot.lane.b32.xlu0 %v1871, 120
        %v2157 = vpop.permute.xlu0 %2156
        %v2158 = vsel %vm606, %v2157, 0
        %2160 = vmatprep.subr.mxu0 0.0
        %2161 = vmatpush1.msra.mxu0 0.0
        %2162 = vmatprep.subr.mxu0 0.0
        %2163 = vmatpush1.msra.mxu0 0.0
        %2164 = vmatprep.subr.mxu0 0.0
        %2165 = vmatpush1.msra.mxu0 0.0
        %2166 = vmatprep.subr.mxu0 0.0
        %2167 = vmatpush1.msra.mxu0 0.0
        %2168 = vmatprep.subr.mxu0 0.0
        %2169 = vmatpush1.msra.mxu0 0.0
        %2170 = vmatprep.subr.mxu0 0.0
        %2171 = vmatpush1.msra.mxu0 0.0
        %2172 = vmatprep.subr.mxu0 0.0
        %2173 = vmatpush1.msra.mxu0 0.0
        %2174 = vmatprep.subr.mxu0 0.0
        %2175 = vmatpush1.msra.mxu0 0.0
        %2176 = vmatprep.subr.mxu0 0.0
        %2177 = vmatpush1.msra.mxu0 0.0
        %2178 = vmatprep.subr.mxu0 0.0
        %2179 = vmatpush1.msra.mxu0 0.0
        %2180 = vmatprep.subr.mxu0 0.0
        %2181 = vmatpush1.msra.mxu0 0.0
        %2182 = vmatprep.subr.mxu0 0.0
        %2183 = vmatpush1.msra.mxu0 0.0
        %2184 = vmatprep.subr.mxu0 0.0
        %2185 = vmatpush1.msra.mxu0 0.0
        %2186 = vmatprep.subr.mxu0 0.0
        %2187 = vmatpush1.msra.mxu0 0.0
        %2188 = vmatprep.subr.mxu0 0.0
        %2189 = vmatpush1.msra.mxu0 0.0
        %2190 = vmatprep.subr.mxu0 0.0
        %2191 = vmatpush1.msra.mxu0 %v1979
        %2192 = vmatprep.subr.mxu0 0.0
        %2193 = vmatpush2.msra.mxu0 0.0
        %2194 = vmatprep.subr.mxu0 0.0
        %2195 = vmatpush2.msra.mxu0 0.0
        %2196 = vmatprep.subr.mxu0 0.0
        %2197 = vmatpush2.msra.mxu0 0.0
        %2198 = vmatprep.subr.mxu0 0.0
        %2199 = vmatpush2.msra.mxu0 0.0
        %2200 = vmatprep.subr.mxu0 0.0
        %2201 = vmatpush2.msra.mxu0 0.0
        %2202 = vmatprep.subr.mxu0 0.0
        %2203 = vmatpush2.msra.mxu0 0.0
        %2204 = vmatprep.subr.mxu0 0.0
        %2205 = vmatpush2.msra.mxu0 0.0
        %2206 = vmatprep.subr.mxu0 0.0
        %2207 = vmatpush2.msra.mxu0 0.0
        %2208 = vmatprep.subr.mxu0 0.0
        %2209 = vmatpush2.msra.mxu0 0.0
        %2210 = vmatprep.subr.mxu0 0.0
        %2211 = vmatpush2.msra.mxu0 0.0
        %2212 = vmatprep.subr.mxu0 0.0
        %2213 = vmatpush2.msra.mxu0 0.0
        %2214 = vmatprep.subr.mxu0 0.0
        %2215 = vmatpush2.msra.mxu0 0.0
        %2216 = vmatprep.subr.mxu0 0.0
        %2217 = vmatpush2.msra.mxu0 0.0
        %2218 = vmatprep.subr.mxu0 0.0
        %2219 = vmatpush2.msra.mxu0 0.0
        %2220 = vmatprep.subr.mxu0 0.0
        %2221 = vmatpush2.msra.mxu0 0.0
        %2222 = vmatprep.subr.mxu0 0.0
        %2223 = vmatpush2.msra.mxu0 0.0
        %2224 = vmatprep.mubr.f32.mxu0 0.0
        %2225 = vmatmul.mubr.f32.gmra.mxu0 %v2158
        %v2226 = vpop.f32.mrf.mxu0
        %v2227 = vadd.f32 0.0, %v2226
        %v2228 = vpop.f32.mrf.mxu0
        %2229 = vdwg.mxu0
        %v2230 = vmul.f32 %v2227, 0.35355338
        %v2231 = vadd.f32 %v2230, %v378
        %v2232 = vsel %vm606, %v2231, -inf
        %2233 = vmax.xlane.f32.xlu0 %v2232
        %v2234 = vpop.xlane.xlu0 %2233
        %v2235 = vsub.f32 %v2231, %v2234
        %v2236 = vmul.f32 %v2235, 1.442695
        %v2237 = vpow.pop %v2236
        %v2238 = vsel %vm606, %v2237, 0.0
        %2239 = vadd.xlane.f32.xlu0 %v2238
        %v2240 = vpop.xlane.xlu0 %2239
        %v2241 = vrcp.pop %v2240
        %v2242 = vmul.f32 %v2237, %v2241
        %2243 = vrot.lane.b32.xlu0 %v1871, 88
        %v2244 = vpop.permute.xlu0 %2243
        %v2247 = vsel %vm606, %v2242, 0
        %2249 = vmatprep.subr.mxu0 0.0
        %2250 = vmatpush1.msra.mxu0 0.0
        %2251 = vmatprep.subr.mxu0 0.0
        %2252 = vmatpush1.msra.mxu0 0.0
        %2253 = vmatprep.subr.mxu0 0.0
        %2254 = vmatpush1.msra.mxu0 0.0
        %2255 = vmatprep.subr.mxu0 0.0
        %2256 = vmatpush1.msra.mxu0 0.0
        %2257 = vmatprep.subr.mxu0 0.0
        %2258 = vmatpush1.msra.mxu0 0.0
        %2259 = vmatprep.subr.mxu0 0.0
        %2260 = vmatpush1.msra.mxu0 0.0
        %2261 = vmatprep.subr.mxu0 0.0
        %2262 = vmatpush1.msra.mxu0 0.0
        %2263 = vmatprep.subr.mxu0 0.0
        %2264 = vmatpush1.msra.mxu0 0.0
        %2265 = vmatprep.subr.mxu0 0.0
        %2266 = vmatpush1.msra.mxu0 0.0
        %2267 = vmatprep.subr.mxu0 0.0
        %2268 = vmatpush1.msra.mxu0 0.0
        %2269 = vmatprep.subr.mxu0 0.0
        %2270 = vmatpush1.msra.mxu0 0.0
        %2271 = vmatprep.subr.mxu0 0.0
        %2272 = vmatpush1.msra.mxu0 0.0
        %2273 = vmatprep.subr.mxu0 0.0
        %2274 = vmatpush1.msra.mxu0 0.0
        %2275 = vmatprep.subr.mxu0 0.0
        %2276 = vmatpush1.msra.mxu0 0.0
        %2277 = vmatprep.subr.mxu0 0.0
        %2278 = vmatpush1.msra.mxu0 0.0
        %2279 = vmatprep.subr.mxu0 0.0
        %2280 = vmatpush1.msra.mxu0 %v2244
        %2281 = vmatprep.subr.mxu0 0.0
        %2282 = vmatpush2.msra.mxu0 0.0
        %2283 = vmatprep.subr.mxu0 0.0
        %2284 = vmatpush2.msra.mxu0 0.0
        %2285 = vmatprep.subr.mxu0 0.0
        %2286 = vmatpush2.msra.mxu0 0.0
        %2287 = vmatprep.subr.mxu0 0.0
        %2288 = vmatpush2.msra.mxu0 0.0
        %2289 = vmatprep.subr.mxu0 0.0
        %2290 = vmatpush2.msra.mxu0 0.0
        %2291 = vmatprep.subr.mxu0 0.0
        %2292 = vmatpush2.msra.mxu0 0.0
        %2293 = vmatprep.subr.mxu0 0.0
        %2294 = vmatpush2.msra.mxu0 0.0
        %2295 = vmatprep.subr.mxu0 0.0
        %2296 = vmatpush2.msra.mxu0 0.0
        %2297 = vmatprep.subr.mxu0 0.0
        %2298 = vmatpush2.msra.mxu0 0.0
        %2299 = vmatprep.subr.mxu0 0.0
        %2300 = vmatpush2.msra.mxu0 0.0
        %2301 = vmatprep.subr.mxu0 0.0
        %2302 = vmatpush2.msra.mxu0 0.0
        %2303 = vmatprep.subr.mxu0 0.0
        %2304 = vmatpush2.msra.mxu0 0.0
        %2305 = vmatprep.subr.mxu0 0.0
        %2306 = vmatpush2.msra.mxu0 0.0
        %2307 = vmatprep.subr.mxu0 0.0
        %2308 = vmatpush2.msra.mxu0 0.0
        %2309 = vmatprep.subr.mxu0 0.0
        %2310 = vmatpush2.msra.mxu0 0.0
        %2311 = vmatprep.subr.mxu0 0.0
        %2312 = vmatpush2.msra.mxu0 0.0
        %2313 = vmatprep.mubr.f32.mxu0 0.0
        %2314 = vmatmul.mubr.f32.gmra.mxu0 %v2247
        %v2315 = vpop.f32.mrf.mxu0
        %v2316 = vadd.f32 0.0, %v2315
        %v2317 = vpop.f32.mrf.mxu0
        %2318 = vdwg.mxu0
        %s2319 = scalar_lea.vmem %s6, 40
        %v2320 = vld [vmem:[%s2319] sm:$0xff]
        %v2322 = vsel %vm606, %v2316, 0
        %2324 = vmatprep.subr.mxu0 0.0
        %2325 = vmatpush1.msra.mxu0 0.0
        %2326 = vmatprep.subr.mxu0 0.0
        %2327 = vmatpush1.msra.mxu0 0.0
        %2328 = vmatprep.subr.mxu0 0.0
        %2329 = vmatpush1.msra.mxu0 0.0
        %2330 = vmatprep.subr.mxu0 0.0
        %2331 = vmatpush1.msra.mxu0 0.0
        %2332 = vmatprep.subr.mxu0 0.0
        %2333 = vmatpush1.msra.mxu0 0.0
        %2334 = vmatprep.subr.mxu0 0.0
        %2335 = vmatpush1.msra.mxu0 0.0
        %2336 = vmatprep.subr.mxu0 0.0
        %2337 = vmatpush1.msra.mxu0 0.0
        %2338 = vmatprep.subr.mxu0 0.0
        %2339 = vmatpush1.msra.mxu0 0.0
        %2340 = vmatprep.subr.mxu0 0.0
        %2341 = vmatpush1.msra.mxu0 0.0
        %2342 = vmatprep.subr.mxu0 0.0
        %2343 = vmatpush1.msra.mxu0 0.0
        %2344 = vmatprep.subr.mxu0 0.0
        %2345 = vmatpush1.msra.mxu0 0.0
        %2346 = vmatprep.subr.mxu0 0.0
        %2347 = vmatpush1.msra.mxu0 0.0
        %2348 = vmatprep.subr.mxu0 0.0
        %2349 = vmatpush1.msra.mxu0 0.0
        %2350 = vmatprep.subr.mxu0 0.0
        %2351 = vmatpush1.msra.mxu0 0.0
        %2352 = vmatprep.subr.mxu0 0.0
        %2353 = vmatpush1.msra.mxu0 0.0
        %2354 = vmatprep.subr.mxu0 0.0
        %2355 = vmatpush1.msra.mxu0 %v2320
        %2356 = vmatprep.subr.mxu0 0.0
        %2357 = vmatpush2.msra.mxu0 0.0
        %2358 = vmatprep.subr.mxu0 0.0
        %2359 = vmatpush2.msra.mxu0 0.0
        %2360 = vmatprep.subr.mxu0 0.0
        %2361 = vmatpush2.msra.mxu0 0.0
        %2362 = vmatprep.subr.mxu0 0.0
        %2363 = vmatpush2.msra.mxu0 0.0
        %2364 = vmatprep.subr.mxu0 0.0
        %2365 = vmatpush2.msra.mxu0 0.0
        %2366 = vmatprep.subr.mxu0 0.0
        %2367 = vmatpush2.msra.mxu0 0.0
        %2368 = vmatprep.subr.mxu0 0.0
        %2369 = vmatpush2.msra.mxu0 0.0
        %2370 = vmatprep.subr.mxu0 0.0
        %2371 = vmatpush2.msra.mxu0 0.0
        %2372 = vmatprep.subr.mxu0 0.0
        %2373 = vmatpush2.msra.mxu0 0.0
        %2374 = vmatprep.subr.mxu0 0.0
        %2375 = vmatpush2.msra.mxu0 0.0
        %2376 = vmatprep.subr.mxu0 0.0
        %2377 = vmatpush2.msra.mxu0 0.0
        %2378 = vmatprep.subr.mxu0 0.0
        %2379 = vmatpush2.msra.mxu0 0.0
        %2380 = vmatprep.subr.mxu0 0.0
        %2381 = vmatpush2.msra.mxu0 0.0
        %2382 = vmatprep.subr.mxu0 0.0
        %2383 = vmatpush2.msra.mxu0 0.0
        %2384 = vmatprep.subr.mxu0 0.0
        %2385 = vmatpush2.msra.mxu0 0.0
        %2386 = vmatprep.subr.mxu0 0.0
        %2387 = vmatpush2.msra.mxu0 0.0
        %2388 = vmatprep.mubr.f32.mxu0 0.0
        %2389 = vmatmul.mubr.f32.gmra.mxu0 %v2322
        %v2390 = vpop.f32.mrf.mxu0
        %v2391 = vadd.f32 0.0, %v2390
        %v2392 = vpop.f32.mrf.mxu0
        %2393 = vdwg.mxu0
        %v2395 = vsel %vm606, %v2151, 0
        %2397 = vmatprep.subr.mxu0 0.0
        %2398 = vmatpush1.msra.mxu0 0.0
        %2399 = vmatprep.subr.mxu0 0.0
        %2400 = vmatpush1.msra.mxu0 0.0
        %2401 = vmatprep.subr.mxu0 0.0
        %2402 = vmatpush1.msra.mxu0 0.0
        %2403 = vmatprep.subr.mxu0 0.0
        %2404 = vmatpush1.msra.mxu0 0.0
        %2405 = vmatprep.subr.mxu0 0.0
        %2406 = vmatpush1.msra.mxu0 0.0
        %2407 = vmatprep.subr.mxu0 0.0
        %2408 = vmatpush1.msra.mxu0 0.0
        %2409 = vmatprep.subr.mxu0 0.0
        %2410 = vmatpush1.msra.mxu0 0.0
        %2411 = vmatprep.subr.mxu0 0.0
        %2412 = vmatpush1.msra.mxu0 0.0
        %2413 = vmatprep.subr.mxu0 0.0
        %2414 = vmatpush1.msra.mxu0 0.0
        %2415 = vmatprep.subr.mxu0 0.0
        %2416 = vmatpush1.msra.mxu0 0.0
        %2417 = vmatprep.subr.mxu0 0.0
        %2418 = vmatpush1.msra.mxu0 0.0
        %2419 = vmatprep.subr.mxu0 0.0
        %2420 = vmatpush1.msra.mxu0 0.0
        %2421 = vmatprep.subr.mxu0 0.0
        %2422 = vmatpush1.msra.mxu0 0.0
        %2423 = vmatprep.subr.mxu0 0.0
        %2424 = vmatpush1.msra.mxu0 0.0
        %2425 = vmatprep.subr.mxu0 0.0
        %2426 = vmatpush1.msra.mxu0 0.0
        %2427 = vmatprep.subr.mxu0 0.0
        %2428 = vmatpush1.msra.mxu0 %v2155
        %2429 = vmatprep.subr.mxu0 0.0
        %2430 = vmatpush2.msra.mxu0 0.0
        %2431 = vmatprep.subr.mxu0 0.0
        %2432 = vmatpush2.msra.mxu0 0.0
        %2433 = vmatprep.subr.mxu0 0.0
        %2434 = vmatpush2.msra.mxu0 0.0
        %2435 = vmatprep.subr.mxu0 0.0
        %2436 = vmatpush2.msra.mxu0 0.0
        %2437 = vmatprep.subr.mxu0 0.0
        %2438 = vmatpush2.msra.mxu0 0.0
        %2439 = vmatprep.subr.mxu0 0.0
        %2440 = vmatpush2.msra.mxu0 0.0
        %2441 = vmatprep.subr.mxu0 0.0
        %2442 = vmatpush2.msra.mxu0 0.0
        %2443 = vmatprep.subr.mxu0 0.0
        %2444 = vmatpush2.msra.mxu0 0.0
        %2445 = vmatprep.subr.mxu0 0.0
        %2446 = vmatpush2.msra.mxu0 0.0
        %2447 = vmatprep.subr.mxu0 0.0
        %2448 = vmatpush2.msra.mxu0 0.0
        %2449 = vmatprep.subr.mxu0 0.0
        %2450 = vmatpush2.msra.mxu0 0.0
        %2451 = vmatprep.subr.mxu0 0.0
        %2452 = vmatpush2.msra.mxu0 0.0
        %2453 = vmatprep.subr.mxu0 0.0
        %2454 = vmatpush2.msra.mxu0 0.0
        %2455 = vmatprep.subr.mxu0 0.0
        %2456 = vmatpush2.msra.mxu0 0.0
        %2457 = vmatprep.subr.mxu0 0.0
        %2458 = vmatpush2.msra.mxu0 0.0
        %2459 = vmatprep.subr.mxu0 0.0
        %2460 = vmatpush2.msra.mxu0 0.0
        %2461 = vmatprep.mubr.f32.mxu0 0.0
        %2462 = vmatmul.mubr.f32.gmra.mxu0 %v2395
        %v2463 = vpop.f32.mrf.mxu0
        %v2464 = vadd.f32 %v2391, %v2463
        %v2465 = vpop.f32.mrf.mxu0
        %2466 = vdwg.mxu0
        %2467 = vrot.lane.b32.xlu0 %v1871, 112
        %v2468 = vpop.permute.xlu0 %2467
        %v2469 = vsel %vm606, %v2468, 0
        %2471 = vmatprep.subr.mxu0 0.0
        %2472 = vmatpush1.msra.mxu0 0.0
        %2473 = vmatprep.subr.mxu0 0.0
        %2474 = vmatpush1.msra.mxu0 0.0
        %2475 = vmatprep.subr.mxu0 0.0
        %2476 = vmatpush1.msra.mxu0 0.0
        %2477 = vmatprep.subr.mxu0 0.0
        %2478 = vmatpush1.msra.mxu0 0.0
        %2479 = vmatprep.subr.mxu0 0.0
        %2480 = vmatpush1.msra.mxu0 0.0
        %2481 = vmatprep.subr.mxu0 0.0
        %2482 = vmatpush1.msra.mxu0 0.0
        %2483 = vmatprep.subr.mxu0 0.0
        %2484 = vmatpush1.msra.mxu0 0.0
        %2485 = vmatprep.subr.mxu0 0.0
        %2486 = vmatpush1.msra.mxu0 0.0
        %2487 = vmatprep.subr.mxu0 0.0
        %2488 = vmatpush1.msra.mxu0 0.0
        %2489 = vmatprep.subr.mxu0 0.0
        %2490 = vmatpush1.msra.mxu0 0.0
        %2491 = vmatprep.subr.mxu0 0.0
        %2492 = vmatpush1.msra.mxu0 0.0
        %2493 = vmatprep.subr.mxu0 0.0
        %2494 = vmatpush1.msra.mxu0 0.0
        %2495 = vmatprep.subr.mxu0 0.0
        %2496 = vmatpush1.msra.mxu0 0.0
        %2497 = vmatprep.subr.mxu0 0.0
        %2498 = vmatpush1.msra.mxu0 0.0
        %2499 = vmatprep.subr.mxu0 0.0
        %2500 = vmatpush1.msra.mxu0 0.0
        %2501 = vmatprep.subr.mxu0 0.0
        %2502 = vmatpush1.msra.mxu0 %v1984
        %2503 = vmatprep.subr.mxu0 0.0
        %2504 = vmatpush2.msra.mxu0 0.0
        %2505 = vmatprep.subr.mxu0 0.0
        %2506 = vmatpush2.msra.mxu0 0.0
        %2507 = vmatprep.subr.mxu0 0.0
        %2508 = vmatpush2.msra.mxu0 0.0
        %2509 = vmatprep.subr.mxu0 0.0
        %2510 = vmatpush2.msra.mxu0 0.0
        %2511 = vmatprep.subr.mxu0 0.0
        %2512 = vmatpush2.msra.mxu0 0.0
        %2513 = vmatprep.subr.mxu0 0.0
        %2514 = vmatpush2.msra.mxu0 0.0
        %2515 = vmatprep.subr.mxu0 0.0
        %2516 = vmatpush2.msra.mxu0 0.0
        %2517 = vmatprep.subr.mxu0 0.0
        %2518 = vmatpush2.msra.mxu0 0.0
        %2519 = vmatprep.subr.mxu0 0.0
        %2520 = vmatpush2.msra.mxu0 0.0
        %2521 = vmatprep.subr.mxu0 0.0
        %2522 = vmatpush2.msra.mxu0 0.0
        %2523 = vmatprep.subr.mxu0 0.0
        %2524 = vmatpush2.msra.mxu0 0.0
        %2525 = vmatprep.subr.mxu0 0.0
        %2526 = vmatpush2.msra.mxu0 0.0
        %2527 = vmatprep.subr.mxu0 0.0
        %2528 = vmatpush2.msra.mxu0 0.0
        %2529 = vmatprep.subr.mxu0 0.0
        %2530 = vmatpush2.msra.mxu0 0.0
        %2531 = vmatprep.subr.mxu0 0.0
        %2532 = vmatpush2.msra.mxu0 0.0
        %2533 = vmatprep.subr.mxu0 0.0
        %2534 = vmatpush2.msra.mxu0 0.0
        %2535 = vmatprep.mubr.f32.mxu0 0.0
        %2536 = vmatmul.mubr.f32.gmra.mxu0 %v2469
        %v2537 = vpop.f32.mrf.mxu0
        %v2538 = vadd.f32 0.0, %v2537
        %v2539 = vpop.f32.mrf.mxu0
        %2540 = vdwg.mxu0
        %v2541 = vmul.f32 %v2538, 0.35355338
        %v2542 = vadd.f32 %v2541, %v378
        %v2543 = vsel %vm606, %v2542, -inf
        %2544 = vmax.xlane.f32.xlu0 %v2543
        %v2545 = vpop.xlane.xlu0 %2544
        %v2546 = vsub.f32 %v2542, %v2545
        %v2547 = vmul.f32 %v2546, 1.442695
        %v2548 = vpow.pop %v2547
        %v2549 = vsel %vm606, %v2548, 0.0
        %2550 = vadd.xlane.f32.xlu0 %v2549
        %v2551 = vpop.xlane.xlu0 %2550
        %v2552 = vrcp.pop %v2551
        %v2553 = vmul.f32 %v2548, %v2552
        %2554 = vrot.lane.b32.xlu0 %v1871, 80
        %v2555 = vpop.permute.xlu0 %2554
        %v2558 = vsel %vm606, %v2553, 0
        %2560 = vmatprep.subr.mxu0 0.0
        %2561 = vmatpush1.msra.mxu0 0.0
        %2562 = vmatprep.subr.mxu0 0.0
        %2563 = vmatpush1.msra.mxu0 0.0
        %2564 = vmatprep.subr.mxu0 0.0
        %2565 = vmatpush1.msra.mxu0 0.0
        %2566 = vmatprep.subr.mxu0 0.0
        %2567 = vmatpush1.msra.mxu0 0.0
        %2568 = vmatprep.subr.mxu0 0.0
        %2569 = vmatpush1.msra.mxu0 0.0
        %2570 = vmatprep.subr.mxu0 0.0
        %2571 = vmatpush1.msra.mxu0 0.0
        %2572 = vmatprep.subr.mxu0 0.0
        %2573 = vmatpush1.msra.mxu0 0.0
        %2574 = vmatprep.subr.mxu0 0.0
        %2575 = vmatpush1.msra.mxu0 0.0
        %2576 = vmatprep.subr.mxu0 0.0
        %2577 = vmatpush1.msra.mxu0 0.0
        %2578 = vmatprep.subr.mxu0 0.0
        %2579 = vmatpush1.msra.mxu0 0.0
        %2580 = vmatprep.subr.mxu0 0.0
        %2581 = vmatpush1.msra.mxu0 0.0
        %2582 = vmatprep.subr.mxu0 0.0
        %2583 = vmatpush1.msra.mxu0 0.0
        %2584 = vmatprep.subr.mxu0 0.0
        %2585 = vmatpush1.msra.mxu0 0.0
        %2586 = vmatprep.subr.mxu0 0.0
        %2587 = vmatpush1.msra.mxu0 0.0
        %2588 = vmatprep.subr.mxu0 0.0
        %2589 = vmatpush1.msra.mxu0 0.0
        %2590 = vmatprep.subr.mxu0 0.0
        %2591 = vmatpush1.msra.mxu0 %v2555
        %2592 = vmatprep.subr.mxu0 0.0
        %2593 = vmatpush2.msra.mxu0 0.0
        %2594 = vmatprep.subr.mxu0 0.0
        %2595 = vmatpush2.msra.mxu0 0.0
        %2596 = vmatprep.subr.mxu0 0.0
        %2597 = vmatpush2.msra.mxu0 0.0
        %2598 = vmatprep.subr.mxu0 0.0
        %2599 = vmatpush2.msra.mxu0 0.0
        %2600 = vmatprep.subr.mxu0 0.0
        %2601 = vmatpush2.msra.mxu0 0.0
        %2602 = vmatprep.subr.mxu0 0.0
        %2603 = vmatpush2.msra.mxu0 0.0
        %2604 = vmatprep.subr.mxu0 0.0
        %2605 = vmatpush2.msra.mxu0 0.0
        %2606 = vmatprep.subr.mxu0 0.0
        %2607 = vmatpush2.msra.mxu0 0.0
        %2608 = vmatprep.subr.mxu0 0.0
        %2609 = vmatpush2.msra.mxu0 0.0
        %2610 = vmatprep.subr.mxu0 0.0
        %2611 = vmatpush2.msra.mxu0 0.0
        %2612 = vmatprep.subr.mxu0 0.0
        %2613 = vmatpush2.msra.mxu0 0.0
        %2614 = vmatprep.subr.mxu0 0.0
        %2615 = vmatpush2.msra.mxu0 0.0
        %2616 = vmatprep.subr.mxu0 0.0
        %2617 = vmatpush2.msra.mxu0 0.0
        %2618 = vmatprep.subr.mxu0 0.0
        %2619 = vmatpush2.msra.mxu0 0.0
        %2620 = vmatprep.subr.mxu0 0.0
        %2621 = vmatpush2.msra.mxu0 0.0
        %2622 = vmatprep.subr.mxu0 0.0
        %2623 = vmatpush2.msra.mxu0 0.0
        %2624 = vmatprep.mubr.f32.mxu0 0.0
        %2625 = vmatmul.mubr.f32.gmra.mxu0 %v2558
        %v2626 = vpop.f32.mrf.mxu0
        %v2627 = vadd.f32 0.0, %v2626
        %v2628 = vpop.f32.mrf.mxu0
        %2629 = vdwg.mxu0
        %s2630 = scalar_lea.vmem %s6, 48
        %v2631 = vld [vmem:[%s2630] sm:$0xff]
        %v2633 = vsel %vm606, %v2627, 0
        %2635 = vmatprep.subr.mxu0 0.0
        %2636 = vmatpush1.msra.mxu0 0.0
        %2637 = vmatprep.subr.mxu0 0.0
        %2638 = vmatpush1.msra.mxu0 0.0
        %2639 = vmatprep.subr.mxu0 0.0
        %2640 = vmatpush1.msra.mxu0 0.0
        %2641 = vmatprep.subr.mxu0 0.0
        %2642 = vmatpush1.msra.mxu0 0.0
        %2643 = vmatprep.subr.mxu0 0.0
        %2644 = vmatpush1.msra.mxu0 0.0
        %2645 = vmatprep.subr.mxu0 0.0
        %2646 = vmatpush1.msra.mxu0 0.0
        %2647 = vmatprep.subr.mxu0 0.0
        %2648 = vmatpush1.msra.mxu0 0.0
        %2649 = vmatprep.subr.mxu0 0.0
        %2650 = vmatpush1.msra.mxu0 0.0
        %2651 = vmatprep.subr.mxu0 0.0
        %2652 = vmatpush1.msra.mxu0 0.0
        %2653 = vmatprep.subr.mxu0 0.0
        %2654 = vmatpush1.msra.mxu0 0.0
        %2655 = vmatprep.subr.mxu0 0.0
        %2656 = vmatpush1.msra.mxu0 0.0
        %2657 = vmatprep.subr.mxu0 0.0
        %2658 = vmatpush1.msra.mxu0 0.0
        %2659 = vmatprep.subr.mxu0 0.0
        %2660 = vmatpush1.msra.mxu0 0.0
        %2661 = vmatprep.subr.mxu0 0.0
        %2662 = vmatpush1.msra.mxu0 0.0
        %2663 = vmatprep.subr.mxu0 0.0
        %2664 = vmatpush1.msra.mxu0 0.0
        %2665 = vmatprep.subr.mxu0 0.0
        %2666 = vmatpush1.msra.mxu0 %v2631
        %2667 = vmatprep.subr.mxu0 0.0
        %2668 = vmatpush2.msra.mxu0 0.0
        %2669 = vmatprep.subr.mxu0 0.0
        %2670 = vmatpush2.msra.mxu0 0.0
        %2671 = vmatprep.subr.mxu0 0.0
        %2672 = vmatpush2.msra.mxu0 0.0
        %2673 = vmatprep.subr.mxu0 0.0
        %2674 = vmatpush2.msra.mxu0 0.0
        %2675 = vmatprep.subr.mxu0 0.0
        %2676 = vmatpush2.msra.mxu0 0.0
        %2677 = vmatprep.subr.mxu0 0.0
        %2678 = vmatpush2.msra.mxu0 0.0
        %2679 = vmatprep.subr.mxu0 0.0
        %2680 = vmatpush2.msra.mxu0 0.0
        %2681 = vmatprep.subr.mxu0 0.0
        %2682 = vmatpush2.msra.mxu0 0.0
        %2683 = vmatprep.subr.mxu0 0.0
        %2684 = vmatpush2.msra.mxu0 0.0
        %2685 = vmatprep.subr.mxu0 0.0
        %2686 = vmatpush2.msra.mxu0 0.0
        %2687 = vmatprep.subr.mxu0 0.0
        %2688 = vmatpush2.msra.mxu0 0.0
        %2689 = vmatprep.subr.mxu0 0.0
        %2690 = vmatpush2.msra.mxu0 0.0
        %2691 = vmatprep.subr.mxu0 0.0
        %2692 = vmatpush2.msra.mxu0 0.0
        %2693 = vmatprep.subr.mxu0 0.0
        %2694 = vmatpush2.msra.mxu0 0.0
        %2695 = vmatprep.subr.mxu0 0.0
        %2696 = vmatpush2.msra.mxu0 0.0
        %2697 = vmatprep.subr.mxu0 0.0
        %2698 = vmatpush2.msra.mxu0 0.0
        %2699 = vmatprep.mubr.f32.mxu0 0.0
        %2700 = vmatmul.mubr.f32.gmra.mxu0 %v2633
        %v2701 = vpop.f32.mrf.mxu0
        %v2702 = vadd.f32 0.0, %v2701
        %v2703 = vpop.f32.mrf.mxu0
        %2704 = vdwg.mxu0
        %v2705 = vadd.f32 %v2464, %v2702
        %2706 = vrot.lane.b32.xlu0 %v1871, 104
        %v2707 = vpop.permute.xlu0 %2706
        %v2708 = vsel %vm606, %v2707, 0
        %2710 = vmatprep.subr.mxu0 0.0
        %2711 = vmatpush1.msra.mxu0 0.0
        %2712 = vmatprep.subr.mxu0 0.0
        %2713 = vmatpush1.msra.mxu0 0.0
        %2714 = vmatprep.subr.mxu0 0.0
        %2715 = vmatpush1.msra.mxu0 0.0
        %2716 = vmatprep.subr.mxu0 0.0
        %2717 = vmatpush1.msra.mxu0 0.0
        %2718 = vmatprep.subr.mxu0 0.0
        %2719 = vmatpush1.msra.mxu0 0.0
        %2720 = vmatprep.subr.mxu0 0.0
        %2721 = vmatpush1.msra.mxu0 0.0
        %2722 = vmatprep.subr.mxu0 0.0
        %2723 = vmatpush1.msra.mxu0 0.0
        %2724 = vmatprep.subr.mxu0 0.0
        %2725 = vmatpush1.msra.mxu0 0.0
        %2726 = vmatprep.subr.mxu0 0.0
        %2727 = vmatpush1.msra.mxu0 0.0
        %2728 = vmatprep.subr.mxu0 0.0
        %2729 = vmatpush1.msra.mxu0 0.0
        %2730 = vmatprep.subr.mxu0 0.0
        %2731 = vmatpush1.msra.mxu0 0.0
        %2732 = vmatprep.subr.mxu0 0.0
        %2733 = vmatpush1.msra.mxu0 0.0
        %2734 = vmatprep.subr.mxu0 0.0
        %2735 = vmatpush1.msra.mxu0 0.0
        %2736 = vmatprep.subr.mxu0 0.0
        %2737 = vmatpush1.msra.mxu0 0.0
        %2738 = vmatprep.subr.mxu0 0.0
        %2739 = vmatpush1.msra.mxu0 0.0
        %2740 = vmatprep.subr.mxu0 0.0
        %2741 = vmatpush1.msra.mxu0 %v1989
        %2742 = vmatprep.subr.mxu0 0.0
        %2743 = vmatpush2.msra.mxu0 0.0
        %2744 = vmatprep.subr.mxu0 0.0
        %2745 = vmatpush2.msra.mxu0 0.0
        %2746 = vmatprep.subr.mxu0 0.0
        %2747 = vmatpush2.msra.mxu0 0.0
        %2748 = vmatprep.subr.mxu0 0.0
        %2749 = vmatpush2.msra.mxu0 0.0
        %2750 = vmatprep.subr.mxu0 0.0
        %2751 = vmatpush2.msra.mxu0 0.0
        %2752 = vmatprep.subr.mxu0 0.0
        %2753 = vmatpush2.msra.mxu0 0.0
        %2754 = vmatprep.subr.mxu0 0.0
        %2755 = vmatpush2.msra.mxu0 0.0
        %2756 = vmatprep.subr.mxu0 0.0
        %2757 = vmatpush2.msra.mxu0 0.0
        %2758 = vmatprep.subr.mxu0 0.0
        %2759 = vmatpush2.msra.mxu0 0.0
        %2760 = vmatprep.subr.mxu0 0.0
        %2761 = vmatpush2.msra.mxu0 0.0
        %2762 = vmatprep.subr.mxu0 0.0
        %2763 = vmatpush2.msra.mxu0 0.0
        %2764 = vmatprep.subr.mxu0 0.0
        %2765 = vmatpush2.msra.mxu0 0.0
        %2766 = vmatprep.subr.mxu0 0.0
        %2767 = vmatpush2.msra.mxu0 0.0
        %2768 = vmatprep.subr.mxu0 0.0
        %2769 = vmatpush2.msra.mxu0 0.0
        %2770 = vmatprep.subr.mxu0 0.0
        %2771 = vmatpush2.msra.mxu0 0.0
        %2772 = vmatprep.subr.mxu0 0.0
        %2773 = vmatpush2.msra.mxu0 0.0
        %2774 = vmatprep.mubr.f32.mxu0 0.0
        %2775 = vmatmul.mubr.f32.gmra.mxu0 %v2708
        %v2776 = vpop.f32.mrf.mxu0
        %v2777 = vadd.f32 0.0, %v2776
        %v2778 = vpop.f32.mrf.mxu0
        %2779 = vdwg.mxu0
        %v2780 = vmul.f32 %v2777, 0.35355338
        %v2781 = vadd.f32 %v2780, %v378
        %v2782 = vsel %vm606, %v2781, -inf
        %2783 = vmax.xlane.f32.xlu0 %v2782
        %v2784 = vpop.xlane.xlu0 %2783
        %v2785 = vsub.f32 %v2781, %v2784
        %v2786 = vmul.f32 %v2785, 1.442695
        %v2787 = vpow.pop %v2786
        %v2788 = vsel %vm606, %v2787, 0.0
        %2789 = vadd.xlane.f32.xlu0 %v2788
        %v2790 = vpop.xlane.xlu0 %2789
        %v2791 = vrcp.pop %v2790
        %v2792 = vmul.f32 %v2787, %v2791
        %2793 = vrot.lane.b32.xlu0 %v1871, 72
        %v2794 = vpop.permute.xlu0 %2793
        %v2797 = vsel %vm606, %v2792, 0
        %2799 = vmatprep.subr.mxu0 0.0
        %2800 = vmatpush1.msra.mxu0 0.0
        %2801 = vmatprep.subr.mxu0 0.0
        %2802 = vmatpush1.msra.mxu0 0.0
        %2803 = vmatprep.subr.mxu0 0.0
        %2804 = vmatpush1.msra.mxu0 0.0
        %2805 = vmatprep.subr.mxu0 0.0
        %2806 = vmatpush1.msra.mxu0 0.0
        %2807 = vmatprep.subr.mxu0 0.0
        %2808 = vmatpush1.msra.mxu0 0.0
        %2809 = vmatprep.subr.mxu0 0.0
        %2810 = vmatpush1.msra.mxu0 0.0
        %2811 = vmatprep.subr.mxu0 0.0
        %2812 = vmatpush1.msra.mxu0 0.0
        %2813 = vmatprep.subr.mxu0 0.0
        %2814 = vmatpush1.msra.mxu0 0.0
        %2815 = vmatprep.subr.mxu0 0.0
        %2816 = vmatpush1.msra.mxu0 0.0
        %2817 = vmatprep.subr.mxu0 0.0
        %2818 = vmatpush1.msra.mxu0 0.0
        %2819 = vmatprep.subr.mxu0 0.0
        %2820 = vmatpush1.msra.mxu0 0.0
        %2821 = vmatprep.subr.mxu0 0.0
        %2822 = vmatpush1.msra.mxu0 0.0
        %2823 = vmatprep.subr.mxu0 0.0
        %2824 = vmatpush1.msra.mxu0 0.0
        %2825 = vmatprep.subr.mxu0 0.0
        %2826 = vmatpush1.msra.mxu0 0.0
        %2827 = vmatprep.subr.mxu0 0.0
        %2828 = vmatpush1.msra.mxu0 0.0
        %2829 = vmatprep.subr.mxu0 0.0
        %2830 = vmatpush1.msra.mxu0 %v2794
        %2831 = vmatprep.subr.mxu0 0.0
        %2832 = vmatpush2.msra.mxu0 0.0
        %2833 = vmatprep.subr.mxu0 0.0
        %2834 = vmatpush2.msra.mxu0 0.0
        %2835 = vmatprep.subr.mxu0 0.0
        %2836 = vmatpush2.msra.mxu0 0.0
        %2837 = vmatprep.subr.mxu0 0.0
        %2838 = vmatpush2.msra.mxu0 0.0
        %2839 = vmatprep.subr.mxu0 0.0
        %2840 = vmatpush2.msra.mxu0 0.0
        %2841 = vmatprep.subr.mxu0 0.0
        %2842 = vmatpush2.msra.mxu0 0.0
        %2843 = vmatprep.subr.mxu0 0.0
        %2844 = vmatpush2.msra.mxu0 0.0
        %2845 = vmatprep.subr.mxu0 0.0
        %2846 = vmatpush2.msra.mxu0 0.0
        %2847 = vmatprep.subr.mxu0 0.0
        %2848 = vmatpush2.msra.mxu0 0.0
        %2849 = vmatprep.subr.mxu0 0.0
        %2850 = vmatpush2.msra.mxu0 0.0
        %2851 = vmatprep.subr.mxu0 0.0
        %2852 = vmatpush2.msra.mxu0 0.0
        %2853 = vmatprep.subr.mxu0 0.0
        %2854 = vmatpush2.msra.mxu0 0.0
        %2855 = vmatprep.subr.mxu0 0.0
        %2856 = vmatpush2.msra.mxu0 0.0
        %2857 = vmatprep.subr.mxu0 0.0
        %2858 = vmatpush2.msra.mxu0 0.0
        %2859 = vmatprep.subr.mxu0 0.0
        %2860 = vmatpush2.msra.mxu0 0.0
        %2861 = vmatprep.subr.mxu0 0.0
        %2862 = vmatpush2.msra.mxu0 0.0
        %2863 = vmatprep.mubr.f32.mxu0 0.0
        %2864 = vmatmul.mubr.f32.gmra.mxu0 %v2797
        %v2865 = vpop.f32.mrf.mxu0
        %v2866 = vadd.f32 0.0, %v2865
        %v2867 = vpop.f32.mrf.mxu0
        %2868 = vdwg.mxu0
        %s2869 = scalar_lea.vmem %s6, 56
        %v2870 = vld [vmem:[%s2869] sm:$0xff]
        %v2872 = vsel %vm606, %v2866, 0
        %2874 = vmatprep.subr.mxu0 0.0
        %2875 = vmatpush1.msra.mxu0 0.0
        %2876 = vmatprep.subr.mxu0 0.0
        %2877 = vmatpush1.msra.mxu0 0.0
        %2878 = vmatprep.subr.mxu0 0.0
        %2879 = vmatpush1.msra.mxu0 0.0
        %2880 = vmatprep.subr.mxu0 0.0
        %2881 = vmatpush1.msra.mxu0 0.0
        %2882 = vmatprep.subr.mxu0 0.0
        %2883 = vmatpush1.msra.mxu0 0.0
        %2884 = vmatprep.subr.mxu0 0.0
        %2885 = vmatpush1.msra.mxu0 0.0
        %2886 = vmatprep.subr.mxu0 0.0
        %2887 = vmatpush1.msra.mxu0 0.0
        %2888 = vmatprep.subr.mxu0 0.0
        %2889 = vmatpush1.msra.mxu0 0.0
        %2890 = vmatprep.subr.mxu0 0.0
        %2891 = vmatpush1.msra.mxu0 0.0
        %2892 = vmatprep.subr.mxu0 0.0
        %2893 = vmatpush1.msra.mxu0 0.0
        %2894 = vmatprep.subr.mxu0 0.0
        %2895 = vmatpush1.msra.mxu0 0.0
        %2896 = vmatprep.subr.mxu0 0.0
        %2897 = vmatpush1.msra.mxu0 0.0
        %2898 = vmatprep.subr.mxu0 0.0
        %2899 = vmatpush1.msra.mxu0 0.0
        %2900 = vmatprep.subr.mxu0 0.0
        %2901 = vmatpush1.msra.mxu0 0.0
        %2902 = vmatprep.subr.mxu0 0.0
        %2903 = vmatpush1.msra.mxu0 0.0
        %2904 = vmatprep.subr.mxu0 0.0
        %2905 = vmatpush1.msra.mxu0 %v2870
        %2906 = vmatprep.subr.mxu0 0.0
        %2907 = vmatpush2.msra.mxu0 0.0
        %2908 = vmatprep.subr.mxu0 0.0
        %2909 = vmatpush2.msra.mxu0 0.0
        %2910 = vmatprep.subr.mxu0 0.0
        %2911 = vmatpush2.msra.mxu0 0.0
        %2912 = vmatprep.subr.mxu0 0.0
        %2913 = vmatpush2.msra.mxu0 0.0
        %2914 = vmatprep.subr.mxu0 0.0
        %2915 = vmatpush2.msra.mxu0 0.0
        %2916 = vmatprep.subr.mxu0 0.0
        %2917 = vmatpush2.msra.mxu0 0.0
        %2918 = vmatprep.subr.mxu0 0.0
        %2919 = vmatpush2.msra.mxu0 0.0
        %2920 = vmatprep.subr.mxu0 0.0
        %2921 = vmatpush2.msra.mxu0 0.0
        %2922 = vmatprep.subr.mxu0 0.0
        %2923 = vmatpush2.msra.mxu0 0.0
        %2924 = vmatprep.subr.mxu0 0.0
        %2925 = vmatpush2.msra.mxu0 0.0
        %2926 = vmatprep.subr.mxu0 0.0
        %2927 = vmatpush2.msra.mxu0 0.0
        %2928 = vmatprep.subr.mxu0 0.0
        %2929 = vmatpush2.msra.mxu0 0.0
        %2930 = vmatprep.subr.mxu0 0.0
        %2931 = vmatpush2.msra.mxu0 0.0
        %2932 = vmatprep.subr.mxu0 0.0
        %2933 = vmatpush2.msra.mxu0 0.0
        %2934 = vmatprep.subr.mxu0 0.0
        %2935 = vmatpush2.msra.mxu0 0.0
        %2936 = vmatprep.subr.mxu0 0.0
        %2937 = vmatpush2.msra.mxu0 0.0
        %2938 = vmatprep.mubr.f32.mxu0 0.0
        %2939 = vmatmul.mubr.f32.gmra.mxu0 %v2872
        %v2940 = vpop.f32.mrf.mxu0
        %v2941 = vadd.f32 0.0, %v2940
        %v2942 = vpop.f32.mrf.mxu0
        %2943 = vdwg.mxu0
        %v2944 = vadd.f32 %v2705, %v2941
        %v2945 = vld [vmem:[%s3 + $0xd] sm:$0x1]
        %v2946 = vlaneseq
        %v2947 = vshrl.u32 %v2946, 7
        %v2948 = vsub.s32 0, %v2947
        %v2949 = vrot.slane %v2945, %v2948
        %v2950 = vadd.f32 %v2944, %v2949
        %v2951 = vadd.f32 %v2950, %v1790
        %v2952 = vld [vmem:[%s3 + $0xe] sm:$0x1]
        %v2953 = vld [vmem:[%s3 + $0xf] sm:$0x1]
        %v2954 = vsel %vm382, %v2951, 0.0
        %2955 = vadd.xlane.f32.xlu0 %v2954
        %v2956 = vpop.xlane.xlu0 %2955
        %v2957 = vmul.f32 %v2956, %v386
        %v2958 = vsub.f32 %v2951, %v2957
        %v2959 = vmul.f32 %v2958, %v2958
        %v2960 = vsel %vm382, %v2959, 0.0
        %2961 = vadd.xlane.f32.xlu0 %v2960
        %v2962 = vpop.xlane.xlu0 %2961
        %v2963 = vmul.f32 %v2962, %v386
        %v2964 = vadd.f32 %v2963, 1e-12
        %v2965 = vrsqrt.pop %v2964
        %v2966 = vmul.f32 %v2958, %v2965
        %v2967 = vlaneseq
        %v2968 = vshrl.u32 %v2967, 7
        %v2969 = vsub.s32 0, %v2968
        %v2970 = vrot.slane %v2952, %v2969
        %v2971 = vmul.f32 %v2966, %v2970
        %v2972 = vlaneseq
        %v2973 = vshrl.u32 %v2972, 7
        %v2974 = vsub.s32 0, %v2973
        %v2975 = vrot.slane %v2953, %v2974
        %v2976 = vadd.f32 %v2971, %v2975
        %s2977 = scalar_lea.vmem %s7, 32
        %v2978 = vld [vmem:[%s2977] sm:$0xff]
        %v2979 = vld [vmem:[%s2977 + $0x8] sm:$0xff]
        %v2980 = vld [vmem:[%s2977 + $0x10] sm:$0xff]
        %v2981 = vld [vmem:[%s2977 + $0x18] sm:$0xff]
        %v2982 = vld [vmem:[%s3 + $0x10] sm:$0x1]
        %v2983 = vlaneseq
        %v2984 = vshrl.u32 %v2983, 7
        %v2985 = vsub.s32 0, %v2984
        %v2986 = vrot.slane %v2982, %v2985
        %v2988 = vsel %vm382, %v2976, 0
        %2990 = vmatprep.subr.mxu0 0.0
        %2991 = vmatpush1.msra.mxu0 0.0
        %2992 = vmatprep.subr.mxu0 0.0
        %2993 = vmatpush1.msra.mxu0 0.0
        %2994 = vmatprep.subr.mxu0 0.0
        %2995 = vmatpush1.msra.mxu0 0.0
        %2996 = vmatprep.subr.mxu0 0.0
        %2997 = vmatpush1.msra.mxu0 0.0
        %2998 = vmatprep.subr.mxu0 0.0
        %2999 = vmatpush1.msra.mxu0 0.0
        %3000 = vmatprep.subr.mxu0 0.0
        %3001 = vmatpush1.msra.mxu0 0.0
        %3002 = vmatprep.subr.mxu0 0.0
        %3003 = vmatpush1.msra.mxu0 0.0
        %3004 = vmatprep.subr.mxu0 0.0
        %3005 = vmatpush1.msra.mxu0 0.0
        %3006 = vmatprep.subr.mxu0 0.0
        %3007 = vmatpush1.msra.mxu0 0.0
        %3008 = vmatprep.subr.mxu0 0.0
        %3009 = vmatpush1.msra.mxu0 0.0
        %3010 = vmatprep.subr.mxu0 0.0
        %3011 = vmatpush1.msra.mxu0 0.0
        %3012 = vmatprep.subr.mxu0 0.0
        %3013 = vmatpush1.msra.mxu0 0.0
        %3014 = vmatprep.subr.mxu0 0.0
        %3015 = vmatpush1.msra.mxu0 %v2981
        %3016 = vmatprep.subr.mxu0 0.0
        %3017 = vmatpush1.msra.mxu0 %v2980
        %3018 = vmatprep.subr.mxu0 0.0
        %3019 = vmatpush1.msra.mxu0 %v2979
        %3020 = vmatprep.subr.mxu0 0.0
        %3021 = vmatpush1.msra.mxu0 %v2978
        %3022 = vmatprep.subr.mxu0 0.0
        %3023 = vmatpush2.msra.mxu0 0.0
        %3024 = vmatprep.subr.mxu0 0.0
        %3025 = vmatpush2.msra.mxu0 0.0
        %3026 = vmatprep.subr.mxu0 0.0
        %3027 = vmatpush2.msra.mxu0 0.0
        %3028 = vmatprep.subr.mxu0 0.0
        %3029 = vmatpush2.msra.mxu0 0.0
        %3030 = vmatprep.subr.mxu0 0.0
        %3031 = vmatpush2.msra.mxu0 0.0
        %3032 = vmatprep.subr.mxu0 0.0
        %3033 = vmatpush2.msra.mxu0 0.0
        %3034 = vmatprep.subr.mxu0 0.0
        %3035 = vmatpush2.msra.mxu0 0.0
        %3036 = vmatprep.subr.mxu0 0.0
        %3037 = vmatpush2.msra.mxu0 0.0
        %3038 = vmatprep.subr.mxu0 0.0
        %3039 = vmatpush2.msra.mxu0 0.0
        %3040 = vmatprep.subr.mxu0 0.0
        %3041 = vmatpush2.msra.mxu0 0.0
        %3042 = vmatprep.subr.mxu0 0.0
        %3043 = vmatpush2.msra.mxu0 0.0
        %3044 = vmatprep.subr.mxu0 0.0
        %3045 = vmatpush2.msra.mxu0 0.0
        %3046 = vmatprep.subr.mxu0 0.0
        %3047 = vmatpush2.msra.mxu0 0.0
        %3048 = vmatprep.subr.mxu0 0.0
        %3049 = vmatpush2.msra.mxu0 0.0
        %3050 = vmatprep.subr.mxu0 0.0
        %3051 = vmatpush2.msra.mxu0 0.0
        %3052 = vmatprep.subr.mxu0 0.0
        %3053 = vmatpush2.msra.mxu0 0.0
        %3054 = vmatprep.mubr.f32.mxu0 0.0
        %3055 = vmatmul.mubr.f32.gmra.mxu0 %v2988
        %v3056 = vpop.f32.mrf.mxu0
        %v3057 = vadd.f32 %v2986, %v3056
        %v3058 = vpop.f32.mrf.mxu0
        %3059 = vdwg.mxu0
        %v3060 = vmul.f32 %v3057, 0.5
        %v3061 = vmul.f32 %v3057, 0.70710677
        %v3062 = verf.f32.pop %v3061
        %v3063 = vadd.f32 %v3062, 1.0
        %v3064 = vmul.f32 %v3060, %v3063
        %s3065 = scalar_lea.vmem %s8, 64
        %v3066 = vld [vmem:[%s3065] sm:$0xff]
        %v3067 = vld [vmem:[%s3065 + $0x8] sm:$0xff]
        %v3068 = vld [vmem:[%s3065 + $0x10] sm:$0xff]
        %v3069 = vld [vmem:[%s3065 + $0x18] sm:$0xff]
        %v3070 = vld [vmem:[%s3065 + $0x20] sm:$0xff]
        %v3071 = vld [vmem:[%s3065 + $0x28] sm:$0xff]
        %v3072 = vld [vmem:[%s3065 + $0x30] sm:$0xff]
        %v3073 = vld [vmem:[%s3065 + $0x38] sm:$0xff]
        %v3074 = vld [vmem:[%s3 + $0x11] sm:$0x1]
        %v3075 = vlaneseq
        %v3076 = vshrl.u32 %v3075, 7
        %v3077 = vsub.s32 0, %v3076
        %v3078 = vrot.slane %v3074, %v3077
        %v3080 = vsel %vm1691, %v3064, 0
        %3082 = vmatprep.subr.mxu0 0.0
        %3083 = vmatpush1.msra.mxu0 0.0
        %3084 = vmatprep.subr.mxu0 0.0
        %3085 = vmatpush1.msra.mxu0 0.0
        %3086 = vmatprep.subr.mxu0 0.0
        %3087 = vmatpush1.msra.mxu0 0.0
        %3088 = vmatprep.subr.mxu0 0.0
        %3089 = vmatpush1.msra.mxu0 0.0
        %3090 = vmatprep.subr.mxu0 0.0
        %3091 = vmatpush1.msra.mxu0 0.0
        %3092 = vmatprep.subr.mxu0 0.0
        %3093 = vmatpush1.msra.mxu0 0.0
        %3094 = vmatprep.subr.mxu0 0.0
        %3095 = vmatpush1.msra.mxu0 0.0
        %3096 = vmatprep.subr.mxu0 0.0
        %3097 = vmatpush1.msra.mxu0 0.0
        %3098 = vmatprep.subr.mxu0 0.0
        %3099 = vmatpush1.msra.mxu0 %v3073
        %3100 = vmatprep.subr.mxu0 0.0
        %3101 = vmatpush1.msra.mxu0 %v3072
        %3102 = vmatprep.subr.mxu0 0.0
        %3103 = vmatpush1.msra.mxu0 %v3071
        %3104 = vmatprep.subr.mxu0 0.0
        %3105 = vmatpush1.msra.mxu0 %v3070
        %3106 = vmatprep.subr.mxu0 0.0
        %3107 = vmatpush1.msra.mxu0 %v3069
        %3108 = vmatprep.subr.mxu0 0.0
        %3109 = vmatpush1.msra.mxu0 %v3068
        %3110 = vmatprep.subr.mxu0 0.0
        %3111 = vmatpush1.msra.mxu0 %v3067
        %3112 = vmatprep.subr.mxu0 0.0
        %3113 = vmatpush1.msra.mxu0 %v3066
        %3114 = vmatprep.subr.mxu0 0.0
        %3115 = vmatpush2.msra.mxu0 0.0
        %3116 = vmatprep.subr.mxu0 0.0
        %3117 = vmatpush2.msra.mxu0 0.0
        %3118 = vmatprep.subr.mxu0 0.0
        %3119 = vmatpush2.msra.mxu0 0.0
        %3120 = vmatprep.subr.mxu0 0.0
        %3121 = vmatpush2.msra.mxu0 0.0
        %3122 = vmatprep.subr.mxu0 0.0
        %3123 = vmatpush2.msra.mxu0 0.0
        %3124 = vmatprep.subr.mxu0 0.0
        %3125 = vmatpush2.msra.mxu0 0.0
        %3126 = vmatprep.subr.mxu0 0.0
        %3127 = vmatpush2.msra.mxu0 0.0
        %3128 = vmatprep.subr.mxu0 0.0
        %3129 = vmatpush2.msra.mxu0 0.0
        %3130 = vmatprep.subr.mxu0 0.0
        %3131 = vmatpush2.msra.mxu0 0.0
        %3132 = vmatprep.subr.mxu0 0.0
        %3133 = vmatpush2.msra.mxu0 0.0
        %3134 = vmatprep.subr.mxu0 0.0
        %3135 = vmatpush2.msra.mxu0 0.0
        %3136 = vmatprep.subr.mxu0 0.0
        %3137 = vmatpush2.msra.mxu0 0.0
        %3138 = vmatprep.subr.mxu0 0.0
        %3139 = vmatpush2.msra.mxu0 0.0
        %3140 = vmatprep.subr.mxu0 0.0
        %3141 = vmatpush2.msra.mxu0 0.0
        %3142 = vmatprep.subr.mxu0 0.0
        %3143 = vmatpush2.msra.mxu0 0.0
        %3144 = vmatprep.subr.mxu0 0.0
        %3145 = vmatpush2.msra.mxu0 0.0
        %3146 = vmatprep.mubr.f32.mxu0 0.0
        %3147 = vmatmul.mubr.f32.gmra.mxu0 %v3080
        %v3148 = vpop.f32.mrf.mxu0
        %v3149 = vadd.f32 %v3078, %v3148
        %v3150 = vpop.f32.mrf.mxu0
        %3151 = vdwg.mxu0
        %v3152 = vadd.f32 %v3149, %v2976
        %v3153 = vld [vmem:[%s3 + $0x12] sm:$0x1]
        %v3154 = vld [vmem:[%s3 + $0x13] sm:$0x1]
        %v3155 = vsel %vm382, %v3152, 0.0
        %3156 = vadd.xlane.f32.xlu0 %v3155
        %v3157 = vpop.xlane.xlu0 %3156
        %v3158 = vmul.f32 %v3157, %v386
        %v3159 = vsub.f32 %v3152, %v3158
        %v3160 = vmul.f32 %v3159, %v3159
        %v3161 = vsel %vm382, %v3160, 0.0
        %3162 = vadd.xlane.f32.xlu0 %v3161
        %v3163 = vpop.xlane.xlu0 %3162
        %v3164 = vmul.f32 %v3163, %v386
        %v3165 = vadd.f32 %v3164, 1e-12
        %v3166 = vrsqrt.pop %v3165
        %v3167 = vmul.f32 %v3159, %v3166
        %v3168 = vlaneseq
        %v3169 = vshrl.u32 %v3168, 7
        %v3170 = vsub.s32 0, %v3169
        %v3171 = vrot.slane %v3153, %v3170
        %v3172 = vmul.f32 %v3167, %v3171
        %v3173 = vlaneseq
        %v3174 = vshrl.u32 %v3173, 7
        %v3175 = vsub.s32 0, %v3174
        %v3176 = vrot.slane %v3154, %v3175
        %v3177 = vadd.f32 %v3172, %v3176
        %v3178 = vld [vmem:[%s9] sm:$0xff]
        %v3179 = vld [vmem:[%s9 + $0x8] sm:$0xff]
        %v3180 = vld [vmem:[%s9 + $0x10] sm:$0xff]
        %v3181 = vld [vmem:[%s9 + $0x18] sm:$0xff]
        %v3182 = vld [vmem:[%s9 + $0x20] sm:$0xff]
        %v3183 = vld [vmem:[%s9 + $0x28] sm:$0xff]
        %v3184 = vld [vmem:[%s3 + $0x2] sm:$0x1]
        %v3185 = vlaneseq
        %v3186 = vshrl.u32 %v3185, 7
        %v3187 = vsub.s32 0, %v3186
        %v3188 = vrot.slane %v3184, %v3187
        %v3190 = vsel %vm382, %v3177, 0
        %3192 = vmatprep.subr.mxu0 0.0
        %3193 = vmatpush1.msra.mxu0 0.0
        %3194 = vmatprep.subr.mxu0 0.0
        %3195 = vmatpush1.msra.mxu0 0.0
        %3196 = vmatprep.subr.mxu0 0.0
        %3197 = vmatpush1.msra.mxu0 0.0
        %3198 = vmatprep.subr.mxu0 0.0
        %3199 = vmatpush1.msra.mxu0 0.0
        %3200 = vmatprep.subr.mxu0 0.0
        %3201 = vmatpush1.msra.mxu0 0.0
        %3202 = vmatprep.subr.mxu0 0.0
        %3203 = vmatpush1.msra.mxu0 0.0
        %3204 = vmatprep.subr.mxu0 0.0
        %3205 = vmatpush1.msra.mxu0 0.0
        %3206 = vmatprep.subr.mxu0 0.0
        %3207 = vmatpush1.msra.mxu0 0.0
        %3208 = vmatprep.subr.mxu0 0.0
        %3209 = vmatpush1.msra.mxu0 0.0
        %3210 = vmatprep.subr.mxu0 0.0
        %3211 = vmatpush1.msra.mxu0 0.0
        %3212 = vmatprep.subr.mxu0 0.0
        %3213 = vmatpush1.msra.mxu0 0.0
        %3214 = vmatprep.subr.mxu0 0.0
        %3215 = vmatpush1.msra.mxu0 0.0
        %3216 = vmatprep.subr.mxu0 0.0
        %3217 = vmatpush1.msra.mxu0 %v3181
        %3218 = vmatprep.subr.mxu0 0.0
        %3219 = vmatpush1.msra.mxu0 %v3180
        %3220 = vmatprep.subr.mxu0 0.0
        %3221 = vmatpush1.msra.mxu0 %v3179
        %3222 = vmatprep.subr.mxu0 0.0
        %3223 = vmatpush1.msra.mxu0 %v3178
        %3224 = vmatprep.subr.mxu0 0.0
        %3225 = vmatpush2.msra.mxu0 0.0
        %3226 = vmatprep.subr.mxu0 0.0
        %3227 = vmatpush2.msra.mxu0 0.0
        %3228 = vmatprep.subr.mxu0 0.0
        %3229 = vmatpush2.msra.mxu0 0.0
        %3230 = vmatprep.subr.mxu0 0.0
        %3231 = vmatpush2.msra.mxu0 0.0
        %3232 = vmatprep.subr.mxu0 0.0
        %3233 = vmatpush2.msra.mxu0 0.0
        %3234 = vmatprep.subr.mxu0 0.0
        %3235 = vmatpush2.msra.mxu0 0.0
        %3236 = vmatprep.subr.mxu0 0.0
        %3237 = vmatpush2.msra.mxu0 0.0
        %3238 = vmatprep.subr.mxu0 0.0
        %3239 = vmatpush2.msra.mxu0 0.0
        %3240 = vmatprep.subr.mxu0 0.0
        %3241 = vmatpush2.msra.mxu0 0.0
        %3242 = vmatprep.subr.mxu0 0.0
        %3243 = vmatpush2.msra.mxu0 0.0
        %3244 = vmatprep.subr.mxu0 0.0
        %3245 = vmatpush2.msra.mxu0 0.0
        %3246 = vmatprep.subr.mxu0 0.0
        %3247 = vmatpush2.msra.mxu0 0.0
        %3248 = vmatprep.subr.mxu0 0.0
        %3249 = vmatpush2.msra.mxu0 0.0
        %3250 = vmatprep.subr.mxu0 0.0
        %3251 = vmatpush2.msra.mxu0 0.0
        %3252 = vmatprep.subr.mxu0 0.0
        %3253 = vmatpush2.msra.mxu0 0.0
        %3254 = vmatprep.subr.mxu0 0.0
        %3255 = vmatpush2.msra.mxu0 0.0
        %3256 = vmatprep.mubr.f32.mxu0 0.0
        %3257 = vmatmul.mubr.f32.gmra.mxu0 %v3190
        %v3258 = vpop.f32.mrf.mxu0
        %v3259 = vadd.f32 %v3188, %v3258
        %v3260 = vpop.f32.mrf.mxu0
        %3261 = vdwg.mxu0
        %s3262 = sld [smem:[#allocation3 + %s31]]
        %vm3263 = vcmask 130048
        %v3265 = vsel %vm3263, 0.0, 0
        %3267 = vmatprep.subr.mxu0 0.0
        %3268 = vmatpush1.msra.mxu0 0.0
        %3269 = vmatprep.subr.mxu0 0.0
        %3270 = vmatpush1.msra.mxu0 0.0
        %3271 = vmatprep.subr.mxu0 0.0
        %3272 = vmatpush1.msra.mxu0 0.0
        %3273 = vmatprep.subr.mxu0 0.0
        %3274 = vmatpush1.msra.mxu0 0.0
        %3275 = vmatprep.subr.mxu0 0.0
        %3276 = vmatpush1.msra.mxu0 0.0
        %3277 = vmatprep.subr.mxu0 0.0
        %3278 = vmatpush1.msra.mxu0 0.0
        %3279 = vmatprep.subr.mxu0 0.0
        %3280 = vmatpush1.msra.mxu0 0.0
        %3281 = vmatprep.subr.mxu0 0.0
        %3282 = vmatpush1.msra.mxu0 0.0
        %3283 = vmatprep.subr.mxu0 0.0
        %3284 = vmatpush1.msra.mxu0 0.0
        %3285 = vmatprep.subr.mxu0 0.0
        %3286 = vmatpush1.msra.mxu0 0.0
        %3287 = vmatprep.subr.mxu0 0.0
        %3288 = vmatpush1.msra.mxu0 0.0
        %3289 = vmatprep.subr.mxu0 0.0
        %3290 = vmatpush1.msra.mxu0 0.0
        %3291 = vmatprep.subr.mxu0 0.0
        %3292 = vmatpush1.msra.mxu0 0.0
        %3293 = vmatprep.subr.mxu0 0.0
        %3294 = vmatpush1.msra.mxu0 0.0
        %3295 = vmatprep.subr.mxu0 0.0
        %3296 = vmatpush1.msra.mxu0 %v3183
        %3297 = vmatprep.subr.mxu0 0.0
        %3298 = vmatpush1.msra.mxu0 %v3182
        %3299 = vmatprep.subr.mxu0 0.0
        %3300 = vmatpush2.msra.mxu0 0.0
        %3301 = vmatprep.subr.mxu0 0.0
        %3302 = vmatpush2.msra.mxu0 0.0
        %3303 = vmatprep.subr.mxu0 0.0
        %3304 = vmatpush2.msra.mxu0 0.0
        %3305 = vmatprep.subr.mxu0 0.0
        %3306 = vmatpush2.msra.mxu0 0.0
        %3307 = vmatprep.subr.mxu0 0.0
        %3308 = vmatpush2.msra.mxu0 0.0
        %3309 = vmatprep.subr.mxu0 0.0
        %3310 = vmatpush2.msra.mxu0 0.0
        %3311 = vmatprep.subr.mxu0 0.0
        %3312 = vmatpush2.msra.mxu0 0.0
        %3313 = vmatprep.subr.mxu0 0.0
        %3314 = vmatpush2.msra.mxu0 0.0
        %3315 = vmatprep.subr.mxu0 0.0
        %3316 = vmatpush2.msra.mxu0 0.0
        %3317 = vmatprep.subr.mxu0 0.0
        %3318 = vmatpush2.msra.mxu0 0.0
        %3319 = vmatprep.subr.mxu0 0.0
        %3320 = vmatpush2.msra.mxu0 0.0
        %3321 = vmatprep.subr.mxu0 0.0
        %3322 = vmatpush2.msra.mxu0 0.0
        %3323 = vmatprep.subr.mxu0 0.0
        %3324 = vmatpush2.msra.mxu0 0.0
        %3325 = vmatprep.subr.mxu0 0.0
        %3326 = vmatpush2.msra.mxu0 0.0
        %3327 = vmatprep.subr.mxu0 0.0
        %3328 = vmatpush2.msra.mxu0 0.0
        %3329 = vmatprep.subr.mxu0 0.0
        %3330 = vmatpush2.msra.mxu0 0.0
        %3331 = vmatprep.mubr.f32.mxu0 0.0
        %3332 = vmatmul.mubr.f32.gmra.mxu0 %v3265
        %v3333 = vpop.f32.mrf.mxu0
        %v3334 = vadd.f32 0.0, %v3333
        %v3335 = vpop.f32.mrf.mxu0
        %3336 = vdwg.mxu0
        %v3337 = vadd.f32 %v3259, %v3334
        %v3338 = vxor.u32 %v3337, 2147483648
        %v3339 = vmul.f32 %v3338, 1.442695
        %v3340 = vpow.pop %v3339
        %v3341 = vadd.f32 %v3340, 1.0
        %v3342 = vrcp.pop %v3341
        %v3343 = vmul.f32 1.0, %v3342
        %v3344 = vtanh.pop %v3337
        %v3345 = vmul.f32 %v3343, 0.0
        %3347 = vrot.lane.b32.xlu0 %v3344, 96
        %v3348 = vpop.permute.xlu0 %3347
        %v3350 = vmul.f32 %v3343, %v3348
        %3352 = vrot.lane.b32.xlu0 %v3350, 16
        %v3353 = vpop.permute.xlu0 %3352
        %v3355 = vadd.f32 %v3345, %v3353
        %v3356 = vtanh.pop %v3355
        %3358 = vrot.lane.b32.xlu0 %v3356, 32
        %v3359 = vpop.permute.xlu0 %3358
        %v3361 = vmul.f32 %v3343, %v3359
        %p3362 = scmp.eq.s32.totalorder %s3262, 0
        %s3363 = scalar_select %p3362, 1, 0
        %s3364 = scvt.s32.f32 %s3363
        %v3365 = vstv %s3364
        %v3366 = vmul.f32 %v3365, %v3361
        %v3367 = vadd.f32 %v3366, 0.0
        %3369 = vrot.lane.b32.xlu0 %v3361, 80
        %v3370 = vpop.permute.xlu0 %3369
        %v3371 = vsel %vm3263, %v3370, 0
        %3373 = vmatprep.subr.mxu0 0.0
        %3374 = vmatpush1.msra.mxu0 0.0
        %3375 = vmatprep.subr.mxu0 0.0
        %3376 = vmatpush1.msra.mxu0 0.0
        %3377 = vmatprep.subr.mxu0 0.0
        %3378 = vmatpush1.msra.mxu0 0.0
        %3379 = vmatprep.subr.mxu0 0.0
        %3380 = vmatpush1.msra.mxu0 0.0
        %3381 = vmatprep.subr.mxu0 0.0
        %3382 = vmatpush1.msra.mxu0 0.0
        %3383 = vmatprep.subr.mxu0 0.0
        %3384 = vmatpush1.msra.mxu0 0.0
        %3385 = vmatprep.subr.mxu0 0.0
        %3386 = vmatpush1.msra.mxu0 0.0
        %3387 = vmatprep.subr.mxu0 0.0
        %3388 = vmatpush1.msra.mxu0 0.0
        %3389 = vmatprep.subr.mxu0 0.0
        %3390 = vmatpush1.msra.mxu0 0.0
        %3391 = vmatprep.subr.mxu0 0.0
        %3392 = vmatpush1.msra.mxu0 0.0
        %3393 = vmatprep.subr.mxu0 0.0
        %3394 = vmatpush1.msra.mxu0 0.0
        %3395 = vmatprep.subr.mxu0 0.0
        %3396 = vmatpush1.msra.mxu0 0.0
        %3397 = vmatprep.subr.mxu0 0.0
        %3398 = vmatpush1.msra.mxu0 0.0
        %3399 = vmatprep.subr.mxu0 0.0
        %3400 = vmatpush1.msra.mxu0 0.0
        %3401 = vmatprep.subr.mxu0 0.0
        %3402 = vmatpush1.msra.mxu0 %v3183
        %3403 = vmatprep.subr.mxu0 0.0
        %3404 = vmatpush1.msra.mxu0 %v3182
        %3405 = vmatprep.subr.mxu0 0.0
        %3406 = vmatpush2.msra.mxu0 0.0
        %3407 = vmatprep.subr.mxu0 0.0
        %3408 = vmatpush2.msra.mxu0 0.0
        %3409 = vmatprep.subr.mxu0 0.0
        %3410 = vmatpush2.msra.mxu0 0.0
        %3411 = vmatprep.subr.mxu0 0.0
        %3412 = vmatpush2.msra.mxu0 0.0
        %3413 = vmatprep.subr.mxu0 0.0
        %3414 = vmatpush2.msra.mxu0 0.0
        %3415 = vmatprep.subr.mxu0 0.0
        %3416 = vmatpush2.msra.mxu0 0.0
        %3417 = vmatprep.subr.mxu0 0.0
        %3418 = vmatpush2.msra.mxu0 0.0
        %3419 = vmatprep.subr.mxu0 0.0
        %3420 = vmatpush2.msra.mxu0 0.0
        %3421 = vmatprep.subr.mxu0 0.0
        %3422 = vmatpush2.msra.mxu0 0.0
        %3423 = vmatprep.subr.mxu0 0.0
        %3424 = vmatpush2.msra.mxu0 0.0
        %3425 = vmatprep.subr.mxu0 0.0
        %3426 = vmatpush2.msra.mxu0 0.0
        %3427 = vmatprep.subr.mxu0 0.0
        %3428 = vmatpush2.msra.mxu0 0.0
        %3429 = vmatprep.subr.mxu0 0.0
        %3430 = vmatpush2.msra.mxu0 0.0
        %3431 = vmatprep.subr.mxu0 0.0
        %3432 = vmatpush2.msra.mxu0 0.0
        %3433 = vmatprep.subr.mxu0 0.0
        %3434 = vmatpush2.msra.mxu0 0.0
        %3435 = vmatprep.subr.mxu0 0.0
        %3436 = vmatpush2.msra.mxu0 0.0
        %3437 = vmatprep.mubr.f32.mxu0 0.0
        %3438 = vmatmul.mubr.f32.gmra.mxu0 %v3371
        %v3439 = vpop.f32.mrf.mxu0
        %v3440 = vadd.f32 0.0, %v3439
        %v3441 = vpop.f32.mrf.mxu0
        %3442 = vdwg.mxu0
        %v3444 = vrot.slane %v3440, 7
        %v3446 = vadd.f32 %v3259, %v3444
        %v3447 = vxor.u32 %v3446, 2147483648
        %v3448 = vmul.f32 %v3447, 1.442695
        %v3449 = vpow.pop %v3448
        %v3450 = vadd.f32 %v3449, 1.0
        %v3451 = vrcp.pop %v3450
        %v3452 = vmul.f32 1.0, %v3451
        %v3453 = vtanh.pop %v3446
        %v3455 = vrot.slane %v3355, 7
        %v3457 = vmul.f32 %v3452, %v3455
        %3459 = vrot.lane.b32.xlu0 %v3453, 96
        %v3460 = vpop.permute.xlu0 %3459
        %v3462 = vmul.f32 %v3452, %v3460
        %3464 = vrot.lane.b32.xlu0 %v3462, 16
        %v3465 = vpop.permute.xlu0 %3464
        %v3467 = vadd.f32 %v3457, %v3465
        %v3468 = vtanh.pop %v3467
        %3470 = vrot.lane.b32.xlu0 %v3468, 32
        %v3471 = vpop.permute.xlu0 %3470
        %v3473 = vmul.f32 %v3452, %v3471
        %p3474 = scmp.eq.s32.totalorder %s3262, 1
        %s3475 = scalar_select %p3474, 1, 0
        %s3476 = scvt.s32.f32 %s3475
        %v3478 = vrot.slane %v3367, 7
        %v3480 = vsub.f32 %v3473, %v3478
        %v3481 = vstv %s3476
        %v3482 = vmul.f32 %v3481, %v3480
        %v3484 = vrot.slane %v3482, 1
        %v3486 = vadd.f32 %v3367, %v3484
        %v3488 = vrot.slane %v3473, 1
        %3489 = vrot.lane.b32.xlu0 %v3488, 80
        %v3490 = vpop.permute.xlu0 %3489
        %v3491 = vsel %vm3263, %v3490, 0
        %3493 = vmatprep.subr.mxu0 0.0
        %3494 = vmatpush1.msra.mxu0 0.0
        %3495 = vmatprep.subr.mxu0 0.0
        %3496 = vmatpush1.msra.mxu0 0.0
        %3497 = vmatprep.subr.mxu0 0.0
        %3498 = vmatpush1.msra.mxu0 0.0
        %3499 = vmatprep.subr.mxu0 0.0
        %3500 = vmatpush1.msra.mxu0 0.0
        %3501 = vmatprep.subr.mxu0 0.0
        %3502 = vmatpush1.msra.mxu0 0.0
        %3503 = vmatprep.subr.mxu0 0.0
        %3504 = vmatpush1.msra.mxu0 0.0
        %3505 = vmatprep.subr.mxu0 0.0
        %3506 = vmatpush1.msra.mxu0 0.0
        %3507 = vmatprep.subr.mxu0 0.0
        %3508 = vmatpush1.msra.mxu0 0.0
        %3509 = vmatprep.subr.mxu0 0.0
        %3510 = vmatpush1.msra.mxu0 0.0
        %3511 = vmatprep.subr.mxu0 0.0
        %3512 = vmatpush1.msra.mxu0 0.0
        %3513 = vmatprep.subr.mxu0 0.0
        %3514 = vmatpush1.msra.mxu0 0.0
        %3515 = vmatprep.subr.mxu0 0.0
        %3516 = vmatpush1.msra.mxu0 0.0
        %3517 = vmatprep.subr.mxu0 0.0
        %3518 = vmatpush1.msra.mxu0 0.0
        %3519 = vmatprep.subr.mxu0 0.0
        %3520 = vmatpush1.msra.mxu0 0.0
        %3521 = vmatprep.subr.mxu0 0.0
        %3522 = vmatpush1.msra.mxu0 %v3183
        %3523 = vmatprep.subr.mxu0 0.0
        %3524 = vmatpush1.msra.mxu0 %v3182
        %3525 = vmatprep.subr.mxu0 0.0
        %3526 = vmatpush2.msra.mxu0 0.0
        %3527 = vmatprep.subr.mxu0 0.0
        %3528 = vmatpush2.msra.mxu0 0.0
        %3529 = vmatprep.subr.mxu0 0.0
        %3530 = vmatpush2.msra.mxu0 0.0
        %3531 = vmatprep.subr.mxu0 0.0
        %3532 = vmatpush2.msra.mxu0 0.0
        %3533 = vmatprep.subr.mxu0 0.0
        %3534 = vmatpush2.msra.mxu0 0.0
        %3535 = vmatprep.subr.mxu0 0.0
        %3536 = vmatpush2.msra.mxu0 0.0
        %3537 = vmatprep.subr.mxu0 0.0
        %3538 = vmatpush2.msra.mxu0 0.0
        %3539 = vmatprep.subr.mxu0 0.0
        %3540 = vmatpush2.msra.mxu0 0.0
        %3541 = vmatprep.subr.mxu0 0.0
        %3542 = vmatpush2.msra.mxu0 0.0
        %3543 = vmatprep.subr.mxu0 0.0
        %3544 = vmatpush2.msra.mxu0 0.0
        %3545 = vmatprep.subr.mxu0 0.0
        %3546 = vmatpush2.msra.mxu0 0.0
        %3547 = vmatprep.subr.mxu0 0.0
        %3548 = vmatpush2.msra.mxu0 0.0
        %3549 = vmatprep.subr.mxu0 0.0
        %3550 = vmatpush2.msra.mxu0 0.0
        %3551 = vmatprep.subr.mxu0 0.0
        %3552 = vmatpush2.msra.mxu0 0.0
        %3553 = vmatprep.subr.mxu0 0.0
        %3554 = vmatpush2.msra.mxu0 0.0
        %3555 = vmatprep.subr.mxu0 0.0
        %3556 = vmatpush2.msra.mxu0 0.0
        %3557 = vmatprep.mubr.f32.mxu0 0.0
        %3558 = vmatmul.mubr.f32.gmra.mxu0 %v3491
        %v3559 = vpop.f32.mrf.mxu0
        %v3560 = vadd.f32 0.0, %v3559
        %v3561 = vpop.f32.mrf.mxu0
        %3562 = vdwg.mxu0
        %v3564 = vrot.slane %v3560, 6
        %v3566 = vadd.f32 %v3259, %v3564
        %v3567 = vxor.u32 %v3566, 2147483648
        %v3568 = vmul.f32 %v3567, 1.442695
        %v3569 = vpow.pop %v3568
        %v3570 = vadd.f32 %v3569, 1.0
        %v3571 = vrcp.pop %v3570
        %v3572 = vmul.f32 1.0, %v3571
        %v3573 = vtanh.pop %v3566
        %v3575 = vrot.slane %v3467, 7
        %v3577 = vmul.f32 %v3572, %v3575
        %3579 = vrot.lane.b32.xlu0 %v3573, 96
        %v3580 = vpop.permute.xlu0 %3579
        %v3582 = vmul.f32 %v3572, %v3580
        %3584 = vrot.lane.b32.xlu0 %v3582, 16
        %v3585 = vpop.permute.xlu0 %3584
        %v3587 = vadd.f32 %v3577, %v3585
        %v3588 = vtanh.pop %v3587
        %3590 = vrot.lane.b32.xlu0 %v3588, 32
        %v3591 = vpop.permute.xlu0 %3590
        %v3593 = vmul.f32 %v3572, %v3591
        %p3594 = scmp.eq.s32.totalorder %s3262, 2
        %s3595 = scalar_select %p3594, 1, 0
        %s3596 = scvt.s32.f32 %s3595
        %v3598 = vrot.slane %v3486, 6
        %v3600 = vsub.f32 %v3593, %v3598
        %v3601 = vstv %s3596
        %v3602 = vmul.f32 %v3601, %v3600
        %v3604 = vrot.slane %v3602, 2
        %v3606 = vadd.f32 %v3486, %v3604
        %v3608 = vrot.slane %v3593, 2
        %3609 = vrot.lane.b32.xlu0 %v3608, 80
        %v3610 = vpop.permute.xlu0 %3609
        %v3611 = vsel %vm3263, %v3610, 0
        %3613 = vmatprep.subr.mxu0 0.0
        %3614 = vmatpush1.msra.mxu0 0.0
        %3615 = vmatprep.subr.mxu0 0.0
        %3616 = vmatpush1.msra.mxu0 0.0
        %3617 = vmatprep.subr.mxu0 0.0
        %3618 = vmatpush1.msra.mxu0 0.0
        %3619 = vmatprep.subr.mxu0 0.0
        %3620 = vmatpush1.msra.mxu0 0.0
        %3621 = vmatprep.subr.mxu0 0.0
        %3622 = vmatpush1.msra.mxu0 0.0
        %3623 = vmatprep.subr.mxu0 0.0
        %3624 = vmatpush1.msra.mxu0 0.0
        %3625 = vmatprep.subr.mxu0 0.0
        %3626 = vmatpush1.msra.mxu0 0.0
        %3627 = vmatprep.subr.mxu0 0.0
        %3628 = vmatpush1.msra.mxu0 0.0
        %3629 = vmatprep.subr.mxu0 0.0
        %3630 = vmatpush1.msra.mxu0 0.0
        %3631 = vmatprep.subr.mxu0 0.0
        %3632 = vmatpush1.msra.mxu0 0.0
        %3633 = vmatprep.subr.mxu0 0.0
        %3634 = vmatpush1.msra.mxu0 0.0
        %3635 = vmatprep.subr.mxu0 0.0
        %3636 = vmatpush1.msra.mxu0 0.0
        %3637 = vmatprep.subr.mxu0 0.0
        %3638 = vmatpush1.msra.mxu0 0.0
        %3639 = vmatprep.subr.mxu0 0.0
        %3640 = vmatpush1.msra.mxu0 0.0
        %3641 = vmatprep.subr.mxu0 0.0
        %3642 = vmatpush1.msra.mxu0 %v3183
        %3643 = vmatprep.subr.mxu0 0.0
        %3644 = vmatpush1.msra.mxu0 %v3182
        %3645 = vmatprep.subr.mxu0 0.0
        %3646 = vmatpush2.msra.mxu0 0.0
        %3647 = vmatprep.subr.mxu0 0.0
        %3648 = vmatpush2.msra.mxu0 0.0
        %3649 = vmatprep.subr.mxu0 0.0
        %3650 = vmatpush2.msra.mxu0 0.0
        %3651 = vmatprep.subr.mxu0 0.0
        %3652 = vmatpush2.msra.mxu0 0.0
        %3653 = vmatprep.subr.mxu0 0.0
        %3654 = vmatpush2.msra.mxu0 0.0
        %3655 = vmatprep.subr.mxu0 0.0
        %3656 = vmatpush2.msra.mxu0 0.0
        %3657 = vmatprep.subr.mxu0 0.0
        %3658 = vmatpush2.msra.mxu0 0.0
        %3659 = vmatprep.subr.mxu0 0.0
        %3660 = vmatpush2.msra.mxu0 0.0
        %3661 = vmatprep.subr.mxu0 0.0
        %3662 = vmatpush2.msra.mxu0 0.0
        %3663 = vmatprep.subr.mxu0 0.0
        %3664 = vmatpush2.msra.mxu0 0.0
        %3665 = vmatprep.subr.mxu0 0.0
        %3666 = vmatpush2.msra.mxu0 0.0
        %3667 = vmatprep.subr.mxu0 0.0
        %3668 = vmatpush2.msra.mxu0 0.0
        %3669 = vmatprep.subr.mxu0 0.0
        %3670 = vmatpush2.msra.mxu0 0.0
        %3671 = vmatprep.subr.mxu0 0.0
        %3672 = vmatpush2.msra.mxu0 0.0
        %3673 = vmatprep.subr.mxu0 0.0
        %3674 = vmatpush2.msra.mxu0 0.0
        %3675 = vmatprep.subr.mxu0 0.0
        %3676 = vmatpush2.msra.mxu0 0.0
        %3677 = vmatprep.mubr.f32.mxu0 0.0
        %3678 = vmatmul.mubr.f32.gmra.mxu0 %v3611
        %v3679 = vpop.f32.mrf.mxu0
        %v3680 = vadd.f32 0.0, %v3679
        %v3681 = vpop.f32.mrf.mxu0
        %3682 = vdwg.mxu0
        %v3684 = vrot.slane %v3680, 5
        %v3686 = vadd.f32 %v3259, %v3684
        %v3687 = vxor.u32 %v3686, 2147483648
        %v3688 = vmul.f32 %v3687, 1.442695
        %v3689 = vpow.pop %v3688
        %v3690 = vadd.f32 %v3689, 1.0
        %v3691 = vrcp.pop %v3690
        %v3692 = vmul.f32 1.0, %v3691
        %v3693 = vtanh.pop %v3686
        %v3695 = vrot.slane %v3587, 7
        %v3697 = vmul.f32 %v3692, %v3695
        %3699 = vrot.lane.b32.xlu0 %v3693, 96
        %v3700 = vpop.permute.xlu0 %3699
        %v3702 = vmul.f32 %v3692, %v3700
        %3704 = vrot.lane.b32.xlu0 %v3702, 16
        %v3705 = vpop.permute.xlu0 %3704
        %v3707 = vadd.f32 %v3697, %v3705
        %v3708 = vtanh.pop %v3707
        %3710 = vrot.lane.b32.xlu0 %v3708, 32
        %v3711 = vpop.permute.xlu0 %3710
        %v3713 = vmul.f32 %v3692, %v3711
        %p3714 = scmp.eq.s32.totalorder %s3262, 3
        %s3715 = scalar_select %p3714, 1, 0
        %s3716 = scvt.s32.f32 %s3715
        %v3718 = vrot.slane %v3606, 5
        %v3720 = vsub.f32 %v3713, %v3718
        %v3721 = vstv %s3716
        %v3722 = vmul.f32 %v3721, %v3720
        %v3724 = vrot.slane %v3722, 3
        %v3726 = vadd.f32 %v3606, %v3724
        %v3728 = vrot.slane %v3713, 3
        %3729 = vrot.lane.b32.xlu0 %v3728, 80
        %v3730 = vpop.permute.xlu0 %3729
        %v3731 = vsel %vm3263, %v3730, 0
        %3733 = vmatprep.subr.mxu0 0.0
        %3734 = vmatpush1.msra.mxu0 0.0
        %3735 = vmatprep.subr.mxu0 0.0
        %3736 = vmatpush1.msra.mxu0 0.0
        %3737 = vmatprep.subr.mxu0 0.0
        %3738 = vmatpush1.msra.mxu0 0.0
        %3739 = vmatprep.subr.mxu0 0.0
        %3740 = vmatpush1.msra.mxu0 0.0
        %3741 = vmatprep.subr.mxu0 0.0
        %3742 = vmatpush1.msra.mxu0 0.0
        %3743 = vmatprep.subr.mxu0 0.0
        %3744 = vmatpush1.msra.mxu0 0.0
        %3745 = vmatprep.subr.mxu0 0.0
        %3746 = vmatpush1.msra.mxu0 0.0
        %3747 = vmatprep.subr.mxu0 0.0
        %3748 = vmatpush1.msra.mxu0 0.0
        %3749 = vmatprep.subr.mxu0 0.0
        %3750 = vmatpush1.msra.mxu0 0.0
        %3751 = vmatprep.subr.mxu0 0.0
        %3752 = vmatpush1.msra.mxu0 0.0
        %3753 = vmatprep.subr.mxu0 0.0
        %3754 = vmatpush1.msra.mxu0 0.0
        %3755 = vmatprep.subr.mxu0 0.0
        %3756 = vmatpush1.msra.mxu0 0.0
        %3757 = vmatprep.subr.mxu0 0.0
        %3758 = vmatpush1.msra.mxu0 0.0
        %3759 = vmatprep.subr.mxu0 0.0
        %3760 = vmatpush1.msra.mxu0 0.0
        %3761 = vmatprep.subr.mxu0 0.0
        %3762 = vmatpush1.msra.mxu0 %v3183
        %3763 = vmatprep.subr.mxu0 0.0
        %3764 = vmatpush1.msra.mxu0 %v3182
        %3765 = vmatprep.subr.mxu0 0.0
        %3766 = vmatpush2.msra.mxu0 0.0
        %3767 = vmatprep.subr.mxu0 0.0
        %3768 = vmatpush2.msra.mxu0 0.0
        %3769 = vmatprep.subr.mxu0 0.0
        %3770 = vmatpush2.msra.mxu0 0.0
        %3771 = vmatprep.subr.mxu0 0.0
        %3772 = vmatpush2.msra.mxu0 0.0
        %3773 = vmatprep.subr.mxu0 0.0
        %3774 = vmatpush2.msra.mxu0 0.0
        %3775 = vmatprep.subr.mxu0 0.0
        %3776 = vmatpush2.msra.mxu0 0.0
        %3777 = vmatprep.subr.mxu0 0.0
        %3778 = vmatpush2.msra.mxu0 0.0
        %3779 = vmatprep.subr.mxu0 0.0
        %3780 = vmatpush2.msra.mxu0 0.0
        %3781 = vmatprep.subr.mxu0 0.0
        %3782 = vmatpush2.msra.mxu0 0.0
        %3783 = vmatprep.subr.mxu0 0.0
        %3784 = vmatpush2.msra.mxu0 0.0
        %3785 = vmatprep.subr.mxu0 0.0
        %3786 = vmatpush2.msra.mxu0 0.0
        %3787 = vmatprep.subr.mxu0 0.0
        %3788 = vmatpush2.msra.mxu0 0.0
        %3789 = vmatprep.subr.mxu0 0.0
        %3790 = vmatpush2.msra.mxu0 0.0
        %3791 = vmatprep.subr.mxu0 0.0
        %3792 = vmatpush2.msra.mxu0 0.0
        %3793 = vmatprep.subr.mxu0 0.0
        %3794 = vmatpush2.msra.mxu0 0.0
        %3795 = vmatprep.subr.mxu0 0.0
        %3796 = vmatpush2.msra.mxu0 0.0
        %3797 = vmatprep.mubr.f32.mxu0 0.0
        %3798 = vmatmul.mubr.f32.gmra.mxu0 %v3731
        %v3799 = vpop.f32.mrf.mxu0
        %v3800 = vadd.f32 0.0, %v3799
        %v3801 = vpop.f32.mrf.mxu0
        %3802 = vdwg.mxu0
        %v3804 = vrot.slane %v3800, 4
        %v3806 = vadd.f32 %v3259, %v3804
        %v3807 = vxor.u32 %v3806, 2147483648
        %v3808 = vmul.f32 %v3807, 1.442695
        %v3809 = vpow.pop %v3808
        %v3810 = vadd.f32 %v3809, 1.0
        %v3811 = vrcp.pop %v3810
        %v3812 = vmul.f32 1.0, %v3811
        %v3813 = vtanh.pop %v3806
        %v3815 = vrot.slane %v3707, 7
        %v3817 = vmul.f32 %v3812, %v3815
        %3819 = vrot.lane.b32.xlu0 %v3813, 96
        %v3820 = vpop.permute.xlu0 %3819
        %v3822 = vmul.f32 %v3812, %v3820
        %3824 = vrot.lane.b32.xlu0 %v3822, 16
        %v3825 = vpop.permute.xlu0 %3824
        %v3827 = vadd.f32 %v3817, %v3825
        %v3828 = vtanh.pop %v3827
        %3830 = vrot.lane.b32.xlu0 %v3828, 32
        %v3831 = vpop.permute.xlu0 %3830
        %v3833 = vmul.f32 %v3812, %v3831
        %p3834 = scmp.eq.s32.totalorder %s3262, 4
        %s3835 = scalar_select %p3834, 1, 0
        %s3836 = scvt.s32.f32 %s3835
        %v3838 = vrot.slane %v3726, 4
        %v3840 = vsub.f32 %v3833, %v3838
        %v3841 = vstv %s3836
        %v3842 = vmul.f32 %v3841, %v3840
        %v3844 = vrot.slane %v3842, 4
        %v3846 = vadd.f32 %v3726, %v3844
        %v3848 = vrot.slane %v3833, 4
        %3849 = vrot.lane.b32.xlu0 %v3848, 80
        %v3850 = vpop.permute.xlu0 %3849
        %v3851 = vsel %vm3263, %v3850, 0
        %3853 = vmatprep.subr.mxu0 0.0
        %3854 = vmatpush1.msra.mxu0 0.0
        %3855 = vmatprep.subr.mxu0 0.0
        %3856 = vmatpush1.msra.mxu0 0.0
        %3857 = vmatprep.subr.mxu0 0.0
        %3858 = vmatpush1.msra.mxu0 0.0
        %3859 = vmatprep.subr.mxu0 0.0
        %3860 = vmatpush1.msra.mxu0 0.0
        %3861 = vmatprep.subr.mxu0 0.0
        %3862 = vmatpush1.msra.mxu0 0.0
        %3863 = vmatprep.subr.mxu0 0.0
        %3864 = vmatpush1.msra.mxu0 0.0
        %3865 = vmatprep.subr.mxu0 0.0
        %3866 = vmatpush1.msra.mxu0 0.0
        %3867 = vmatprep.subr.mxu0 0.0
        %3868 = vmatpush1.msra.mxu0 0.0
        %3869 = vmatprep.subr.mxu0 0.0
        %3870 = vmatpush1.msra.mxu0 0.0
        %3871 = vmatprep.subr.mxu0 0.0
        %3872 = vmatpush1.msra.mxu0 0.0
        %3873 = vmatprep.subr.mxu0 0.0
        %3874 = vmatpush1.msra.mxu0 0.0
        %3875 = vmatprep.subr.mxu0 0.0
        %3876 = vmatpush1.msra.mxu0 0.0
        %3877 = vmatprep.subr.mxu0 0.0
        %3878 = vmatpush1.msra.mxu0 0.0
        %3879 = vmatprep.subr.mxu0 0.0
        %3880 = vmatpush1.msra.mxu0 0.0
        %3881 = vmatprep.subr.mxu0 0.0
        %3882 = vmatpush1.msra.mxu0 %v3183
        %3883 = vmatprep.subr.mxu0 0.0
        %3884 = vmatpush1.msra.mxu0 %v3182
        %3885 = vmatprep.subr.mxu0 0.0
        %3886 = vmatpush2.msra.mxu0 0.0
        %3887 = vmatprep.subr.mxu0 0.0
        %3888 = vmatpush2.msra.mxu0 0.0
        %3889 = vmatprep.subr.mxu0 0.0
        %3890 = vmatpush2.msra.mxu0 0.0
        %3891 = vmatprep.subr.mxu0 0.0
        %3892 = vmatpush2.msra.mxu0 0.0
        %3893 = vmatprep.subr.mxu0 0.0
        %3894 = vmatpush2.msra.mxu0 0.0
        %3895 = vmatprep.subr.mxu0 0.0
        %3896 = vmatpush2.msra.mxu0 0.0
        %3897 = vmatprep.subr.mxu0 0.0
        %3898 = vmatpush2.msra.mxu0 0.0
        %3899 = vmatprep.subr.mxu0 0.0
        %3900 = vmatpush2.msra.mxu0 0.0
        %3901 = vmatprep.subr.mxu0 0.0
        %3902 = vmatpush2.msra.mxu0 0.0
        %3903 = vmatprep.subr.mxu0 0.0
        %3904 = vmatpush2.msra.mxu0 0.0
        %3905 = vmatprep.subr.mxu0 0.0
        %3906 = vmatpush2.msra.mxu0 0.0
        %3907 = vmatprep.subr.mxu0 0.0
        %3908 = vmatpush2.msra.mxu0 0.0
        %3909 = vmatprep.subr.mxu0 0.0
        %3910 = vmatpush2.msra.mxu0 0.0
        %3911 = vmatprep.subr.mxu0 0.0
        %3912 = vmatpush2.msra.mxu0 0.0
        %3913 = vmatprep.subr.mxu0 0.0
        %3914 = vmatpush2.msra.mxu0 0.0
        %3915 = vmatprep.subr.mxu0 0.0
        %3916 = vmatpush2.msra.mxu0 0.0
        %3917 = vmatprep.mubr.f32.mxu0 0.0
        %3918 = vmatmul.mubr.f32.gmra.mxu0 %v3851
        %v3919 = vpop.f32.mrf.mxu0
        %v3920 = vadd.f32 0.0, %v3919
        %v3921 = vpop.f32.mrf.mxu0
        %3922 = vdwg.mxu0
        %v3924 = vrot.slane %v3920, 3
        %v3926 = vadd.f32 %v3259, %v3924
        %v3927 = vxor.u32 %v3926, 2147483648
        %v3928 = vmul.f32 %v3927, 1.442695
        %v3929 = vpow.pop %v3928
        %v3930 = vadd.f32 %v3929, 1.0
        %v3931 = vrcp.pop %v3930
        %v3932 = vmul.f32 1.0, %v3931
        %v3933 = vtanh.pop %v3926
        %v3935 = vrot.slane %v3827, 7
        %v3937 = vmul.f32 %v3932, %v3935
        %3939 = vrot.lane.b32.xlu0 %v3933, 96
        %v3940 = vpop.permute.xlu0 %3939
        %v3942 = vmul.f32 %v3932, %v3940
        %3944 = vrot.lane.b32.xlu0 %v3942, 16
        %v3945 = vpop.permute.xlu0 %3944
        %v3947 = vadd.f32 %v3937, %v3945
        %v3948 = vtanh.pop %v3947
        %3950 = vrot.lane.b32.xlu0 %v3948, 32
        %v3951 = vpop.permute.xlu0 %3950
        %v3953 = vmul.f32 %v3932, %v3951
        %p3954 = scmp.eq.s32.totalorder %s3262, 5
        %s3955 = scalar_select %p3954, 1, 0
        %s3956 = scvt.s32.f32 %s3955
        %v3958 = vrot.slane %v3846, 3
        %v3960 = vsub.f32 %v3953, %v3958
        %v3961 = vstv %s3956
        %v3962 = vmul.f32 %v3961, %v3960
        %v3964 = vrot.slane %v3962, 5
        %v3966 = vadd.f32 %v3846, %v3964
        %v3968 = vrot.slane %v3953, 5
        %3969 = vrot.lane.b32.xlu0 %v3968, 80
        %v3970 = vpop.permute.xlu0 %3969
        %v3971 = vsel %vm3263, %v3970, 0
        %3973 = vmatprep.subr.mxu0 0.0
        %3974 = vmatpush1.msra.mxu0 0.0
        %3975 = vmatprep.subr.mxu0 0.0
        %3976 = vmatpush1.msra.mxu0 0.0
        %3977 = vmatprep.subr.mxu0 0.0
        %3978 = vmatpush1.msra.mxu0 0.0
        %3979 = vmatprep.subr.mxu0 0.0
        %3980 = vmatpush1.msra.mxu0 0.0
        %3981 = vmatprep.subr.mxu0 0.0
        %3982 = vmatpush1.msra.mxu0 0.0
        %3983 = vmatprep.subr.mxu0 0.0
        %3984 = vmatpush1.msra.mxu0 0.0
        %3985 = vmatprep.subr.mxu0 0.0
        %3986 = vmatpush1.msra.mxu0 0.0
        %3987 = vmatprep.subr.mxu0 0.0
        %3988 = vmatpush1.msra.mxu0 0.0
        %3989 = vmatprep.subr.mxu0 0.0
        %3990 = vmatpush1.msra.mxu0 0.0
        %3991 = vmatprep.subr.mxu0 0.0
        %3992 = vmatpush1.msra.mxu0 0.0
        %3993 = vmatprep.subr.mxu0 0.0
        %3994 = vmatpush1.msra.mxu0 0.0
        %3995 = vmatprep.subr.mxu0 0.0
        %3996 = vmatpush1.msra.mxu0 0.0
        %3997 = vmatprep.subr.mxu0 0.0
        %3998 = vmatpush1.msra.mxu0 0.0
        %3999 = vmatprep.subr.mxu0 0.0
        %4000 = vmatpush1.msra.mxu0 0.0
        %4001 = vmatprep.subr.mxu0 0.0
        %4002 = vmatpush1.msra.mxu0 %v3183
        %4003 = vmatprep.subr.mxu0 0.0
        %4004 = vmatpush1.msra.mxu0 %v3182
        %4005 = vmatprep.subr.mxu0 0.0
        %4006 = vmatpush2.msra.mxu0 0.0
        %4007 = vmatprep.subr.mxu0 0.0
        %4008 = vmatpush2.msra.mxu0 0.0
        %4009 = vmatprep.subr.mxu0 0.0
        %4010 = vmatpush2.msra.mxu0 0.0
        %4011 = vmatprep.subr.mxu0 0.0
        %4012 = vmatpush2.msra.mxu0 0.0
        %4013 = vmatprep.subr.mxu0 0.0
        %4014 = vmatpush2.msra.mxu0 0.0
        %4015 = vmatprep.subr.mxu0 0.0
        %4016 = vmatpush2.msra.mxu0 0.0
        %4017 = vmatprep.subr.mxu0 0.0
        %4018 = vmatpush2.msra.mxu0 0.0
        %4019 = vmatprep.subr.mxu0 0.0
        %4020 = vmatpush2.msra.mxu0 0.0
        %4021 = vmatprep.subr.mxu0 0.0
        %4022 = vmatpush2.msra.mxu0 0.0
        %4023 = vmatprep.subr.mxu0 0.0
        %4024 = vmatpush2.msra.mxu0 0.0
        %4025 = vmatprep.subr.mxu0 0.0
        %4026 = vmatpush2.msra.mxu0 0.0
        %4027 = vmatprep.subr.mxu0 0.0
        %4028 = vmatpush2.msra.mxu0 0.0
        %4029 = vmatprep.subr.mxu0 0.0
        %4030 = vmatpush2.msra.mxu0 0.0
        %4031 = vmatprep.subr.mxu0 0.0
        %4032 = vmatpush2.msra.mxu0 0.0
        %4033 = vmatprep.subr.mxu0 0.0
        %4034 = vmatpush2.msra.mxu0 0.0
        %4035 = vmatprep.subr.mxu0 0.0
        %4036 = vmatpush2.msra.mxu0 0.0
        %4037 = vmatprep.mubr.f32.mxu0 0.0
        %4038 = vmatmul.mubr.f32.gmra.mxu0 %v3971
        %v4039 = vpop.f32.mrf.mxu0
        %v4040 = vadd.f32 0.0, %v4039
        %v4041 = vpop.f32.mrf.mxu0
        %4042 = vdwg.mxu0
        %v4044 = vrot.slane %v4040, 2
        %v4046 = vadd.f32 %v3259, %v4044
        %v4047 = vxor.u32 %v4046, 2147483648
        %v4048 = vmul.f32 %v4047, 1.442695
        %v4049 = vpow.pop %v4048
        %v4050 = vadd.f32 %v4049, 1.0
        %v4051 = vrcp.pop %v4050
        %v4052 = vmul.f32 1.0, %v4051
        %v4053 = vtanh.pop %v4046
        %v4055 = vrot.slane %v3947, 7
        %v4057 = vmul.f32 %v4052, %v4055
        %4059 = vrot.lane.b32.xlu0 %v4053, 96
        %v4060 = vpop.permute.xlu0 %4059
        %v4062 = vmul.f32 %v4052, %v4060
        %4064 = vrot.lane.b32.xlu0 %v4062, 16
        %v4065 = vpop.permute.xlu0 %4064
        %v4067 = vadd.f32 %v4057, %v4065
        %v4068 = vtanh.pop %v4067
        %4070 = vrot.lane.b32.xlu0 %v4068, 32
        %v4071 = vpop.permute.xlu0 %4070
        %v4073 = vmul.f32 %v4052, %v4071
        %p4074 = scmp.eq.s32.totalorder %s3262, 6
        %s4075 = scalar_select %p4074, 1, 0
        %s4076 = scvt.s32.f32 %s4075
        %v4078 = vrot.slane %v3966, 2
        %v4080 = vsub.f32 %v4073, %v4078
        %v4081 = vstv %s4076
        %v4082 = vmul.f32 %v4081, %v4080
        %v4084 = vrot.slane %v4082, 6
        %v4086 = vadd.f32 %v3966, %v4084
        %v4088 = vrot.slane %v4073, 6
        %4089 = vrot.lane.b32.xlu0 %v4088, 80
        %v4090 = vpop.permute.xlu0 %4089
        %v4091 = vsel %vm3263, %v4090, 0
        %4093 = vmatprep.subr.mxu0 0.0
        %4094 = vmatpush1.msra.mxu0 0.0
        %4095 = vmatprep.subr.mxu0 0.0
        %4096 = vmatpush1.msra.mxu0 0.0
        %4097 = vmatprep.subr.mxu0 0.0
        %4098 = vmatpush1.msra.mxu0 0.0
        %4099 = vmatprep.subr.mxu0 0.0
        %4100 = vmatpush1.msra.mxu0 0.0
        %4101 = vmatprep.subr.mxu0 0.0
        %4102 = vmatpush1.msra.mxu0 0.0
        %4103 = vmatprep.subr.mxu0 0.0
        %4104 = vmatpush1.msra.mxu0 0.0
        %4105 = vmatprep.subr.mxu0 0.0
        %4106 = vmatpush1.msra.mxu0 0.0
        %4107 = vmatprep.subr.mxu0 0.0
        %4108 = vmatpush1.msra.mxu0 0.0
        %4109 = vmatprep.subr.mxu0 0.0
        %4110 = vmatpush1.msra.mxu0 0.0
        %4111 = vmatprep.subr.mxu0 0.0
        %4112 = vmatpush1.msra.mxu0 0.0
        %4113 = vmatprep.subr.mxu0 0.0
        %4114 = vmatpush1.msra.mxu0 0.0
        %4115 = vmatprep.subr.mxu0 0.0
        %4116 = vmatpush1.msra.mxu0 0.0
        %4117 = vmatprep.subr.mxu0 0.0
        %4118 = vmatpush1.msra.mxu0 0.0
        %4119 = vmatprep.subr.mxu0 0.0
        %4120 = vmatpush1.msra.mxu0 0.0
        %4121 = vmatprep.subr.mxu0 0.0
        %4122 = vmatpush1.msra.mxu0 %v3183
        %4123 = vmatprep.subr.mxu0 0.0
        %4124 = vmatpush1.msra.mxu0 %v3182
        %4125 = vmatprep.subr.mxu0 0.0
        %4126 = vmatpush2.msra.mxu0 0.0
        %4127 = vmatprep.subr.mxu0 0.0
        %4128 = vmatpush2.msra.mxu0 0.0
        %4129 = vmatprep.subr.mxu0 0.0
        %4130 = vmatpush2.msra.mxu0 0.0
        %4131 = vmatprep.subr.mxu0 0.0
        %4132 = vmatpush2.msra.mxu0 0.0
        %4133 = vmatprep.subr.mxu0 0.0
        %4134 = vmatpush2.msra.mxu0 0.0
        %4135 = vmatprep.subr.mxu0 0.0
        %4136 = vmatpush2.msra.mxu0 0.0
        %4137 = vmatprep.subr.mxu0 0.0
        %4138 = vmatpush2.msra.mxu0 0.0
        %4139 = vmatprep.subr.mxu0 0.0
        %4140 = vmatpush2.msra.mxu0 0.0
        %4141 = vmatprep.subr.mxu0 0.0
        %4142 = vmatpush2.msra.mxu0 0.0
        %4143 = vmatprep.subr.mxu0 0.0
        %4144 = vmatpush2.msra.mxu0 0.0
        %4145 = vmatprep.subr.mxu0 0.0
        %4146 = vmatpush2.msra.mxu0 0.0
        %4147 = vmatprep.subr.mxu0 0.0
        %4148 = vmatpush2.msra.mxu0 0.0
        %4149 = vmatprep.subr.mxu0 0.0
        %4150 = vmatpush2.msra.mxu0 0.0
        %4151 = vmatprep.subr.mxu0 0.0
        %4152 = vmatpush2.msra.mxu0 0.0
        %4153 = vmatprep.subr.mxu0 0.0
        %4154 = vmatpush2.msra.mxu0 0.0
        %4155 = vmatprep.subr.mxu0 0.0
        %4156 = vmatpush2.msra.mxu0 0.0
        %4157 = vmatprep.mubr.f32.mxu0 0.0
        %4158 = vmatmul.mubr.f32.gmra.mxu0 %v4091
        %v4159 = vpop.f32.mrf.mxu0
        %v4160 = vadd.f32 0.0, %v4159
        %v4161 = vpop.f32.mrf.mxu0
        %4162 = vdwg.mxu0
        %v4164 = vrot.slane %v4160, 1
        %v4166 = vadd.f32 %v3259, %v4164
        %v4167 = vxor.u32 %v4166, 2147483648
        %v4168 = vmul.f32 %v4167, 1.442695
        %v4169 = vpow.pop %v4168
        %v4170 = vadd.f32 %v4169, 1.0
        %v4171 = vrcp.pop %v4170
        %v4172 = vmul.f32 1.0, %v4171
        %v4173 = vtanh.pop %v4166
        %v4175 = vrot.slane %v4067, 7
        %v4177 = vmul.f32 %v4172, %v4175
        %4179 = vrot.lane.b32.xlu0 %v4173, 96
        %v4180 = vpop.permute.xlu0 %4179
        %v4182 = vmul.f32 %v4172, %v4180
        %4184 = vrot.lane.b32.xlu0 %v4182, 16
        %v4185 = vpop.permute.xlu0 %4184
        %v4187 = vadd.f32 %v4177, %v4185
        %v4188 = vtanh.pop %v4187
        %4190 = vrot.lane.b32.xlu0 %v4188, 32
        %v4191 = vpop.permute.xlu0 %4190
        %v4193 = vmul.f32 %v4172, %v4191
        %p4194 = scmp.eq.s32.totalorder %s3262, 7
        %s4195 = scalar_select %p4194, 1, 0
        %s4196 = scvt.s32.f32 %s4195
        %v4198 = vrot.slane %v4086, 1
        %v4200 = vsub.f32 %v4193, %v4198
        %v4201 = vstv %s4196
        %v4202 = vmul.f32 %v4201, %v4200
        %v4204 = vrot.slane %v4202, 7
        %v4206 = vadd.f32 %v4086, %v4204
        %v4207 = vld [vmem:[%s10] sm:$0xff]
        %v4208 = vld [vmem:[%s10 + $0x8] sm:$0xff]
        %v4209 = vld [vmem:[%s3 + $0x3] sm:$0x1]
        %4211 = vrot.lane.b32.xlu0 %v4206, 80
        %v4212 = vpop.permute.xlu0 %4211
        %v4213 = vsel %vm3263, %v4212, 0
        %4215 = vmatprep.subr.mxu0 0.0
        %4216 = vmatpush1.msra.mxu0 0.0
        %4217 = vmatprep.subr.mxu0 0.0
        %4218 = vmatpush1.msra.mxu0 0.0
        %4219 = vmatprep.subr.mxu0 0.0
        %4220 = vmatpush1.msra.mxu0 0.0
        %4221 = vmatprep.subr.mxu0 0.0
        %4222 = vmatpush1.msra.mxu0 0.0
        %4223 = vmatprep.subr.mxu0 0.0
        %4224 = vmatpush1.msra.mxu0 0.0
        %4225 = vmatprep.subr.mxu0 0.0
        %4226 = vmatpush1.msra.mxu0 0.0
        %4227 = vmatprep.subr.mxu0 0.0
        %4228 = vmatpush1.msra.mxu0 0.0
        %4229 = vmatprep.subr.mxu0 0.0
        %4230 = vmatpush1.msra.mxu0 0.0
        %4231 = vmatprep.subr.mxu0 0.0
        %4232 = vmatpush1.msra.mxu0 0.0
        %4233 = vmatprep.subr.mxu0 0.0
        %4234 = vmatpush1.msra.mxu0 0.0
        %4235 = vmatprep.subr.mxu0 0.0
        %4236 = vmatpush1.msra.mxu0 0.0
        %4237 = vmatprep.subr.mxu0 0.0
        %4238 = vmatpush1.msra.mxu0 0.0
        %4239 = vmatprep.subr.mxu0 0.0
        %4240 = vmatpush1.msra.mxu0 0.0
        %4241 = vmatprep.subr.mxu0 0.0
        %4242 = vmatpush1.msra.mxu0 0.0
        %4243 = vmatprep.subr.mxu0 0.0
        %4244 = vmatpush1.msra.mxu0 %v4208
        %4245 = vmatprep.subr.mxu0 0.0
        %4246 = vmatpush1.msra.mxu0 %v4207
        %4247 = vmatprep.subr.mxu0 0.0
        %4248 = vmatpush2.msra.mxu0 0.0
        %4249 = vmatprep.subr.mxu0 0.0
        %4250 = vmatpush2.msra.mxu0 0.0
        %4251 = vmatprep.subr.mxu0 0.0
        %4252 = vmatpush2.msra.mxu0 0.0
        %4253 = vmatprep.subr.mxu0 0.0
        %4254 = vmatpush2.msra.mxu0 0.0
        %4255 = vmatprep.subr.mxu0 0.0
        %4256 = vmatpush2.msra.mxu0 0.0
        %4257 = vmatprep.subr.mxu0 0.0
        %4258 = vmatpush2.msra.mxu0 0.0
        %4259 = vmatprep.subr.mxu0 0.0
        %4260 = vmatpush2.msra.mxu0 0.0
        %4261 = vmatprep.subr.mxu0 0.0
        %4262 = vmatpush2.msra.mxu0 0.0
        %4263 = vmatprep.subr.mxu0 0.0
        %4264 = vmatpush2.msra.mxu0 0.0
        %4265 = vmatprep.subr.mxu0 0.0
        %4266 = vmatpush2.msra.mxu0 0.0
        %4267 = vmatprep.subr.mxu0 0.0
        %4268 = vmatpush2.msra.mxu0 0.0
        %4269 = vmatprep.subr.mxu0 0.0
        %4270 = vmatpush2.msra.mxu0 0.0
        %4271 = vmatprep.subr.mxu0 0.0
        %4272 = vmatpush2.msra.mxu0 0.0
        %4273 = vmatprep.subr.mxu0 0.0
        %4274 = vmatpush2.msra.mxu0 0.0
        %4275 = vmatprep.subr.mxu0 0.0
        %4276 = vmatpush2.msra.mxu0 0.0
        %4277 = vmatprep.subr.mxu0 0.0
        %4278 = vmatpush2.msra.mxu0 0.0
        %4279 = vmatprep.mubr.f32.mxu0 0.0
        %4280 = vmatmul.mubr.f32.gmra.mxu0 %v4213
        %v4281 = vpop.f32.mrf.mxu0
        %v4282 = vadd.f32 %v4209, %v4281
        %v4283 = vpop.f32.mrf.mxu0
        %4284 = vdwg.mxu0
        %vm4285 = vcmask 8192
        %4286 = vst.msk [vmem:[%s369] sm:$0x1] %vm4285, %v4282
        %s4287 = sand.u32 %s259, 1
        %s4288 = scalar_lea.sflag [#allocation5], %s4287
        %s4289 = sand.u32 %s259, 1
        %s4290 = scalar_lea.vmem [#allocation4], %s4289
        // Predicated region
        $region61: #{finetuned_bert_forward.1} parent=59 // pred_check
          %p4291 = pneg %p269
        $region62: #{finetuned_bert_forward.1} parent=59 // pred_check_branch
          %4293 = sbr.rel (%p4291) target = $region64
        $region63: #{finetuned_bert_forward.1} parent=59 // pred_region
          %s4295 = ssub.s32 16, 16
          %4296 = vsyncadd %s4288, %s4295
          %s4297 = smul.addr %s31, 16
          %s4298 = scalar_lea.hbm %s11, %s4297
          %s4300 = sshll.u32 %s4290, 4
          %s4301 = int_to_ptr.vmem [resolvable:$true] %s4300
          %4303 = dma.vmem_to_hbm [thread:$0]  %s4301, 16, %s4298, %s4288
        $region64: #{finetuned_bert_forward.1} parent=59 // pred_fallthru
          _
      $region60: #{finetuned_bert_forward.1} parent=5 // pred_fallthru
        _
      %p4304 = scmp.le.s32.totalorder 2, %s26
      // Predicated region
      $region65: #{finetuned_bert_forward.1} parent=5 // pred_check
        %p4305 = pneg %p4304
      $region66: #{finetuned_bert_forward.1} parent=5 // pred_check_branch
        %4307 = sbr.rel (%p4305) target = $region68
      $region67: #{finetuned_bert_forward.1} parent=5 // pred_region
        %s4308 = ssub.s32 %s26, 2
        // Predicated region
        $region69: #{finetuned_bert_forward.1} parent=67 // pred_check
          %p4309 = pneg %p275
        $region70: #{finetuned_bert_forward.1} parent=67 // pred_check_branch
          %4311 = sbr.rel (%p4309) target = $region72
        $region71: #{finetuned_bert_forward.1} parent=67 // pred_region
          %s4312 = sand.u32 %s260, 1
          %s4313 = scalar_lea.sflag [#allocation5], %s4312
          %s4314 = sand.u32 %s260, 1
          %s4315 = scalar_lea.vmem [#allocation4], %s4314
          %4316 = dma.done %s4313, 16
        $region72: #{finetuned_bert_forward.1} parent=67 // pred_fallthru
          _
      $region68: #{finetuned_bert_forward.1} parent=5 // pred_fallthru
        _
    $region6: #{finetuned_bert_forward.1} parent=1 // loop_footer
      %s30 = sadd.s32 1, %s26
    $region7: #{finetuned_bert_forward.1} parent=1 // loop_footer_branch
      %25 = sbr.rel target = $region3
    $region8: #{finetuned_bert_forward.1} parent=1 // loop_exit
      _
    %4317 = vsyncpa [#allocation5], 1
    %s4318 = scalar_lea.sflag [#allocation5], 1
    %4319 = vsyncpa %s4318, 1

</llo_original>
